<compile_context>
chip_gen: v7x
topology: tpu7x:2x2x1
jax: 0.10.0
libtpu: 0.0.40
codegen_flags: <defaults>
</compile_context>

<pallas_src>
import jax
import jax.numpy as jnp
import numpy as np
from jax.experimental import pallas as pl
from jax.experimental.pallas import tpu as pltpu

EPS = 1e-5


def _vmem_limit_bytes():
    """Generation-aware scoped-VMEM limit (v5e/v6e: 128 MiB physical, v7x: 64)."""
    cap = 64 * 1024 * 1024
    try:
        info = pltpu.get_tpu_info()
        cap = int(getattr(info, "vmem_capacity_bytes", cap))
    except Exception:
        pass
    if cap >= 96 * 1024 * 1024:
        return 100 * 1024 * 1024     # v5e / v6e
    return 44 * 1024 * 1024          # v7x (leave headroom vs. 64 MiB physical)


def _mosaic_params(n_grid_axes, vmem_limit):
    return pltpu.CompilerParams(
        dimension_semantics=("parallel",) * n_grid_axes,   # megacore-friendly
        vmem_limit_bytes=vmem_limit,
    )


def _pick_row_block(N, H, W, max_c_bytes, target_bytes=4 * 1024 * 1024):
    """Largest row-tile TH dividing H whose widest activation tile stays under
    target_bytes; prefers (TH*W) % 8 == 0 so the (TH,W,C)->(TH*W,C) reshape
    stays sublane-aligned.  Splits H when N alone can't feed both TCs."""
    divisors = [th for th in range(1, H + 1) if H % th == 0]
    fitting = [th for th in divisors if th * W * max_c_bytes <= target_bytes]
    if not fitting:
        th = 1
    else:
        aligned = [t for t in fitting if (t * W) % 8 == 0]
        th = max(aligned) if aligned else max(fitting)
    if N * (H // th) < 2 and H % 2 == 0:   # give the second TensorCore work
        th = H // 2
    return th


# ---------------------------------------------------------------------------
# kernels (channels on lanes)
# ---------------------------------------------------------------------------
def _conv1_kernel(x_ref, w_ref, o_ref, s_ref):
    """1x1 conv (channel matmul) + per-tile per-channel sum / sum-of-squares.
    x is cast to the compute dtype here (no wrapper-side cast / extra HBM pass)."""
    _, TH, W, Cin = x_ref.shape
    x = x_ref[0].astype(w_ref.dtype).reshape(TH * W, Cin)
    o = jnp.dot(x, w_ref[...], preferred_element_type=jnp.float32)      # (THW,P) f32
    s_ref[0:1, 0:1, :] = jnp.sum(o, axis=0).reshape(1, 1, -1)
    s_ref[0:1, 1:2, :] = jnp.sum(o * o, axis=0).reshape(1, 1, -1)
    o_ref[0] = o.reshape(TH, W, -1).astype(o_ref.dtype)


def _bn_relu_conv3x3_kernel(a_ref, sc_ref, sh_ref, w_ref, o_ref, s_ref,
                            pad_ref, col_ref):
    """bn(prev)+relu, then 3x3 pad=1 conv via im2col (one K=9P MXU matmul),
    + per-image per-channel sum / sum-of-squares."""
    _, H, W, P = a_ref.shape
    a = a_ref[0].astype(jnp.float32) * sc_ref[...] + sh_ref[...]
    a = jnp.maximum(a, 0.0).astype(pad_ref.dtype)                        # (H, W, P)

    # Zero-padded (H+2, W+2, P) image.  The two zero columns are folded into
    # the single contiguous interior store (one unmasked store instead of two
    # strided size-1-column masked stores); only the top/bottom halo rows get
    # separate writes.  Redone every grid step: scratch is per-core and the
    # batch axis is "parallel".
    zrow = jnp.zeros((1, W + 2, P), pad_ref.dtype)
    zcol = jnp.zeros((H, 1, P), pad_ref.dtype)
    pad_ref[0:1, :, :] = zrow
    pad_ref[H + 1:H + 2, :, :] = zrow
    pad_ref[1:H + 1, :, :] = jnp.concatenate([zcol, a, zcol], axis=1)

    # im2col slab (H*W, 9P): column-block order (dy, dx, cin) matches
    # w2.reshape(9P, P) row order.  One deep matmul instead of nine K=P
    # matmuls with an f32 accumulator read-modify-write.
    for dy in range(3):
        for dx in range(3):
            kk = dy * 3 + dx
            col_ref[:, kk * P:(kk + 1) * P] = (
                pad_ref[dy:dy + H, dx:dx + W, :].reshape(H * W, P))

    o = jnp.dot(col_ref[...], w_ref[...], preferred_element_type=jnp.float32)
    s_ref[0:1, 0:1, :] = jnp.sum(o, axis=0).reshape(1, 1, -1)
    s_ref[0:1, 1:2, :] = jnp.sum(o * o, axis=0).reshape(1, 1, -1)
    o_ref[0] = o.reshape(H, W, P).astype(o_ref.dtype)


def _bn_relu_conv1x1_kernel(a_ref, sc_ref, sh_ref, w_ref, o_ref, s_ref):
    """bn(prev)+relu, then 1x1 conv, + per-tile per-channel sum / sum-of-squares."""
    _, TH, W, P = a_ref.shape
    a = a_ref[0].astype(jnp.float32) * sc_ref[...] + sh_ref[...]
    a = jnp.maximum(a, 0.0).astype(w_ref.dtype).reshape(TH * W, P)
    o = jnp.dot(a, w_ref[...], preferred_element_type=jnp.float32)       # (THW,C4)
    s_ref[0:1, 0:1, :] = jnp.sum(o, axis=0).reshape(1, 1, -1)
    s_ref[0:1, 1:2, :] = jnp.sum(o * o, axis=0).reshape(1, 1, -1)
    o_ref[0] = o.reshape(TH, W, -1).astype(o_ref.dtype)


def _bn_add_relu_kernel(o3_ref, x_ref, sc_ref, sh_ref, out_ref):
    """bn3, residual add (original-precision x), relu."""
    o = o3_ref[0].astype(jnp.float32) * sc_ref[...] + sh_ref[...]
    r = x_ref[0].astype(jnp.float32)
    out_ref[0] = jnp.maximum(o + r, 0.0).astype(out_ref.dtype)


# ---------------------------------------------------------------------------
# wrapper
# ---------------------------------------------------------------------------
def _finalize_bn(stats, gamma, beta, count):
    """(per-tile sum, sumsq) partials -> per-channel f32 (scale, shift)."""
    s = jnp.sum(stats.astype(jnp.float32), axis=0)            # (2, C)
    mean = s[0] / count
    var = jnp.maximum(s[1] / count - mean * mean, 0.0)         # biased variance
    scale = gamma.reshape(-1).astype(jnp.float32) * jax.lax.rsqrt(var + EPS)
    shift = beta.reshape(-1).astype(jnp.float32) - mean * scale
    return scale.reshape(1, -1), shift.reshape(1, -1)


def _resident_spec(shape, grid_rank):
    """Grid-invariant VMEM resident (weights / scale / shift)."""
    nd = len(shape)
    if grid_rank == 1:
        return pl.BlockSpec(shape, lambda n: (0,) * nd)
    return pl.BlockSpec(shape, lambda n, b: (0,) * nd)


def _bottleneck_impl(x, params, compute_dtype=jnp.bfloat16, out_dtype=None):
    """x: (N, H, W, Cin) channels-last.
    params: (w1 (Cin,P), g1 (P,), b1 (P,), w2 HWIO (3,3,P,P), g2, b2,
             w3 (P,4P), g3, b3)."""
    w1, g1, b1, w2, g2, b2, w3, g3, b3 = params
    N, H, W, Cin = x.shape
    P = w1.shape[1]
    C4 = w3.shape[1]
    assert Cin == C4, "downsample=None requires inplanes == planes * 4"

    cd = jnp.dtype(compute_dtype)
    isz = cd.itemsize
    out_dt = jnp.dtype(out_dtype) if out_dtype is not None else x.dtype
    x_isz = jnp.dtype(x.dtype).itemsize
    o_isz = jnp.dtype(out_dt).itemsize
    cnt = N * H * W

    # weights cast once (tiny); x is NOT pre-cast (saves a full HBM pass).
    w1c = w1.astype(cd)
    w2c = w2.astype(cd).reshape(9 * P, P)   # HWIO -> (9P, P): matches im2col order
    w3c = w3.astype(cd)

    vmem_limit = _vmem_limit_bytes()

    # Row-blocking for the pointwise calls K1/K3/K4: grid=(N, NB), both parallel.
    max_c_bytes = max(Cin * x_isz, C4 * max(isz, o_isz), P * isz)
    TH = _pick_row_block(N, H, W, max_c_bytes)
    NB = H // TH

    def act_spec(C):
        return pl.BlockSpec((1, TH, W, C), lambda n, b: (n, b, 0, 0))

    def stat_spec(C):
        return pl.BlockSpec((1, 2, C), lambda n, b: (n * NB + b, 0, 0))

    # ---- K1: conv1 (1x1) + stats -------------------------------------------
    o1, s1 = pl.pallas_call(
        _conv1_kernel,
        grid=(N, NB),
        in_specs=[act_spec(Cin), _resident_spec((Cin, P), 2)],
        out_specs=(act_spec(P), stat_spec(P)),
        out_shape=(jax.ShapeDtypeStruct((N, H, W, P), cd),
                   jax.ShapeDtypeStruct((N * NB, 2, P), jnp.float32)),
        compiler_params=_mosaic_params(2, vmem_limit),
        cost_estimate=pl.CostEstimate(
            flops=2 * cnt * Cin * P, transcendentals=0,
            bytes_accessed=cnt * (Cin * x_isz + P * isz) + Cin * P * isz),
    )(x, w1c)
    sc1, sh1 = _finalize_bn(s1, g1, b1, cnt)

    # ---- K2: bn1 + relu + conv2 (3x3, pad=1, im2col) + stats -----------------
    o2, s2 = pl.pallas_call(
        _bn_relu_conv3x3_kernel,
        grid=(N,),
        in_specs=[pl.BlockSpec((1, H, W, P), lambda n: (n, 0, 0, 0)),
                  _resident_spec((1, P), 1), _resident_spec((1, P), 1),
                  _resident_spec((9 * P, P), 1)],
        out_specs=(pl.BlockSpec((1, H, W, P), lambda n: (n, 0, 0, 0)),
                   pl.BlockSpec((1, 2, P), lambda n: (n, 0, 0))),
        out_shape=(jax.ShapeDtypeStruct((N, H, W, P), cd),
                   jax.ShapeDtypeStruct((N, 2, P), jnp.float32)),
        scratch_shapes=[pltpu.VMEM((H + 2, W + 2, P), cd),      # padded image
                        pltpu.VMEM((H * W, 9 * P), cd)],        # im2col slab
        compiler_params=_mosaic_params(1, vmem_limit),
        cost_estimate=pl.CostEstimate(
            flops=2 * cnt * 9 * P * P, transcendentals=0,
            bytes_accessed=2 * cnt * P * isz + 9 * P * P * isz),
    )(o1, sc1, sh1, w2c)
    sc2, sh2 = _finalize_bn(s2, g2, b2, cnt)

    # ---- K3: bn2 + relu + conv3 (1x1) + stats --------------------------------
    o3, s3 = pl.pallas_call(
        _bn_relu_conv1x1_kernel,
        grid=(N, NB),
        in_specs=[act_spec(P),
                  _resident_spec((1, P), 2), _resident_spec((1, P), 2),
                  _resident_spec((P, C4), 2)],
        out_specs=(act_spec(C4), stat_spec(C4)),
        out_shape=(jax.ShapeDtypeStruct((N, H, W, C4), cd),
                   jax.ShapeDtypeStruct((N * NB, 2, C4), jnp.float32)),
        compiler_params=_mosaic_params(2, vmem_limit),
        cost_estimate=pl.CostEstimate(
            flops=2 * cnt * P * C4, transcendentals=0,
            bytes_accessed=cnt * (P + C4) * isz + P * C4 * isz),
    )(o2, sc2, sh2, w3c)
    sc3, sh3 = _finalize_bn(s3, g3, b3, cnt)

    # ---- K4: bn3 + residual + relu -------------------------------------------
    out = pl.pallas_call(
        _bn_add_relu_kernel,
        grid=(N, NB),
        in_specs=[act_spec(C4), act_spec(C4),
                  _resident_spec((1, C4), 2), _resident_spec((1, C4), 2)],
        out_specs=act_spec(C4),
        out_shape=jax.ShapeDtypeStruct((N, H, W, C4), out_dt),
        compiler_params=_mosaic_params(2, vmem_limit),
        cost_estimate=pl.CostEstimate(
            flops=2 * cnt * C4, transcendentals=0,
            bytes_accessed=cnt * C4 * (isz + x_isz + o_isz)),
    )(o3, x, sc3, sh3)
    return out


bottleneck_pallas = jax.jit(_bottleneck_impl,
                            static_argnames=("compute_dtype", "out_dtype"))


def bottleneck_pallas_nchw(x_nchw, params, compute_dtype=jnp.bfloat16):
    """Drop-in shim for the PyTorch NCHW layout. Prefer the NHWC entry point:
    these transposes cost two extra full HBM passes."""
    x = jnp.transpose(x_nchw, (0, 2, 3, 1))
    out = bottleneck_pallas(x, params, compute_dtype=compute_dtype)
    return jnp.transpose(out, (0, 3, 1, 2))


# ---------------------------------------------------------------------------
# pure-JAX reference (NHWC).  compute_dtype=f32 == exact PyTorch semantics;
# compute_dtype=bf16 mirrors the kernel's precision choices for the fast path.
# ---------------------------------------------------------------------------
def _bn_affine_ref(o_f32, g, b):
    mean = jnp.mean(o_f32, axis=(0, 1, 2))
    var = jnp.mean(jnp.square(o_f32 - mean), axis=(0, 1, 2))
    scale = g.reshape(-1).astype(jnp.float32) * jax.lax.rsqrt(var + EPS)
    shift = b.reshape(-1).astype(jnp.float32) - mean * scale
    return scale, shift


def bottleneck_ref(x, params, compute_dtype=jnp.float32):
    w1, g1, b1, w2, g2, b2, w3, g3, b3 = params
    cd = jnp.dtype(compute_dtype)
    f32 = jnp.float32
    xc = x.astype(cd)

    o1 = jnp.einsum('nhwc,co->nhwo', xc, w1.astype(cd),
                    preferred_element_type=f32)
    sc, sh = _bn_affine_ref(o1, g1, b1)
    a1 = jnp.maximum(o1.astype(cd).astype(f32) * sc + sh, 0.0).astype(cd)

    o2 = jax.lax.conv_general_dilated(
        a1, w2.astype(cd), window_strides=(1, 1), padding=((1, 1), (1, 1)),
        dimension_numbers=('NHWC', 'HWIO', 'NHWC'), preferred_element_type=f32)
    sc, sh = _bn_affine_ref(o2, g2, b2)
    a2 = jnp.maximum(o2.astype(cd).astype(f32) * sc + sh, 0.0).astype(cd)

    o3 = jnp.einsum('nhwc,co->nhwo', a2, w3.astype(cd),
                    preferred_element_type=f32)
    sc, sh = _bn_affine_ref(o3, g3, b3)
    o3n = o3.astype(cd).astype(f32) * sc + sh

    # residual add uses the original-precision x (matches the kernel)
    out = jnp.maximum(o3n + x.astype(f32), 0.0)
    return out.astype(x.dtype)


if __name__ == "__main__":
    # Small shapes consistent with Bottleneck: inplanes == planes*4 so the
    # residual add works with downsample=None.  Channels-last (NHWC) layout.
    N, H, W = 2, 16, 16
    planes = 8
    inplanes = planes * 4            # 32
    cout = planes * 4                # 32

    key = jax.random.PRNGKey(0)
    ks = jax.random.split(key, 8)

    x = jax.random.normal(ks[0], (N, H, W, inplanes), dtype=jnp.float32)

    # deterministic synthetic parameters (conv weights bias-free, as in the module)
    w1 = jax.random.normal(ks[1], (inplanes, planes), jnp.float32) * 0.2
    w2 = jax.random.normal(ks[2], (3, 3, planes, planes), jnp.float32) * 0.1   # HWIO
    w3 = jax.random.normal(ks[3], (planes, cout), jnp.float32) * 0.2
    g1 = 1.0 + 0.1 * jax.random.normal(ks[4], (planes,), jnp.float32)
    b1 = 0.1 * jax.random.normal(ks[5], (planes,), jnp.float32)
    g2 = 1.0 + 0.1 * jax.random.normal(ks[6], (planes,), jnp.float32)
    b2 = 0.1 * jax.random.normal(ks[7], (planes,), jnp.float32)
    g3 = jnp.ones((cout,), jnp.float32)
    b3 = jnp.zeros((cout,), jnp.float32)
    params = (w1, g1, b1, w2, g2, b2, w3, g3, b3)

    # full-precision path: must match the PyTorch module semantics tightly
    out_f32 = jax.block_until_ready(
        bottleneck_pallas(x, params, compute_dtype=jnp.float32))
    ref_f32 = jax.block_until_ready(
        bottleneck_ref(x, params, compute_dtype=jnp.float32))
    np.testing.assert_allclose(np.asarray(out_f32), np.asarray(ref_f32),
                               rtol=1e-4, atol=2e-4)

    # bf16 fast path (default): compare against a precision-matched reference
    out_bf16 = jax.block_until_ready(bottleneck_pallas(x, params))
    ref_bf16 = jax.block_until_ready(
        bottleneck_ref(x, params, compute_dtype=jnp.bfloat16))
    np.testing.assert_allclose(np.asarray(out_bf16), np.asarray(ref_bf16),
                               rtol=2e-2, atol=2e-2)

    print("KERNEL_OK")
</pallas_src>

<mosaic_0001>
module attributes {stable_mosaic.version = 11 : i64} {
  func.func @_conv1_kernel(%arg0: i32, %arg1: i32, %arg2: memref<1x16x16x32xf32, #tpu.memory_space<vmem>>, %arg3: memref<32x8xf32, #tpu.memory_space<vmem>>, %arg4: memref<1x16x16x8xf32, #tpu.memory_space<vmem>>, %arg5: memref<1x2x8xf32, #tpu.memory_space<vmem>>) attributes {dimension_semantics = [#tpu.dimension_semantics<parallel>, #tpu.dimension_semantics<parallel>], iteration_bounds = array<i64: 2, 1>, scalar_prefetch = 0 : i64, scratch_operands = 0 : i64, tpu.core_type = #tpu.core_type<tc>, window_params = [{transform_indices = @transform_0, window_bounds = array<i64: 1, 16, 16, 32>}, {pipeline_mode = #tpu.pipeline_mode<synchronous>, transform_indices = @transform_1, window_bounds = array<i64: 32, 8>}, {transform_indices = @transform_2, window_bounds = array<i64: 1, 16, 16, 8>}, {transform_indices = @transform_3, window_bounds = array<i64: 1, 2, 8>}]} {
    %c0 = arith.constant 0 : index
    %c0_0 = arith.constant 0 : index
    %c0_1 = arith.constant 0 : index
    %c0_2 = arith.constant 0 : index
    %0 = vector.load %arg2[%c0, %c0_0, %c0_1, %c0_2] : memref<1x16x16x32xf32, #tpu.memory_space<vmem>>, vector<1x16x16x32xf32>
    %1 = vector.shape_cast %0 : vector<1x16x16x32xf32> to vector<16x16x32xf32>
    %2 = vector.shape_cast %1 : vector<16x16x32xf32> to vector<256x32xf32>
    %c0_3 = arith.constant 0 : index
    %c0_4 = arith.constant 0 : index
    %3 = vector.load %arg3[%c0_3, %c0_4] : memref<32x8xf32, #tpu.memory_space<vmem>>, vector<32x8xf32>
    %cst = arith.constant dense<0.000000e+00> : vector<256x8xf32>
    %4 = tpu.matmul %2, %3, %cst {dimension_numbers = #tpu.dot_dimension_numbers<[1], [0], [0], [1], [0, 0, 1, 1], [], []>} : vector<256x32xf32>, vector<32x8xf32>, vector<256x8xf32> -> vector<256x8xf32>
    %cst_5 = arith.constant dense<0.000000e+00> : vector<8xf32>
    %5 = vector.multi_reduction <add>, %4, %cst_5 [0] : vector<256x8xf32> to vector<8xf32>
    %6 = vector.shape_cast %5 : vector<8xf32> to vector<1x1x8xf32>
    %c0_6 = arith.constant 0 : index
    %c0_7 = arith.constant 0 : index
    %c0_8 = arith.constant 0 : index
    %7 = vector.load %arg5[%c0_6, %c0_7, %c0_8] : memref<1x2x8xf32, #tpu.memory_space<vmem>>, vector<1x1x8xf32>
    tpu.vector_store %arg5[%c0_6, %c0_7, %c0_8], %6 {strides = array<i32>} : memref<1x2x8xf32, #tpu.memory_space<vmem>>, vector<1x1x8xf32>,
    %8 = arith.mulf %4, %4 : vector<256x8xf32>
    %cst_9 = arith.constant dense<0.000000e+00> : vector<8xf32>
    %9 = vector.multi_reduction <add>, %8, %cst_9 [0] : vector<256x8xf32> to vector<8xf32>
    %10 = vector.shape_cast %9 : vector<8xf32> to vector<1x1x8xf32>
    %c0_10 = arith.constant 0 : index
    %c1 = arith.constant 1 : index
    %c0_11 = arith.constant 0 : index
    %11 = vector.load %arg5[%c0_10, %c1, %c0_11] : memref<1x2x8xf32, #tpu.memory_space<vmem>>, vector<1x1x8xf32>
    tpu.vector_store %arg5[%c0_10, %c1, %c0_11], %10 {strides = array<i32>} : memref<1x2x8xf32, #tpu.memory_space<vmem>>, vector<1x1x8xf32>,
    %12 = vector.shape_cast %4 : vector<256x8xf32> to vector<16x16x8xf32>
    %c0_12 = arith.constant 0 : index
    %c0_13 = arith.constant 0 : index
    %c0_14 = arith.constant 0 : index
    %c0_15 = arith.constant 0 : index
    %13 = vector.load %arg4[%c0_12, %c0_13, %c0_14, %c0_15] : memref<1x16x16x8xf32, #tpu.memory_space<vmem>>, vector<1x16x16x8xf32>
    %14 = vector.shape_cast %13 : vector<1x16x16x8xf32> to vector<16x16x8xf32>
    %15 = vector.shape_cast %12 : vector<16x16x8xf32> to vector<1x16x16x8xf32>
    tpu.vector_store %arg4[%c0_12, %c0_13, %c0_14, %c0_15], %15 {strides = array<i32>} : memref<1x16x16x8xf32, #tpu.memory_space<vmem>>, vector<1x16x16x8xf32>,
    return
  }
  func.func @transform_0(%arg0: i32, %arg1: i32) -> (i32, i32, i32, i32) {
    %c0_i32 = arith.constant 0 : i32
    %c0_i32_0 = arith.constant 0 : i32
    %c0_i32_1 = arith.constant 0 : i32
    return %arg0, %arg1, %c0_i32, %c0_i32_0 : i32, i32, i32, i32
  }
  func.func @transform_1(%arg0: i32, %arg1: i32) -> (i32, i32) {
    %c0_i32 = arith.constant 0 : i32
    %c0_i32_0 = arith.constant 0 : i32
    %c0_i32_1 = arith.constant 0 : i32
    return %c0_i32, %c0_i32_0 : i32, i32
  }
  func.func @transform_2(%arg0: i32, %arg1: i32) -> (i32, i32, i32, i32) {
    %c0_i32 = arith.constant 0 : i32
    %c0_i32_0 = arith.constant 0 : i32
    %c0_i32_1 = arith.constant 0 : i32
    return %arg0, %arg1, %c0_i32, %c0_i32_0 : i32, i32, i32, i32
  }
  func.func @transform_3(%arg0: i32, %arg1: i32) -> (i32, i32, i32) {
    %c1_i32 = arith.constant 1 : i32
    %0 = arith.muli %arg0, %c1_i32 : i32
    %1 = arith.addi %0, %arg1 : i32
    %c0_i32 = arith.constant 0 : i32
    %c0_i32_0 = arith.constant 0 : i32
    %c0_i32_1 = arith.constant 0 : i32
    return %1, %c0_i32, %c0_i32_0 : i32, i32, i32
  }
}

module attributes {stable_mosaic.version = 11 : i64} {
  func.func @_bn_relu_conv1x1_kernel(%arg0: i32, %arg1: i32, %arg2: memref<1x16x16x8xf32, #tpu.memory_space<vmem>>, %arg3: memref<1x8xf32, #tpu.memory_space<vmem>>, %arg4: memref<1x8xf32, #tpu.memory_space<vmem>>, %arg5: memref<8x32xf32, #tpu.memory_space<vmem>>, %arg6: memref<1x16x16x32xf32, #tpu.memory_space<vmem>>, %arg7: memref<1x2x32xf32, #tpu.memory_space<vmem>>) attributes {dimension_semantics = [#tpu.dimension_semantics<parallel>, #tpu.dimension_semantics<parallel>], iteration_bounds = array<i64: 2, 1>, scalar_prefetch = 0 : i64, scratch_operands = 0 : i64, tpu.core_type = #tpu.core_type<tc>, window_params = [{transform_indices = @transform_0, window_bounds = array<i64: 1, 16, 16, 8>}, {pipeline_mode = #tpu.pipeline_mode<synchronous>, transform_indices = @transform_1, window_bounds = array<i64: 1, 8>}, {pipeline_mode = #tpu.pipeline_mode<synchronous>, transform_indices = @transform_2, window_bounds = array<i64: 1, 8>}, {pipeline_mode = #tpu.pipeline_mode<synchronous>, transform_indices = @transform_3, window_bounds = array<i64: 8, 32>}, {transform_indices = @transform_4, window_bounds = array<i64: 1, 16, 16, 32>}, {transform_indices = @transform_5, window_bounds = array<i64: 1, 2, 32>}]} {
    %c0 = arith.constant 0 : index
    %c0_0 = arith.constant 0 : index
    %c0_1 = arith.constant 0 : index
    %c0_2 = arith.constant 0 : index
    %0 = vector.load %arg2[%c0, %c0_0, %c0_1, %c0_2] : memref<1x16x16x8xf32, #tpu.memory_space<vmem>>, vector<1x16x16x8xf32>
    %1 = vector.shape_cast %0 : vector<1x16x16x8xf32> to vector<16x16x8xf32>
    %c0_3 = arith.constant 0 : index
    %c0_4 = arith.constant 0 : index
    %2 = vector.load %arg3[%c0_3, %c0_4] : memref<1x8xf32, #tpu.memory_space<vmem>>, vector<1x8xf32>
    %3 = vector.shape_cast %2 : vector<1x8xf32> to vector<1x1x8xf32>
    %4 = vector.broadcast %3 : vector<1x1x8xf32> to vector<16x16x8xf32>
    %5 = arith.mulf %1, %4 : vector<16x16x8xf32>
    %c0_5 = arith.constant 0 : index
    %c0_6 = arith.constant 0 : index
    %6 = vector.load %arg4[%c0_5, %c0_6] : memref<1x8xf32, #tpu.memory_space<vmem>>, vector<1x8xf32>
    %7 = vector.shape_cast %6 : vector<1x8xf32> to vector<1x1x8xf32>
    %8 = vector.broadcast %7 : vector<1x1x8xf32> to vector<16x16x8xf32>
    %9 = arith.addf %5, %8 : vector<16x16x8xf32>
    %cst = arith.constant 0.000000e+00 : f32
    %10 = vector.broadcast %cst : f32 to vector<16x16x8xf32>
    %11 = arith.maximumf %9, %10 : vector<16x16x8xf32>
    %12 = vector.shape_cast %11 : vector<16x16x8xf32> to vector<256x8xf32>
    %c0_7 = arith.constant 0 : index
    %c0_8 = arith.constant 0 : index
    %13 = vector.load %arg5[%c0_7, %c0_8] : memref<8x32xf32, #tpu.memory_space<vmem>>, vector<8x32xf32>
    %cst_9 = arith.constant dense<0.000000e+00> : vector<256x32xf32>
    %14 = tpu.matmul %12, %13, %cst_9 {dimension_numbers = #tpu.dot_dimension_numbers<[1], [0], [0], [1], [0, 0, 1, 1], [], []>} : vector<256x8xf32>, vector<8x32xf32>, vector<256x32xf32> -> vector<256x32xf32>
    %cst_10 = arith.constant dense<0.000000e+00> : vector<32xf32>
    %15 = vector.multi_reduction <add>, %14, %cst_10 [0] : vector<256x32xf32> to vector<32xf32>
    %16 = vector.shape_cast %15 : vector<32xf32> to vector<1x1x32xf32>
    %c0_11 = arith.constant 0 : index
    %c0_12 = arith.constant 0 : index
    %c0_13 = arith.constant 0 : index
    %17 = vector.load %arg7[%c0_11, %c0_12, %c0_13] : memref<1x2x32xf32, #tpu.memory_space<vmem>>, vector<1x1x32xf32>
    tpu.vector_store %arg7[%c0_11, %c0_12, %c0_13], %16 {strides = array<i32>} : memref<1x2x32xf32, #tpu.memory_space<vmem>>, vector<1x1x32xf32>,
    %18 = arith.mulf %14, %14 : vector<256x32xf32>
    %cst_14 = arith.constant dense<0.000000e+00> : vector<32xf32>
    %19 = vector.multi_reduction <add>, %18, %cst_14 [0] : vector<256x32xf32> to vector<32xf32>
    %20 = vector.shape_cast %19 : vector<32xf32> to vector<1x1x32xf32>
    %c0_15 = arith.constant 0 : index
    %c1 = arith.constant 1 : index
    %c0_16 = arith.constant 0 : index
    %21 = vector.load %arg7[%c0_15, %c1, %c0_16] : memref<1x2x32xf32, #tpu.memory_space<vmem>>, vector<1x1x32xf32>
    tpu.vector_store %arg7[%c0_15, %c1, %c0_16], %20 {strides = array<i32>} : memref<1x2x32xf32, #tpu.memory_space<vmem>>, vector<1x1x32xf32>,
    %22 = vector.shape_cast %14 : vector<256x32xf32> to vector<16x16x32xf32>
    %c0_17 = arith.constant 0 : index
    %c0_18 = arith.constant 0 : index
    %c0_19 = arith.constant 0 : index
    %c0_20 = arith.constant 0 : index
    %23 = vector.load %arg6[%c0_17, %c0_18, %c0_19, %c0_20] : memref<1x16x16x32xf32, #tpu.memory_space<vmem>>, vector<1x16x16x32xf32>
    %24 = vector.shape_cast %23 : vector<1x16x16x32xf32> to vector<16x16x32xf32>
    %25 = vector.shape_cast %22 : vector<16x16x32xf32> to vector<1x16x16x32xf32>
    tpu.vector_store %arg6[%c0_17, %c0_18, %c0_19, %c0_20], %25 {strides = array<i32>} : memref<1x16x16x32xf32, #tpu.memory_space<vmem>>, vector<1x16x16x32xf32>,
    return
  }
  func.func @transform_0(%arg0: i32, %arg1: i32) -> (i32, i32, i32, i32) {
    %c0_i32 = arith.constant 0 : i32
    %c0_i32_0 = arith.constant 0 : i32
    %c0_i32_1 = arith.constant 0 : i32
    return %arg0, %arg1, %c0_i32, %c0_i32_0 : i32, i32, i32, i32
  }
  func.func @transform_1(%arg0: i32, %arg1: i32) -> (i32, i32) {
    %c0_i32 = arith.constant 0 : i32
    %c0_i32_0 = arith.constant 0 : i32
    %c0_i32_1 = arith.constant 0 : i32
    return %c0_i32, %c0_i32_0 : i32, i32
  }
  func.func @transform_2(%arg0: i32, %arg1: i32) -> (i32, i32) {
    %c0_i32 = arith.constant 0 : i32
    %c0_i32_0 = arith.constant 0 : i32
    %c0_i32_1 = arith.constant 0 : i32
    return %c0_i32, %c0_i32_0 : i32, i32
  }
  func.func @transform_3(%arg0: i32, %arg1: i32) -> (i32, i32) {
    %c0_i32 = arith.constant 0 : i32
    %c0_i32_0 = arith.constant 0 : i32
    %c0_i32_1 = arith.constant 0 : i32
    return %c0_i32, %c0_i32_0 : i32, i32
  }
  func.func @transform_4(%arg0: i32, %arg1: i32) -> (i32, i32, i32, i32) {
    %c0_i32 = arith.constant 0 : i32
    %c0_i32_0 = arith.constant 0 : i32
    %c0_i32_1 = arith.constant 0 : i32
    return %arg0, %arg1, %c0_i32, %c0_i32_0 : i32, i32, i32, i32
  }
  func.func @transform_5(%arg0: i32, %arg1: i32) -> (i32, i32, i32) {
    %c1_i32 = arith.constant 1 : i32
    %0 = arith.muli %arg0, %c1_i32 : i32
    %1 = arith.addi %0, %arg1 : i32
    %c0_i32 = arith.constant 0 : i32
    %c0_i32_0 = arith.constant 0 : i32
    %c0_i32_1 = arith.constant 0 : i32
    return %1, %c0_i32, %c0_i32_0 : i32, i32, i32
  }
}

module attributes {stable_mosaic.version = 11 : i64} {
  func.func @_bn_add_relu_kernel(%arg0: i32, %arg1: i32, %arg2: memref<1x16x16x32xf32, #tpu.memory_space<vmem>>, %arg3: memref<1x16x16x32xf32, #tpu.memory_space<vmem>>, %arg4: memref<1x32xf32, #tpu.memory_space<vmem>>, %arg5: memref<1x32xf32, #tpu.memory_space<vmem>>, %arg6: memref<1x16x16x32xf32, #tpu.memory_space<vmem>>) attributes {dimension_semantics = [#tpu.dimension_semantics<parallel>, #tpu.dimension_semantics<parallel>], iteration_bounds = array<i64: 2, 1>, scalar_prefetch = 0 : i64, scratch_operands = 0 : i64, tpu.core_type = #tpu.core_type<tc>, window_params = [{transform_indices = @transform_0, window_bounds = array<i64: 1, 16, 16, 32>}, {transform_indices = @transform_1, window_bounds = array<i64: 1, 16, 16, 32>}, {pipeline_mode = #tpu.pipeline_mode<synchronous>, transform_indices = @transform_2, window_bounds = array<i64: 1, 32>}, {pipeline_mode = #tpu.pipeline_mode<synchronous>, transform_indices = @transform_3, window_bounds = array<i64: 1, 32>}, {transform_indices = @transform_4, window_bounds = array<i64: 1, 16, 16, 32>}]} {
    %c0 = arith.constant 0 : index
    %c0_0 = arith.constant 0 : index
    %c0_1 = arith.constant 0 : index
    %c0_2 = arith.constant 0 : index
    %0 = vector.load %arg2[%c0, %c0_0, %c0_1, %c0_2] : memref<1x16x16x32xf32, #tpu.memory_space<vmem>>, vector<1x16x16x32xf32>
    %1 = vector.shape_cast %0 : vector<1x16x16x32xf32> to vector<16x16x32xf32>
    %c0_3 = arith.constant 0 : index
    %c0_4 = arith.constant 0 : index
    %2 = vector.load %arg4[%c0_3, %c0_4] : memref<1x32xf32, #tpu.memory_space<vmem>>, vector<1x32xf32>
    %3 = vector.shape_cast %2 : vector<1x32xf32> to vector<1x1x32xf32>
    %4 = vector.broadcast %3 : vector<1x1x32xf32> to vector<16x16x32xf32>
    %5 = arith.mulf %1, %4 : vector<16x16x32xf32>
    %c0_5 = arith.constant 0 : index
    %c0_6 = arith.constant 0 : index
    %6 = vector.load %arg5[%c0_5, %c0_6] : memref<1x32xf32, #tpu.memory_space<vmem>>, vector<1x32xf32>
    %7 = vector.shape_cast %6 : vector<1x32xf32> to vector<1x1x32xf32>
    %8 = vector.broadcast %7 : vector<1x1x32xf32> to vector<16x16x32xf32>
    %9 = arith.addf %5, %8 : vector<16x16x32xf32>
    %c0_7 = arith.constant 0 : index
    %c0_8 = arith.constant 0 : index
    %c0_9 = arith.constant 0 : index
    %c0_10 = arith.constant 0 : index
    %10 = vector.load %arg3[%c0_7, %c0_8, %c0_9, %c0_10] : memref<1x16x16x32xf32, #tpu.memory_space<vmem>>, vector<1x16x16x32xf32>
    %11 = vector.shape_cast %10 : vector<1x16x16x32xf32> to vector<16x16x32xf32>
    %12 = arith.addf %9, %11 : vector<16x16x32xf32>
    %cst = arith.constant 0.000000e+00 : f32
    %13 = vector.broadcast %cst : f32 to vector<16x16x32xf32>
    %14 = arith.maximumf %12, %13 : vector<16x16x32xf32>
    %c0_11 = arith.constant 0 : index
    %c0_12 = arith.constant 0 : index
    %c0_13 = arith.constant 0 : index
    %c0_14 = arith.constant 0 : index
    %15 = vector.load %arg6[%c0_11, %c0_12, %c0_13, %c0_14] : memref<1x16x16x32xf32, #tpu.memory_space<vmem>>, vector<1x16x16x32xf32>
    %16 = vector.shape_cast %15 : vector<1x16x16x32xf32> to vector<16x16x32xf32>
    %17 = vector.shape_cast %14 : vector<16x16x32xf32> to vector<1x16x16x32xf32>
    tpu.vector_store %arg6[%c0_11, %c0_12, %c0_13, %c0_14], %17 {strides = array<i32>} : memref<1x16x16x32xf32, #tpu.memory_space<vmem>>, vector<1x16x16x32xf32>,
    return
  }
  func.func @transform_0(%arg0: i32, %arg1: i32) -> (i32, i32, i32, i32) {
    %c0_i32 = arith.constant 0 : i32
    %c0_i32_0 = arith.constant 0 : i32
    %c0_i32_1 = arith.constant 0 : i32
    return %arg0, %arg1, %c0_i32, %c0_i32_0 : i32, i32, i32, i32
  }
  func.func @transform_1(%arg0: i32, %arg1: i32) -> (i32, i32, i32, i32) {
    %c0_i32 = arith.constant 0 : i32
    %c0_i32_0 = arith.constant 0 : i32
    %c0_i32_1 = arith.constant 0 : i32
    return %arg0, %arg1, %c0_i32, %c0_i32_0 : i32, i32, i32, i32
  }
  func.func @transform_2(%arg0: i32, %arg1: i32) -> (i32, i32) {
    %c0_i32 = arith.constant 0 : i32
    %c0_i32_0 = arith.constant 0 : i32
    %c0_i32_1 = arith.constant 0 : i32
    return %c0_i32, %c0_i32_0 : i32, i32
  }
  func.func @transform_3(%arg0: i32, %arg1: i32) -> (i32, i32) {
    %c0_i32 = arith.constant 0 : i32
    %c0_i32_0 = arith.constant 0 : i32
    %c0_i32_1 = arith.constant 0 : i32
    return %c0_i32, %c0_i32_0 : i32, i32
  }
  func.func @transform_4(%arg0: i32, %arg1: i32) -> (i32, i32, i32, i32) {
    %c0_i32 = arith.constant 0 : i32
    %c0_i32_0 = arith.constant 0 : i32
    %c0_i32_1 = arith.constant 0 : i32
    return %arg0, %arg1, %c0_i32, %c0_i32_0 : i32, i32, i32, i32
  }
}

module attributes {stable_mosaic.version = 11 : i64} {
  func.func @_bn_relu_conv3x3_kernel(%arg0: i32, %arg1: memref<1x16x16x8xf32, #tpu.memory_space<vmem>>, %arg2: memref<1x8xf32, #tpu.memory_space<vmem>>, %arg3: memref<1x8xf32, #tpu.memory_space<vmem>>, %arg4: memref<72x8xf32, #tpu.memory_space<vmem>>, %arg5: memref<1x16x16x8xf32, #tpu.memory_space<vmem>>, %arg6: memref<1x2x8xf32, #tpu.memory_space<vmem>>, %arg7: memref<18x18x8xf32, #tpu.memory_space<vmem>>, %arg8: memref<256x72xf32, #tpu.memory_space<vmem>>) attributes {dimension_semantics = [#tpu.dimension_semantics<parallel>], iteration_bounds = array<i64: 2>, scalar_prefetch = 0 : i64, scratch_operands = 2 : i64, tpu.core_type = #tpu.core_type<tc>, window_params = [{transform_indices = @transform_0, window_bounds = array<i64: 1, 16, 16, 8>}, {pipeline_mode = #tpu.pipeline_mode<synchronous>, transform_indices = @transform_1, window_bounds = array<i64: 1, 8>}, {pipeline_mode = #tpu.pipeline_mode<synchronous>, transform_indices = @transform_2, window_bounds = array<i64: 1, 8>}, {pipeline_mode = #tpu.pipeline_mode<synchronous>, transform_indices = @transform_3, window_bounds = array<i64: 72, 8>}, {transform_indices = @transform_4, window_bounds = array<i64: 1, 16, 16, 8>}, {transform_indices = @transform_5, window_bounds = array<i64: 1, 2, 8>}]} {
    %c0 = arith.constant 0 : index
    %c0_0 = arith.constant 0 : index
    %c0_1 = arith.constant 0 : index
    %c0_2 = arith.constant 0 : index
    %0 = vector.load %arg1[%c0, %c0_0, %c0_1, %c0_2] : memref<1x16x16x8xf32, #tpu.memory_space<vmem>>, vector<1x16x16x8xf32>
    %1 = vector.shape_cast %0 : vector<1x16x16x8xf32> to vector<16x16x8xf32>
    %c0_3 = arith.constant 0 : index
    %c0_4 = arith.constant 0 : index
    %2 = vector.load %arg2[%c0_3, %c0_4] : memref<1x8xf32, #tpu.memory_space<vmem>>, vector<1x8xf32>
    %3 = vector.shape_cast %2 : vector<1x8xf32> to vector<1x1x8xf32>
    %4 = vector.broadcast %3 : vector<1x1x8xf32> to vector<16x16x8xf32>
    %5 = arith.mulf %1, %4 : vector<16x16x8xf32>
    %c0_5 = arith.constant 0 : index
    %c0_6 = arith.constant 0 : index
    %6 = vector.load %arg3[%c0_5, %c0_6] : memref<1x8xf32, #tpu.memory_space<vmem>>, vector<1x8xf32>
    %7 = vector.shape_cast %6 : vector<1x8xf32> to vector<1x1x8xf32>
    %8 = vector.broadcast %7 : vector<1x1x8xf32> to vector<16x16x8xf32>
    %9 = arith.addf %5, %8 : vector<16x16x8xf32>
    %cst = arith.constant 0.000000e+00 : f32
    %10 = vector.broadcast %cst : f32 to vector<16x16x8xf32>
    %11 = arith.maximumf %9, %10 : vector<16x16x8xf32>
    %cst_7 = arith.constant 0.000000e+00 : f32
    %12 = vector.broadcast %cst_7 : f32 to vector<1x18x8xf32>
    %cst_8 = arith.constant 0.000000e+00 : f32
    %13 = vector.broadcast %cst_8 : f32 to vector<16x1x8xf32>
    %c0_9 = arith.constant 0 : index
    %c0_10 = arith.constant 0 : index
    %c0_11 = arith.constant 0 : index
    %14 = vector.load %arg7[%c0_9, %c0_10, %c0_11] : memref<18x18x8xf32, #tpu.memory_space<vmem>>, vector<1x18x8xf32>
    tpu.vector_store %arg7[%c0_9, %c0_10, %c0_11], %12 {strides = array<i32>} : memref<18x18x8xf32, #tpu.memory_space<vmem>>, vector<1x18x8xf32>,
    %c17 = arith.constant 17 : index
    %c0_12 = arith.constant 0 : index
    %c0_13 = arith.constant 0 : index
    %15 = vector.load %arg7[%c17, %c0_12, %c0_13] : memref<18x18x8xf32, #tpu.memory_space<vmem>>, vector<1x18x8xf32>
    tpu.vector_store %arg7[%c17, %c0_12, %c0_13], %12 {strides = array<i32>} : memref<18x18x8xf32, #tpu.memory_space<vmem>>, vector<1x18x8xf32>,
    %16 = tpu.concatenate %13, %11, %13 in 1 : vector<16x1x8xf32>, vector<16x16x8xf32>, vector<16x1x8xf32> -> vector<16x18x8xf32>
    %c1 = arith.constant 1 : index
    %c0_14 = arith.constant 0 : index
    %c0_15 = arith.constant 0 : index
    %17 = vector.load %arg7[%c1, %c0_14, %c0_15] : memref<18x18x8xf32, #tpu.memory_space<vmem>>, vector<16x18x8xf32>
    tpu.vector_store %arg7[%c1, %c0_14, %c0_15], %16 {strides = array<i32>} : memref<18x18x8xf32, #tpu.memory_space<vmem>>, vector<16x18x8xf32>,
    %c0_16 = arith.constant 0 : index
    %c0_17 = arith.constant 0 : index
    %c0_18 = arith.constant 0 : index
    %18 = vector.load %arg7[%c0_16, %c0_17, %c0_18] : memref<18x18x8xf32, #tpu.memory_space<vmem>>, vector<16x16x8xf32>
    %19 = vector.shape_cast %18 : vector<16x16x8xf32> to vector<256x8xf32>
    %c0_19 = arith.constant 0 : index
    %c0_20 = arith.constant 0 : index
    %20 = vector.load %arg8[%c0_19, %c0_20] : memref<256x72xf32, #tpu.memory_space<vmem>>, vector<256x8xf32>
    tpu.vector_store %arg8[%c0_19, %c0_20], %19 {strides = array<i32>} : memref<256x72xf32, #tpu.memory_space<vmem>>, vector<256x8xf32>,
    %c0_21 = arith.constant 0 : index
    %c1_22 = arith.constant 1 : index
    %c0_23 = arith.constant 0 : index
    %21 = vector.load %arg7[%c0_21, %c1_22, %c0_23] : memref<18x18x8xf32, #tpu.memory_space<vmem>>, vector<16x16x8xf32>
    %22 = vector.shape_cast %21 : vector<16x16x8xf32> to vector<256x8xf32>
    %c0_24 = arith.constant 0 : index
    %c8 = arith.constant 8 : index
    %23 = vector.load %arg8[%c0_24, %c8] : memref<256x72xf32, #tpu.memory_space<vmem>>, vector<256x8xf32>
    tpu.vector_store %arg8[%c0_24, %c8], %22 {strides = array<i32>} : memref<256x72xf32, #tpu.memory_space<vmem>>, vector<256x8xf32>,
    %c0_25 = arith.constant 0 : index
    %c2 = arith.constant 2 : index
    %c0_26 = arith.constant 0 : index
    %24 = vector.load %arg7[%c0_25, %c2, %c0_26] : memref<18x18x8xf32, #tpu.memory_space<vmem>>, vector<16x16x8xf32>
    %25 = vector.shape_cast %24 : vector<16x16x8xf32> to vector<256x8xf32>
    %c0_27 = arith.constant 0 : index
    %c16 = arith.constant 16 : index
    %26 = vector.load %arg8[%c0_27, %c16] : memref<256x72xf32, #tpu.memory_space<vmem>>, vector<256x8xf32>
    tpu.vector_store %arg8[%c0_27, %c16], %25 {strides = array<i32>} : memref<256x72xf32, #tpu.memory_space<vmem>>, vector<256x8xf32>,
    %c1_28 = arith.constant 1 : index
    %c0_29 = arith.constant 0 : index
    %c0_30 = arith.constant 0 : index
    %27 = vector.load %arg7[%c1_28, %c0_29, %c0_30] : memref<18x18x8xf32, #tpu.memory_space<vmem>>, vector<16x16x8xf32>
    %28 = vector.shape_cast %27 : vector<16x16x8xf32> to vector<256x8xf32>
    %c0_31 = arith.constant 0 : index
    %c24 = arith.constant 24 : index
    %29 = vector.load %arg8[%c0_31, %c24] : memref<256x72xf32, #tpu.memory_space<vmem>>, vector<256x8xf32>
    tpu.vector_store %arg8[%c0_31, %c24], %28 {strides = array<i32>} : memref<256x72xf32, #tpu.memory_space<vmem>>, vector<256x8xf32>,
    %c1_32 = arith.constant 1 : index
    %c1_33 = arith.constant 1 : index
    %c0_34 = arith.constant 0 : index
    %30 = vector.load %arg7[%c1_32, %c1_33, %c0_34] : memref<18x18x8xf32, #tpu.memory_space<vmem>>, vector<16x16x8xf32>
    %31 = vector.shape_cast %30 : vector<16x16x8xf32> to vector<256x8xf32>
    %c0_35 = arith.constant 0 : index
    %c32 = arith.constant 32 : index
    %32 = vector.load %arg8[%c0_35, %c32] : memref<256x72xf32, #tpu.memory_space<vmem>>, vector<256x8xf32>
    tpu.vector_store %arg8[%c0_35, %c32], %31 {strides = array<i32>} : memref<256x72xf32, #tpu.memory_space<vmem>>, vector<256x8xf32>,
    %c1_36 = arith.constant 1 : index
    %c2_37 = arith.constant 2 : index
    %c0_38 = arith.constant 0 : index
    %33 = vector.load %arg7[%c1_36, %c2_37, %c0_38] : memref<18x18x8xf32, #tpu.memory_space<vmem>>, vector<16x16x8xf32>
    %34 = vector.shape_cast %33 : vector<16x16x8xf32> to vector<256x8xf32>
    %c0_39 = arith.constant 0 : index
    %c40 = arith.constant 40 : index
    %35 = vector.load %arg8[%c0_39, %c40] : memref<256x72xf32, #tpu.memory_space<vmem>>, vector<256x8xf32>
    tpu.vector_store %arg8[%c0_39, %c40], %34 {strides = array<i32>} : memref<256x72xf32, #tpu.memory_space<vmem>>, vector<256x8xf32>,
    %c2_40 = arith.constant 2 : index
    %c0_41 = arith.constant 0 : index
    %c0_42 = arith.constant 0 : index
    %36 = vector.load %arg7[%c2_40, %c0_41, %c0_42] : memref<18x18x8xf32, #tpu.memory_space<vmem>>, vector<16x16x8xf32>
    %37 = vector.shape_cast %36 : vector<16x16x8xf32> to vector<256x8xf32>
    %c0_43 = arith.constant 0 : index
    %c48 = arith.constant 48 : index
    %38 = vector.load %arg8[%c0_43, %c48] : memref<256x72xf32, #tpu.memory_space<vmem>>, vector<256x8xf32>
    tpu.vector_store %arg8[%c0_43, %c48], %37 {strides = array<i32>} : memref<256x72xf32, #tpu.memory_space<vmem>>, vector<256x8xf32>,
    %c2_44 = arith.constant 2 : index
    %c1_45 = arith.constant 1 : index
    %c0_46 = arith.constant 0 : index
    %39 = vector.load %arg7[%c2_44, %c1_45, %c0_46] : memref<18x18x8xf32, #tpu.memory_space<vmem>>, vector<16x16x8xf32>
    %40 = vector.shape_cast %39 : vector<16x16x8xf32> to vector<256x8xf32>
    %c0_47 = arith.constant 0 : index
    %c56 = arith.constant 56 : index
    %41 = vector.load %arg8[%c0_47, %c56] : memref<256x72xf32, #tpu.memory_space<vmem>>, vector<256x8xf32>
    tpu.vector_store %arg8[%c0_47, %c56], %40 {strides = array<i32>} : memref<256x72xf32, #tpu.memory_space<vmem>>, vector<256x8xf32>,
    %c2_48 = arith.constant 2 : index
    %c2_49 = arith.constant 2 : index
    %c0_50 = arith.constant 0 : index
    %42 = vector.load %arg7[%c2_48, %c2_49, %c0_50] : memref<18x18x8xf32, #tpu.memory_space<vmem>>, vector<16x16x8xf32>
    %43 = vector.shape_cast %42 : vector<16x16x8xf32> to vector<256x8xf32>
    %c0_51 = arith.constant 0 : index
    %c64 = arith.constant 64 : index
    %44 = vector.load %arg8[%c0_51, %c64] : memref<256x72xf32, #tpu.memory_space<vmem>>, vector<256x8xf32>
    tpu.vector_store %arg8[%c0_51, %c64], %43 {strides = array<i32>} : memref<256x72xf32, #tpu.memory_space<vmem>>, vector<256x8xf32>,
    %c0_52 = arith.constant 0 : index
    %c0_53 = arith.constant 0 : index
    %45 = vector.load %arg8[%c0_52, %c0_53] : memref<256x72xf32, #tpu.memory_space<vmem>>, vector<256x72xf32>
    %c0_54 = arith.constant 0 : index
    %c0_55 = arith.constant 0 : index
    %46 = vector.load %arg4[%c0_54, %c0_55] : memref<72x8xf32, #tpu.memory_space<vmem>>, vector<72x8xf32>
    %cst_56 = arith.constant dense<0.000000e+00> : vector<256x8xf32>
    %47 = tpu.matmul %45, %46, %cst_56 {dimension_numbers = #tpu.dot_dimension_numbers<[1], [0], [0], [1], [0, 0, 1, 1], [], []>} : vector<256x72xf32>, vector<72x8xf32>, vector<256x8xf32> -> vector<256x8xf32>
    %cst_57 = arith.constant dense<0.000000e+00> : vector<8xf32>
    %48 = vector.multi_reduction <add>, %47, %cst_57 [0] : vector<256x8xf32> to vector<8xf32>
    %49 = vector.shape_cast %48 : vector<8xf32> to vector<1x1x8xf32>
    %c0_58 = arith.constant 0 : index
    %c0_59 = arith.constant 0 : index
    %c0_60 = arith.constant 0 : index
    %50 = vector.load %arg6[%c0_58, %c0_59, %c0_60] : memref<1x2x8xf32, #tpu.memory_space<vmem>>, vector<1x1x8xf32>
    tpu.vector_store %arg6[%c0_58, %c0_59, %c0_60], %49 {strides = array<i32>} : memref<1x2x8xf32, #tpu.memory_space<vmem>>, vector<1x1x8xf32>,
    %51 = arith.mulf %47, %47 : vector<256x8xf32>
    %cst_61 = arith.constant dense<0.000000e+00> : vector<8xf32>
    %52 = vector.multi_reduction <add>, %51, %cst_61 [0] : vector<256x8xf32> to vector<8xf32>
    %53 = vector.shape_cast %52 : vector<8xf32> to vector<1x1x8xf32>
    %c0_62 = arith.constant 0 : index
    %c1_63 = arith.constant 1 : index
    %c0_64 = arith.constant 0 : index
    %54 = vector.load %arg6[%c0_62, %c1_63, %c0_64] : memref<1x2x8xf32, #tpu.memory_space<vmem>>, vector<1x1x8xf32>
    tpu.vector_store %arg6[%c0_62, %c1_63, %c0_64], %53 {strides = array<i32>} : memref<1x2x8xf32, #tpu.memory_space<vmem>>, vector<1x1x8xf32>,
    %55 = vector.shape_cast %47 : vector<256x8xf32> to vector<16x16x8xf32>
    %c0_65 = arith.constant 0 : index
    %c0_66 = arith.constant 0 : index
    %c0_67 = arith.constant 0 : index
    %c0_68 = arith.constant 0 : index
    %56 = vector.load %arg5[%c0_65, %c0_66, %c0_67, %c0_68] : memref<1x16x16x8xf32, #tpu.memory_space<vmem>>, vector<1x16x16x8xf32>
    %57 = vector.shape_cast %56 : vector<1x16x16x8xf32> to vector<16x16x8xf32>
    %58 = vector.shape_cast %55 : vector<16x16x8xf32> to vector<1x16x16x8xf32>
    tpu.vector_store %arg5[%c0_65, %c0_66, %c0_67, %c0_68], %58 {strides = array<i32>} : memref<1x16x16x8xf32, #tpu.memory_space<vmem>>, vector<1x16x16x8xf32>,
    return
  }
  func.func @transform_0(%arg0: i32) -> (i32, i32, i32, i32) {
    %c0_i32 = arith.constant 0 : i32
    %c0_i32_0 = arith.constant 0 : i32
    %c0_i32_1 = arith.constant 0 : i32
    %c0_i32_2 = arith.constant 0 : i32
    return %arg0, %c0_i32, %c0_i32_0, %c0_i32_1 : i32, i32, i32, i32
  }
  func.func @transform_1(%arg0: i32) -> (i32, i32) {
    %c0_i32 = arith.constant 0 : i32
    %c0_i32_0 = arith.constant 0 : i32
    %c0_i32_1 = arith.constant 0 : i32
    return %c0_i32, %c0_i32_0 : i32, i32
  }
  func.func @transform_2(%arg0: i32) -> (i32, i32) {
    %c0_i32 = arith.constant 0 : i32
    %c0_i32_0 = arith.constant 0 : i32
    %c0_i32_1 = arith.constant 0 : i32
    return %c0_i32, %c0_i32_0 : i32, i32
  }
  func.func @transform_3(%arg0: i32) -> (i32, i32) {
    %c0_i32 = arith.constant 0 : i32
    %c0_i32_0 = arith.constant 0 : i32
    %c0_i32_1 = arith.constant 0 : i32
    return %c0_i32, %c0_i32_0 : i32, i32
  }
  func.func @transform_4(%arg0: i32) -> (i32, i32, i32, i32) {
    %c0_i32 = arith.constant 0 : i32
    %c0_i32_0 = arith.constant 0 : i32
    %c0_i32_1 = arith.constant 0 : i32
    %c0_i32_2 = arith.constant 0 : i32
    return %arg0, %c0_i32, %c0_i32_0, %c0_i32_1 : i32, i32, i32, i32
  }
  func.func @transform_5(%arg0: i32) -> (i32, i32, i32) {
    %c0_i32 = arith.constant 0 : i32
    %c0_i32_0 = arith.constant 0 : i32
    %c0_i32_1 = arith.constant 0 : i32
    return %arg0, %c0_i32, %c0_i32_0 : i32, i32, i32
  }
}

</mosaic_0001>

<llo_original>
// kernel: _bottleneck_impl.7
$region0: #{_bottleneck_impl.7}
  #allocation0 [shape = 'u32[]', space=smem, size = 0x4, offset = 0x4, fixed_abs, tag = 'smem constant byte address 0x4 - core index']
  #allocation1 [shape = 'u32[144,128]{1,0:T(1,128)}', space=vmem, size = 0x12000, scoped, tag = 'internal scratch']
  %s0 = inlined_call_operand.vmem [shape: f32[2,16,16,32], index: 0, kind: input, shape index: {}]
  %s1 = inlined_call_operand.vmem [shape: f32[2,16,16,32], index: 1, kind: input, shape index: {}]
  %s2 = inlined_call_operand.vmem [shape: f32[1,32], index: 2, kind: input, shape index: {}]
  %s3 = inlined_call_operand.vmem [shape: f32[1,32], index: 3, kind: input, shape index: {}]
  %s4 = inlined_call_operand.hbm [shape: f32[2,16,16,32], index: 4, kind: output, shape index: {}]
  %s5 = sld [smem:[#allocation0]]
  $region49: #{_bottleneck_impl.7} parent=0
    _
  %s7 = ssub.s32 1, %s5
  %s8 = scalar_select 0, %s7, %s5
  $region1: #{_bottleneck_impl.7} parent=0
    #allocation2 [shape = 'u8[262144]{0}', space=vmem, size = 0x40000, scoped, tag = 'output window, operand 0']
    #allocation3 [shape = 's32[2]{0}', space=sflag, size = 0x8, scoped, tag = 'scoped memory for _bottleneck_impl.7']
    %9 = vsyncpa [#allocation3], 0
    %s10 = scalar_lea.sflag [#allocation3], 1
    %11 = vsyncpa %s10, 0
    loop: start=0, step=1, limit=4
    $region2: #{_bottleneck_impl.7} parent=1 // loop_pre_header
      _
    $region3: #{_bottleneck_impl.7} parent=1 // loop_header
      %s13 = sphi 0, %s17
      %p14 = scmp.ge.s32.totalorder %s13, 4
      %s20 = sphi 0, %s32
      %s21 = sphi 0, %s28
      %s22 = sphi 0, %s20
      %s23 = sphi 0, %s21
      %s24 = sphi 0, %s22
      %s25 = sphi 0, %s23
      %s37 = sphi 0, %s39
      %s40 = sphi 0, %s37
      %s41 = sphi 0, %s40
      %s57 = sphi 0, %s41
      %s65 = sphi 0, %s67
      %s68 = sphi 0, %s65
      %s69 = sphi 0, %s68
      %s85 = sphi 0, %s69
      %s89 = sphi 0, %s89
      %s91 = sphi 0, %s89
      %s92 = sphi 0, %s91
      %s106 = sphi 0, %s92
      %s110 = sphi 0, %s110
      %s112 = sphi 0, %s110
      %s113 = sphi 0, %s112
      %s127 = sphi 0, %s113
      %s135 = sphi 0, %s137
      %s138 = sphi 0, %s135
      %s139 = sphi 0, %s138
      %s155 = sphi 0, %s139
    $region4: #{_bottleneck_impl.7} parent=1 // loop_header_branch
      %16 = sbr.rel (%p14) target = $region8
    $region5: #{_bottleneck_impl.7} parent=1 // loop_body
      %s18 = ssub.s32 %s13, 1
      %s19 = ssub.s32 %s13, 2
      %s26 = sadd.s32 1, %s21
      %p27 = scmp.ge.s32.totalorder %s26, 1
      %s28 = scalar_select %p27, 0, %s26
      %s29 = sadd.s32 1, %s20
      %s30 = scalar_select %p27, %s29, %s20
      %p31 = scmp.ge.s32.totalorder %s30, 2
      %s32 = scalar_select %p31, 0, %s30
      %s33 = ssub.s32 %s20, %s32
      %s34 = ssub.s32 %s21, %s28
      %s35 = sor.u32 %s33, %s34
      %p36 = scmp.eq.s32.totalorder %s35, 0
      %s38 = sadd.s32 %s37, 1
      %s39 = scalar_select %p36, %s37, %s38
      %p42 = pneg %p36
      %p43 = scmp.eq.s32.totalorder %s13, 1
      %p44 = por %p42, %p43
      %p45 = scmp.ne.s32.totalorder %s37, %s40
      %p46 = scmp.eq.s32.totalorder %s13, 0
      %p47 = por %p45, %p46
      %p48 = scmp.ne.s32.totalorder %s37, %s40
      %p49 = scmp.eq.s32.totalorder %s18, 1
      %p50 = por %p48, %p49
      %p51 = scmp.ne.s32.totalorder %s40, %s41
      %p52 = scmp.eq.s32.totalorder %s18, 0
      %p53 = por %p51, %p52
      %p54 = scmp.ne.s32.totalorder %s40, %s41
      %p55 = scmp.eq.s32.totalorder %s19, 1
      %p56 = por %p54, %p55
      %p58 = scmp.ne.s32.totalorder %s41, %s57
      %p59 = scmp.eq.s32.totalorder %s19, 0
      %p60 = por %p58, %p59
      %s61 = ssub.s32 %s20, %s32
      %s62 = ssub.s32 %s21, %s28
      %s63 = sor.u32 %s61, %s62
      %p64 = scmp.eq.s32.totalorder %s63, 0
      %s66 = sadd.s32 %s65, 1
      %s67 = scalar_select %p64, %s65, %s66
      %p70 = pneg %p64
      %p71 = scmp.eq.s32.totalorder %s13, 1
      %p72 = por %p70, %p71
      %p73 = scmp.ne.s32.totalorder %s65, %s68
      %p74 = scmp.eq.s32.totalorder %s13, 0
      %p75 = por %p73, %p74
      %p76 = scmp.ne.s32.totalorder %s65, %s68
      %p77 = scmp.eq.s32.totalorder %s18, 1
      %p78 = por %p76, %p77
      %p79 = scmp.ne.s32.totalorder %s68, %s69
      %p80 = scmp.eq.s32.totalorder %s18, 0
      %p81 = por %p79, %p80
      %p82 = scmp.ne.s32.totalorder %s68, %s69
      %p83 = scmp.eq.s32.totalorder %s19, 1
      %p84 = por %p82, %p83
      %p86 = scmp.ne.s32.totalorder %s69, %s85
      %p87 = scmp.eq.s32.totalorder %s19, 0
      %p88 = por %p86, %p87
      %s90 = sadd.s32 %s89, 1
      %p93 = scmp.eq.s32.totalorder %s13, 1
      %p94 = scmp.ne.s32.totalorder %s89, %s91
      %p95 = scmp.eq.s32.totalorder %s13, 0
      %p96 = por %p94, %p95
      %p97 = scmp.ne.s32.totalorder %s89, %s91
      %p98 = scmp.eq.s32.totalorder %s18, 1
      %p99 = por %p97, %p98
      %p100 = scmp.ne.s32.totalorder %s91, %s92
      %p101 = scmp.eq.s32.totalorder %s18, 0
      %p102 = por %p100, %p101
      %p103 = scmp.ne.s32.totalorder %s91, %s92
      %p104 = scmp.eq.s32.totalorder %s19, 1
      %p105 = por %p103, %p104
      %p107 = scmp.ne.s32.totalorder %s92, %s106
      %p108 = scmp.eq.s32.totalorder %s19, 0
      %p109 = por %p107, %p108
      %s111 = sadd.s32 %s110, 1
      %p114 = scmp.eq.s32.totalorder %s13, 1
      %p115 = scmp.ne.s32.totalorder %s110, %s112
      %p116 = scmp.eq.s32.totalorder %s13, 0
      %p117 = por %p115, %p116
      %p118 = scmp.ne.s32.totalorder %s110, %s112
      %p119 = scmp.eq.s32.totalorder %s18, 1
      %p120 = por %p118, %p119
      %p121 = scmp.ne.s32.totalorder %s112, %s113
      %p122 = scmp.eq.s32.totalorder %s18, 0
      %p123 = por %p121, %p122
      %p124 = scmp.ne.s32.totalorder %s112, %s113
      %p125 = scmp.eq.s32.totalorder %s19, 1
      %p126 = por %p124, %p125
      %p128 = scmp.ne.s32.totalorder %s113, %s127
      %p129 = scmp.eq.s32.totalorder %s19, 0
      %p130 = por %p128, %p129
      %s131 = ssub.s32 %s20, %s32
      %s132 = ssub.s32 %s21, %s28
      %s133 = sor.u32 %s131, %s132
      %p134 = scmp.eq.s32.totalorder %s133, 0
      %s136 = sadd.s32 %s135, 1
      %s137 = scalar_select %p134, %s135, %s136
      %p140 = pneg %p134
      %p141 = scmp.eq.s32.totalorder %s13, 1
      %p142 = por %p140, %p141
      %p143 = scmp.ne.s32.totalorder %s135, %s138
      %p144 = scmp.eq.s32.totalorder %s13, 0
      %p145 = por %p143, %p144
      %p146 = scmp.ne.s32.totalorder %s135, %s138
      %p147 = scmp.eq.s32.totalorder %s18, 1
      %p148 = por %p146, %p147
      %p149 = scmp.ne.s32.totalorder %s138, %s139
      %p150 = scmp.eq.s32.totalorder %s18, 0
      %p151 = por %p149, %p150
      %p152 = scmp.ne.s32.totalorder %s138, %s139
      %p153 = scmp.eq.s32.totalorder %s19, 1
      %p154 = por %p152, %p153
      %p156 = scmp.ne.s32.totalorder %s139, %s155
      %p157 = scmp.eq.s32.totalorder %s19, 0
      %p158 = por %p156, %p157
      %p159 = scmp.le.s32.totalorder 1, %s13
      %p160 = scmp.lt.s32.totalorder %s13, 3
      %p161 = pnand %p159, %p160
      %p162 = pneg %p161
      // Predicated region
      $region9: #{_bottleneck_impl.7} parent=5 // pred_check
        _
      $region10: #{_bottleneck_impl.7} parent=5 // pred_check_branch
        %164 = sbr.rel (%p161) target = $region12
      $region11: #{_bottleneck_impl.7} parent=5 // pred_region
        %s165 = ssub.s32 %s13, 1
        // Predicated region
        $region13: #{_bottleneck_impl.7} parent=11 // pred_check
          %p166 = pneg %p102
        $region14: #{_bottleneck_impl.7} parent=11 // pred_check_branch
          %168 = sbr.rel (%p166) target = $region16
        $region15: #{_bottleneck_impl.7} parent=11 // pred_region
          _
        $region16: #{_bottleneck_impl.7} parent=11 // pred_fallthru
          _
        // Predicated region
        $region17: #{_bottleneck_impl.7} parent=11 // pred_check
          %p169 = pneg %p123
        $region18: #{_bottleneck_impl.7} parent=11 // pred_check_branch
          %171 = sbr.rel (%p169) target = $region20
        $region19: #{_bottleneck_impl.7} parent=11 // pred_region
          _
        $region20: #{_bottleneck_impl.7} parent=11 // pred_fallthru
          _
      $region12: #{_bottleneck_impl.7} parent=5 // pred_fallthru
        _
      %p172 = scmp.lt.s32.totalorder %s13, 2
      // Predicated region
      $region21: #{_bottleneck_impl.7} parent=5 // pred_check
        %p173 = pneg %p172
      $region22: #{_bottleneck_impl.7} parent=5 // pred_check_branch
        %175 = sbr.rel (%p173) target = $region24
      $region23: #{_bottleneck_impl.7} parent=5 // pred_region
        // Predicated region
        $region25: #{_bottleneck_impl.7} parent=23 // pred_check
          %p176 = pneg %p47
        $region26: #{_bottleneck_impl.7} parent=23 // pred_check_branch
          %178 = sbr.rel (%p176) target = $region28
        $region27: #{_bottleneck_impl.7} parent=23 // pred_region
          %s179 = smul.u32 16, %s21
          %p180 = scmp.lt.s32.totalorder %s20, 1
          %s181 = scalar_select %p180, %s20, 1
          %p182 = scmp.lt.s32.totalorder %s179, 15
          %s183 = scalar_select %p182, %s179, 15
          %s184 = smul.addr %s183, 2
          %s185 = smul.addr %s181, 32
          %s186 = sadd.s32 %s184, %s185
          %s187 = smul.addr %s186, 8
          %s188 = scalar_lea.vmem %s0, %s187
          %s189 = smul.u32 16, %s21
        $region28: #{_bottleneck_impl.7} parent=23 // pred_fallthru
          _
        // Predicated region
        $region29: #{_bottleneck_impl.7} parent=23 // pred_check
          %p190 = pneg %p75
        $region30: #{_bottleneck_impl.7} parent=23 // pred_check_branch
          %192 = sbr.rel (%p190) target = $region32
        $region31: #{_bottleneck_impl.7} parent=23 // pred_region
          %s193 = smul.u32 16, %s21
          %p194 = scmp.lt.s32.totalorder %s20, 1
          %s195 = scalar_select %p194, %s20, 1
          %p196 = scmp.lt.s32.totalorder %s193, 15
          %s197 = scalar_select %p196, %s193, 15
          %s198 = smul.addr %s197, 2
          %s199 = smul.addr %s195, 32
          %s200 = sadd.s32 %s198, %s199
          %s201 = smul.addr %s200, 8
          %s202 = scalar_lea.vmem %s1, %s201
          %s203 = smul.u32 16, %s21
        $region32: #{_bottleneck_impl.7} parent=23 // pred_fallthru
          _
      $region24: #{_bottleneck_impl.7} parent=5 // pred_fallthru
        _
      %p204 = scmp.le.s32.totalorder 1, %s13
      %p205 = scmp.lt.s32.totalorder %s13, 3
      %p206 = pnand %p204, %p205
      %p207 = pneg %p206
      // Predicated region
      $region33: #{_bottleneck_impl.7} parent=5 // pred_check
        _
      $region34: #{_bottleneck_impl.7} parent=5 // pred_check_branch
        %209 = sbr.rel (%p206) target = $region36
      $region35: #{_bottleneck_impl.7} parent=5 // pred_region
        %s210 = ssub.s32 %s13, 1
        %s211 = smul.u32 16, %s23
        %p212 = scmp.lt.s32.totalorder %s22, 1
        %s213 = scalar_select %p212, %s22, 1
        %p214 = scmp.lt.s32.totalorder %s211, 15
        %s215 = scalar_select %p214, %s211, 15
        %s216 = smul.addr %s215, 2
        %s217 = smul.addr %s213, 32
        %s218 = sadd.s32 %s216, %s217
        %s219 = smul.addr %s218, 8
        %s220 = scalar_lea.vmem %s0, %s219
        %p221 = pneg %p53
        %p222 = pneg %p50
        %s223 = smul.u32 16, %s23
        %p224 = scmp.lt.s32.totalorder %s22, 1
        %s225 = scalar_select %p224, %s22, 1
        %p226 = scmp.lt.s32.totalorder %s223, 15
        %s227 = scalar_select %p226, %s223, 15
        %s228 = smul.addr %s227, 2
        %s229 = smul.addr %s225, 32
        %s230 = sadd.s32 %s228, %s229
        %s231 = smul.addr %s230, 8
        %s232 = scalar_lea.vmem %s1, %s231
        %p233 = pneg %p81
        %p234 = pneg %p78
        %p235 = pneg %p102
        %p236 = pneg %p99
        %p237 = pneg %p123
        %p238 = pneg %p120
        %p239 = pneg %p151
        %p240 = pneg %p148
        %s241 = sand.u32 %s138, 1
        %s242 = scalar_lea.sflag [#allocation3], %s241
        %s243 = sand.u32 %s138, 1
        %s244 = smul.addr %s243, 256
        %s245 = scalar_lea.vmem [#allocation2], %s244
        %s246 = smul.u32 16, %s23
        %p247 = scmp.lt.s32.totalorder %s22, 1
        %s248 = scalar_select %p247, %s22, 1
        %p249 = scmp.lt.s32.totalorder %s246, 15
        %s250 = scalar_select %p249, %s246, 15
        %s251 = smul.addr %s250, 2
        %s252 = smul.addr %s248, 32
        %s253 = sadd.s32 %s251, %s252
        %s254 = smul.addr %s253, 8
        %s255 = scalar_lea.vmem %s0, %s254
        %s256 = smul.u32 16, %s23
        %s257 = smul.u32 16, %s23
        %p258 = scmp.lt.s32.totalorder %s22, 1
        %s259 = scalar_select %p258, %s22, 1
        %p260 = scmp.lt.s32.totalorder %s257, 15
        %s261 = scalar_select %p260, %s257, 15
        %s262 = smul.addr %s261, 2
        %s263 = smul.addr %s259, 32
        %s264 = sadd.s32 %s262, %s263
        %s265 = smul.addr %s264, 8
        %s266 = scalar_lea.vmem %s1, %s265
        %s267 = smul.u32 16, %s23
        %s268 = smul.u32 16, %s23
        %v269 = vld [vmem:[%s255] sm:$0xff]
        %v270 = vld [vmem:[%s255 + $0x8] sm:$0xff]
        %v271 = vld [vmem:[%s255 + $0x10] sm:$0xff]
        %v272 = vld [vmem:[%s255 + $0x18] sm:$0xff]
        %v273 = vld [vmem:[%s255 + $0x20] sm:$0xff]
        %v274 = vld [vmem:[%s255 + $0x28] sm:$0xff]
        %v275 = vld [vmem:[%s255 + $0x30] sm:$0xff]
        %v276 = vld [vmem:[%s255 + $0x38] sm:$0xff]
        %v277 = vld [vmem:[%s255 + $0x40] sm:$0xff]
        %v278 = vld [vmem:[%s255 + $0x48] sm:$0xff]
        %v279 = vld [vmem:[%s255 + $0x50] sm:$0xff]
        %v280 = vld [vmem:[%s255 + $0x58] sm:$0xff]
        %v281 = vld [vmem:[%s255 + $0x60] sm:$0xff]
        %v282 = vld [vmem:[%s255 + $0x68] sm:$0xff]
        %v283 = vld [vmem:[%s255 + $0x70] sm:$0xff]
        %v284 = vld [vmem:[%s255 + $0x78] sm:$0xff]
        %v285 = vld [vmem:[%s255 + $0x80] sm:$0xff]
        %v286 = vld [vmem:[%s255 + $0x88] sm:$0xff]
        %v287 = vld [vmem:[%s255 + $0x90] sm:$0xff]
        %v288 = vld [vmem:[%s255 + $0x98] sm:$0xff]
        %v289 = vld [vmem:[%s255 + $0xa0] sm:$0xff]
        %v290 = vld [vmem:[%s255 + $0xa8] sm:$0xff]
        %v291 = vld [vmem:[%s255 + $0xb0] sm:$0xff]
        %v292 = vld [vmem:[%s255 + $0xb8] sm:$0xff]
        %v293 = vld [vmem:[%s255 + $0xc0] sm:$0xff]
        %v294 = vld [vmem:[%s255 + $0xc8] sm:$0xff]
        %v295 = vld [vmem:[%s255 + $0xd0] sm:$0xff]
        %v296 = vld [vmem:[%s255 + $0xd8] sm:$0xff]
        %v297 = vld [vmem:[%s255 + $0xe0] sm:$0xff]
        %v298 = vld [vmem:[%s255 + $0xe8] sm:$0xff]
        %v299 = vld [vmem:[%s255 + $0xf0] sm:$0xff]
        %v300 = vld [vmem:[%s255 + $0xf8] sm:$0xff]
        %v301 = vld [vmem:[%s2] sm:$0x1]
        %v303 = vlaneseq
        %v304 = vshrl.u32 %v303, 7
        %v305 = vsub.s32 0, %v304
        %v306 = vrot.slane %v301, %v305
        %v308 = vmul.f32 %v269, %v306
        %v309 = vmul.f32 %v270, %v306
        %v310 = vmul.f32 %v271, %v306
        %v311 = vmul.f32 %v272, %v306
        %v312 = vmul.f32 %v273, %v306
        %v313 = vmul.f32 %v274, %v306
        %v314 = vmul.f32 %v275, %v306
        %v315 = vmul.f32 %v276, %v306
        %v316 = vmul.f32 %v277, %v306
        %v317 = vmul.f32 %v278, %v306
        %v318 = vmul.f32 %v279, %v306
        %v319 = vmul.f32 %v280, %v306
        %v320 = vmul.f32 %v281, %v306
        %v321 = vmul.f32 %v282, %v306
        %v322 = vmul.f32 %v283, %v306
        %v323 = vmul.f32 %v284, %v306
        %v324 = vmul.f32 %v285, %v306
        %v325 = vmul.f32 %v286, %v306
        %v326 = vmul.f32 %v287, %v306
        %v327 = vmul.f32 %v288, %v306
        %v328 = vmul.f32 %v289, %v306
        %v329 = vmul.f32 %v290, %v306
        %v330 = vmul.f32 %v291, %v306
        %v331 = vmul.f32 %v292, %v306
        %v332 = vmul.f32 %v293, %v306
        %v333 = vmul.f32 %v294, %v306
        %v334 = vmul.f32 %v295, %v306
        %v335 = vmul.f32 %v296, %v306
        %v336 = vmul.f32 %v297, %v306
        %v337 = vmul.f32 %v298, %v306
        %v338 = vmul.f32 %v299, %v306
        %v339 = vmul.f32 %v300, %v306
        %v340 = vld [vmem:[%s3] sm:$0x1]
        %v342 = vlaneseq
        %v343 = vshrl.u32 %v342, 7
        %v344 = vsub.s32 0, %v343
        %v345 = vrot.slane %v340, %v344
        %v347 = vadd.f32 %v308, %v345
        %v348 = vadd.f32 %v309, %v345
        %v349 = vadd.f32 %v310, %v345
        %v350 = vadd.f32 %v311, %v345
        %v351 = vadd.f32 %v312, %v345
        %v352 = vadd.f32 %v313, %v345
        %v353 = vadd.f32 %v314, %v345
        %v354 = vadd.f32 %v315, %v345
        %v355 = vadd.f32 %v316, %v345
        %v356 = vadd.f32 %v317, %v345
        %v357 = vadd.f32 %v318, %v345
        %v358 = vadd.f32 %v319, %v345
        %v359 = vadd.f32 %v320, %v345
        %v360 = vadd.f32 %v321, %v345
        %v361 = vadd.f32 %v322, %v345
        %v362 = vadd.f32 %v323, %v345
        %v363 = vadd.f32 %v324, %v345
        %v364 = vadd.f32 %v325, %v345
        %v365 = vadd.f32 %v326, %v345
        %v366 = vadd.f32 %v327, %v345
        %v367 = vadd.f32 %v328, %v345
        %v368 = vadd.f32 %v329, %v345
        %v369 = vadd.f32 %v330, %v345
        %v370 = vadd.f32 %v331, %v345
        %v371 = vadd.f32 %v332, %v345
        %v372 = vadd.f32 %v333, %v345
        %v373 = vadd.f32 %v334, %v345
        %v374 = vadd.f32 %v335, %v345
        %v375 = vadd.f32 %v336, %v345
        %v376 = vadd.f32 %v337, %v345
        %v377 = vadd.f32 %v338, %v345
        %v378 = vadd.f32 %v339, %v345
        %v379 = vld [vmem:[%s266] sm:$0xff]
        %v380 = vld [vmem:[%s266 + $0x8] sm:$0xff]
        %v381 = vld [vmem:[%s266 + $0x10] sm:$0xff]
        %v382 = vld [vmem:[%s266 + $0x18] sm:$0xff]
        %v383 = vld [vmem:[%s266 + $0x20] sm:$0xff]
        %v384 = vld [vmem:[%s266 + $0x28] sm:$0xff]
        %v385 = vld [vmem:[%s266 + $0x30] sm:$0xff]
        %v386 = vld [vmem:[%s266 + $0x38] sm:$0xff]
        %v387 = vld [vmem:[%s266 + $0x40] sm:$0xff]
        %v388 = vld [vmem:[%s266 + $0x48] sm:$0xff]
        %v389 = vld [vmem:[%s266 + $0x50] sm:$0xff]
        %v390 = vld [vmem:[%s266 + $0x58] sm:$0xff]
        %v391 = vld [vmem:[%s266 + $0x60] sm:$0xff]
        %v392 = vld [vmem:[%s266 + $0x68] sm:$0xff]
        %v393 = vld [vmem:[%s266 + $0x70] sm:$0xff]
        %v394 = vld [vmem:[%s266 + $0x78] sm:$0xff]
        %v395 = vld [vmem:[%s266 + $0x80] sm:$0xff]
        %v396 = vld [vmem:[%s266 + $0x88] sm:$0xff]
        %v397 = vld [vmem:[%s266 + $0x90] sm:$0xff]
        %v398 = vld [vmem:[%s266 + $0x98] sm:$0xff]
        %v399 = vld [vmem:[%s266 + $0xa0] sm:$0xff]
        %v400 = vld [vmem:[%s266 + $0xa8] sm:$0xff]
        %v401 = vld [vmem:[%s266 + $0xb0] sm:$0xff]
        %v402 = vld [vmem:[%s266 + $0xb8] sm:$0xff]
        %v403 = vld [vmem:[%s266 + $0xc0] sm:$0xff]
        %v404 = vld [vmem:[%s266 + $0xc8] sm:$0xff]
        %v405 = vld [vmem:[%s266 + $0xd0] sm:$0xff]
        %v406 = vld [vmem:[%s266 + $0xd8] sm:$0xff]
        %v407 = vld [vmem:[%s266 + $0xe0] sm:$0xff]
        %v408 = vld [vmem:[%s266 + $0xe8] sm:$0xff]
        %v409 = vld [vmem:[%s266 + $0xf0] sm:$0xff]
        %v410 = vld [vmem:[%s266 + $0xf8] sm:$0xff]
        %v411 = vadd.f32 %v347, %v379
        %v412 = vadd.f32 %v348, %v380
        %v413 = vadd.f32 %v349, %v381
        %v414 = vadd.f32 %v350, %v382
        %v415 = vadd.f32 %v351, %v383
        %v416 = vadd.f32 %v352, %v384
        %v417 = vadd.f32 %v353, %v385
        %v418 = vadd.f32 %v354, %v386
        %v419 = vadd.f32 %v355, %v387
        %v420 = vadd.f32 %v356, %v388
        %v421 = vadd.f32 %v357, %v389
        %v422 = vadd.f32 %v358, %v390
        %v423 = vadd.f32 %v359, %v391
        %v424 = vadd.f32 %v360, %v392
        %v425 = vadd.f32 %v361, %v393
        %v426 = vadd.f32 %v362, %v394
        %v427 = vadd.f32 %v363, %v395
        %v428 = vadd.f32 %v364, %v396
        %v429 = vadd.f32 %v365, %v397
        %v430 = vadd.f32 %v366, %v398
        %v431 = vadd.f32 %v367, %v399
        %v432 = vadd.f32 %v368, %v400
        %v433 = vadd.f32 %v369, %v401
        %v434 = vadd.f32 %v370, %v402
        %v435 = vadd.f32 %v371, %v403
        %v436 = vadd.f32 %v372, %v404
        %v437 = vadd.f32 %v373, %v405
        %v438 = vadd.f32 %v374, %v406
        %v439 = vadd.f32 %v375, %v407
        %v440 = vadd.f32 %v376, %v408
        %v441 = vadd.f32 %v377, %v409
        %v442 = vadd.f32 %v378, %v410
        %v443 = vmax.f32 %v411, 0.0
        %v444 = vmax.f32 %v412, 0.0
        %v445 = vmax.f32 %v413, 0.0
        %v446 = vmax.f32 %v414, 0.0
        %v447 = vmax.f32 %v415, 0.0
        %v448 = vmax.f32 %v416, 0.0
        %v449 = vmax.f32 %v417, 0.0
        %v450 = vmax.f32 %v418, 0.0
        %v451 = vmax.f32 %v419, 0.0
        %v452 = vmax.f32 %v420, 0.0
        %v453 = vmax.f32 %v421, 0.0
        %v454 = vmax.f32 %v422, 0.0
        %v455 = vmax.f32 %v423, 0.0
        %v456 = vmax.f32 %v424, 0.0
        %v457 = vmax.f32 %v425, 0.0
        %v458 = vmax.f32 %v426, 0.0
        %v459 = vmax.f32 %v427, 0.0
        %v460 = vmax.f32 %v428, 0.0
        %v461 = vmax.f32 %v429, 0.0
        %v462 = vmax.f32 %v430, 0.0
        %v463 = vmax.f32 %v431, 0.0
        %v464 = vmax.f32 %v432, 0.0
        %v465 = vmax.f32 %v433, 0.0
        %v466 = vmax.f32 %v434, 0.0
        %v467 = vmax.f32 %v435, 0.0
        %v468 = vmax.f32 %v436, 0.0
        %v469 = vmax.f32 %v437, 0.0
        %v470 = vmax.f32 %v438, 0.0
        %v471 = vmax.f32 %v439, 0.0
        %v472 = vmax.f32 %v440, 0.0
        %v473 = vmax.f32 %v441, 0.0
        %v474 = vmax.f32 %v442, 0.0
        %vm475 = vcmask 261120
        %476 = vst.msk [vmem:[%s245] sm:$0xff] %vm475, %v443
        %477 = vst.msk [vmem:[%s245 + $0x8] sm:$0xff] %vm475, %v444
        %478 = vst.msk [vmem:[%s245 + $0x10] sm:$0xff] %vm475, %v445
        %479 = vst.msk [vmem:[%s245 + $0x18] sm:$0xff] %vm475, %v446
        %480 = vst.msk [vmem:[%s245 + $0x20] sm:$0xff] %vm475, %v447
        %481 = vst.msk [vmem:[%s245 + $0x28] sm:$0xff] %vm475, %v448
        %482 = vst.msk [vmem:[%s245 + $0x30] sm:$0xff] %vm475, %v449
        %483 = vst.msk [vmem:[%s245 + $0x38] sm:$0xff] %vm475, %v450
        %484 = vst.msk [vmem:[%s245 + $0x40] sm:$0xff] %vm475, %v451
        %485 = vst.msk [vmem:[%s245 + $0x48] sm:$0xff] %vm475, %v452
        %486 = vst.msk [vmem:[%s245 + $0x50] sm:$0xff] %vm475, %v453
        %487 = vst.msk [vmem:[%s245 + $0x58] sm:$0xff] %vm475, %v454
        %488 = vst.msk [vmem:[%s245 + $0x60] sm:$0xff] %vm475, %v455
        %489 = vst.msk [vmem:[%s245 + $0x68] sm:$0xff] %vm475, %v456
        %490 = vst.msk [vmem:[%s245 + $0x70] sm:$0xff] %vm475, %v457
        %491 = vst.msk [vmem:[%s245 + $0x78] sm:$0xff] %vm475, %v458
        %492 = vst.msk [vmem:[%s245 + $0x80] sm:$0xff] %vm475, %v459
        %493 = vst.msk [vmem:[%s245 + $0x88] sm:$0xff] %vm475, %v460
        %494 = vst.msk [vmem:[%s245 + $0x90] sm:$0xff] %vm475, %v461
        %495 = vst.msk [vmem:[%s245 + $0x98] sm:$0xff] %vm475, %v462
        %496 = vst.msk [vmem:[%s245 + $0xa0] sm:$0xff] %vm475, %v463
        %497 = vst.msk [vmem:[%s245 + $0xa8] sm:$0xff] %vm475, %v464
        %498 = vst.msk [vmem:[%s245 + $0xb0] sm:$0xff] %vm475, %v465
        %499 = vst.msk [vmem:[%s245 + $0xb8] sm:$0xff] %vm475, %v466
        %500 = vst.msk [vmem:[%s245 + $0xc0] sm:$0xff] %vm475, %v467
        %501 = vst.msk [vmem:[%s245 + $0xc8] sm:$0xff] %vm475, %v468
        %502 = vst.msk [vmem:[%s245 + $0xd0] sm:$0xff] %vm475, %v469
        %503 = vst.msk [vmem:[%s245 + $0xd8] sm:$0xff] %vm475, %v470
        %504 = vst.msk [vmem:[%s245 + $0xe0] sm:$0xff] %vm475, %v471
        %505 = vst.msk [vmem:[%s245 + $0xe8] sm:$0xff] %vm475, %v472
        %506 = vst.msk [vmem:[%s245 + $0xf0] sm:$0xff] %vm475, %v473
        %507 = vst.msk [vmem:[%s245 + $0xf8] sm:$0xff] %vm475, %v474
        %s508 = sand.u32 %s138, 1
        %s509 = scalar_lea.sflag [#allocation3], %s508
        %s510 = sand.u32 %s138, 1
        %s511 = smul.addr %s510, 256
        %s512 = scalar_lea.vmem [#allocation2], %s511
        // Predicated region
        $region37: #{_bottleneck_impl.7} parent=35 // pred_check
          %p513 = pneg %p148
        $region38: #{_bottleneck_impl.7} parent=35 // pred_check_branch
          %515 = sbr.rel (%p513) target = $region40
        $region39: #{_bottleneck_impl.7} parent=35 // pred_region
          %s516 = smul.u32 16, %s23
          %s518 = ssub.s32 4096, 4096
          %519 = vsyncadd %s509, %s518
          %s520 = smul.addr %s516, 2
          %s521 = smul.addr %s22, 32
          %s522 = sadd.s32 %s520, %s521
          %s523 = smul.addr %s522, 128
          %s524 = scalar_lea.hbm %s4, %s523
          %s525 = sshll.u32 %s512, 4
          %s526 = int_to_ptr.vmem [resolvable:$true] %s525
          %531 = dma.vmem_to_hbm [thread:$0]  %s526, 4096, %s524, %s509, 128, 128, 8
        $region40: #{_bottleneck_impl.7} parent=35 // pred_fallthru
          _
      $region36: #{_bottleneck_impl.7} parent=5 // pred_fallthru
        _
      %p532 = scmp.le.s32.totalorder 2, %s13
      // Predicated region
      $region41: #{_bottleneck_impl.7} parent=5 // pred_check
        %p533 = pneg %p532
      $region42: #{_bottleneck_impl.7} parent=5 // pred_check_branch
        %535 = sbr.rel (%p533) target = $region44
      $region43: #{_bottleneck_impl.7} parent=5 // pred_region
        %s536 = ssub.s32 %s13, 2
        // Predicated region
        $region45: #{_bottleneck_impl.7} parent=43 // pred_check
          %p537 = pneg %p154
        $region46: #{_bottleneck_impl.7} parent=43 // pred_check_branch
          %539 = sbr.rel (%p537) target = $region48
        $region47: #{_bottleneck_impl.7} parent=43 // pred_region
          %s540 = sand.u32 %s139, 1
          %s541 = scalar_lea.sflag [#allocation3], %s540
          %s542 = sand.u32 %s139, 1
          %s543 = smul.addr %s542, 256
          %s544 = scalar_lea.vmem [#allocation2], %s543
          %545 = dma.done %s541, 4096
        $region48: #{_bottleneck_impl.7} parent=43 // pred_fallthru
          _
      $region44: #{_bottleneck_impl.7} parent=5 // pred_fallthru
        _
    $region6: #{_bottleneck_impl.7} parent=1 // loop_footer
      %s17 = sadd.s32 1, %s13
    $region7: #{_bottleneck_impl.7} parent=1 // loop_footer_branch
      %12 = sbr.rel target = $region3
    $region8: #{_bottleneck_impl.7} parent=1 // loop_exit
      _
    %546 = vsyncpa [#allocation3], 1
    %s547 = scalar_lea.sflag [#allocation3], 1
    %548 = vsyncpa %s547, 1

// kernel: _bottleneck_impl.4
$region0: #{_bottleneck_impl.4}
  #allocation0 [shape = 'u32[]', space=smem, size = 0x4, offset = 0x4, fixed_abs, tag = 'smem constant byte address 0x4 - core index']
  #allocation1 [shape = 'u32[144,128]{1,0:T(1,128)}', space=vmem, size = 0x12000, scoped, tag = 'internal scratch']
  %s0 = inlined_call_operand.hbm [shape: f32[2,16,16,32], index: 0, kind: input, shape index: {}]
  %s1 = inlined_call_operand.vmem [shape: f32[32,8], index: 1, kind: input, shape index: {}]
  %s2 = inlined_call_operand.vmem [shape: f32[2,16,16,8], index: 2, kind: output, shape index: {0}]
  %s3 = inlined_call_operand.vmem [shape: f32[2,2,8], index: 3, kind: output, shape index: {1}]
  %4 = xla_tuple %s2, %s3
  %s5 = sld [smem:[#allocation0]]
  $region53: #{_bottleneck_impl.4} parent=0
    _
  %s7 = ssub.s32 1, %s5
  %s8 = scalar_select 0, %s7, %s5
  $region1: #{_bottleneck_impl.4} parent=0
    #allocation2 [shape = 'u8[262144]{0}', space=vmem, size = 0x40000, scoped, tag = 'input window, operand 0']
    #allocation3 [shape = 's32[2]{0}', space=sflag, size = 0x8, scoped, tag = 'scoped memory for _bottleneck_impl.4']
    %9 = vsyncpa [#allocation3], 0
    %s10 = scalar_lea.sflag [#allocation3], 1
    %11 = vsyncpa %s10, 0
    loop: start=0, step=1, limit=4
    $region2: #{_bottleneck_impl.4} parent=1 // loop_pre_header
      _
    $region3: #{_bottleneck_impl.4} parent=1 // loop_header
      %s13 = sphi 0, %s17
      %p14 = scmp.ge.s32.totalorder %s13, 4
      %s20 = sphi 0, %s32
      %s21 = sphi 0, %s28
      %s22 = sphi 0, %s20
      %s23 = sphi 0, %s21
      %s24 = sphi 0, %s22
      %s25 = sphi 0, %s23
      %s37 = sphi 0, %s39
      %s40 = sphi 0, %s37
      %s41 = sphi 0, %s40
      %s57 = sphi 0, %s41
      %s61 = sphi 0, %s61
      %s63 = sphi 0, %s61
      %s64 = sphi 0, %s63
      %s78 = sphi 0, %s64
      %s86 = sphi 0, %s88
      %s89 = sphi 0, %s86
      %s90 = sphi 0, %s89
      %s106 = sphi 0, %s90
      %s114 = sphi 0, %s116
      %s117 = sphi 0, %s114
      %s118 = sphi 0, %s117
      %s134 = sphi 0, %s118
    $region4: #{_bottleneck_impl.4} parent=1 // loop_header_branch
      %16 = sbr.rel (%p14) target = $region8
    $region5: #{_bottleneck_impl.4} parent=1 // loop_body
      %s18 = ssub.s32 %s13, 1
      %s19 = ssub.s32 %s13, 2
      %s26 = sadd.s32 1, %s21
      %p27 = scmp.ge.s32.totalorder %s26, 1
      %s28 = scalar_select %p27, 0, %s26
      %s29 = sadd.s32 1, %s20
      %s30 = scalar_select %p27, %s29, %s20
      %p31 = scmp.ge.s32.totalorder %s30, 2
      %s32 = scalar_select %p31, 0, %s30
      %s33 = ssub.s32 %s20, %s32
      %s34 = ssub.s32 %s21, %s28
      %s35 = sor.u32 %s33, %s34
      %p36 = scmp.eq.s32.totalorder %s35, 0
      %s38 = sadd.s32 %s37, 1
      %s39 = scalar_select %p36, %s37, %s38
      %p42 = pneg %p36
      %p43 = scmp.eq.s32.totalorder %s13, 1
      %p44 = por %p42, %p43
      %p45 = scmp.ne.s32.totalorder %s37, %s40
      %p46 = scmp.eq.s32.totalorder %s13, 0
      %p47 = por %p45, %p46
      %p48 = scmp.ne.s32.totalorder %s37, %s40
      %p49 = scmp.eq.s32.totalorder %s18, 1
      %p50 = por %p48, %p49
      %p51 = scmp.ne.s32.totalorder %s40, %s41
      %p52 = scmp.eq.s32.totalorder %s18, 0
      %p53 = por %p51, %p52
      %p54 = scmp.ne.s32.totalorder %s40, %s41
      %p55 = scmp.eq.s32.totalorder %s19, 1
      %p56 = por %p54, %p55
      %p58 = scmp.ne.s32.totalorder %s41, %s57
      %p59 = scmp.eq.s32.totalorder %s19, 0
      %p60 = por %p58, %p59
      %s62 = sadd.s32 %s61, 1
      %p65 = scmp.eq.s32.totalorder %s13, 1
      %p66 = scmp.ne.s32.totalorder %s61, %s63
      %p67 = scmp.eq.s32.totalorder %s13, 0
      %p68 = por %p66, %p67
      %p69 = scmp.ne.s32.totalorder %s61, %s63
      %p70 = scmp.eq.s32.totalorder %s18, 1
      %p71 = por %p69, %p70
      %p72 = scmp.ne.s32.totalorder %s63, %s64
      %p73 = scmp.eq.s32.totalorder %s18, 0
      %p74 = por %p72, %p73
      %p75 = scmp.ne.s32.totalorder %s63, %s64
      %p76 = scmp.eq.s32.totalorder %s19, 1
      %p77 = por %p75, %p76
      %p79 = scmp.ne.s32.totalorder %s64, %s78
      %p80 = scmp.eq.s32.totalorder %s19, 0
      %p81 = por %p79, %p80
      %s82 = ssub.s32 %s20, %s32
      %s83 = ssub.s32 %s21, %s28
      %s84 = sor.u32 %s82, %s83
      %p85 = scmp.eq.s32.totalorder %s84, 0
      %s87 = sadd.s32 %s86, 1
      %s88 = scalar_select %p85, %s86, %s87
      %p91 = pneg %p85
      %p92 = scmp.eq.s32.totalorder %s13, 1
      %p93 = por %p91, %p92
      %p94 = scmp.ne.s32.totalorder %s86, %s89
      %p95 = scmp.eq.s32.totalorder %s13, 0
      %p96 = por %p94, %p95
      %p97 = scmp.ne.s32.totalorder %s86, %s89
      %p98 = scmp.eq.s32.totalorder %s18, 1
      %p99 = por %p97, %p98
      %p100 = scmp.ne.s32.totalorder %s89, %s90
      %p101 = scmp.eq.s32.totalorder %s18, 0
      %p102 = por %p100, %p101
      %p103 = scmp.ne.s32.totalorder %s89, %s90
      %p104 = scmp.eq.s32.totalorder %s19, 1
      %p105 = por %p103, %p104
      %p107 = scmp.ne.s32.totalorder %s90, %s106
      %p108 = scmp.eq.s32.totalorder %s19, 0
      %p109 = por %p107, %p108
      %s110 = sadd.s32 %s20, %s21
      %s111 = sadd.s32 %s32, %s28
      %s112 = ssub.s32 %s110, %s111
      %p113 = scmp.eq.s32.totalorder %s112, 0
      %s115 = sadd.s32 %s114, 1
      %s116 = scalar_select %p113, %s114, %s115
      %p119 = pneg %p113
      %p120 = scmp.eq.s32.totalorder %s13, 1
      %p121 = por %p119, %p120
      %p122 = scmp.ne.s32.totalorder %s114, %s117
      %p123 = scmp.eq.s32.totalorder %s13, 0
      %p124 = por %p122, %p123
      %p125 = scmp.ne.s32.totalorder %s114, %s117
      %p126 = scmp.eq.s32.totalorder %s18, 1
      %p127 = por %p125, %p126
      %p128 = scmp.ne.s32.totalorder %s117, %s118
      %p129 = scmp.eq.s32.totalorder %s18, 0
      %p130 = por %p128, %p129
      %p131 = scmp.ne.s32.totalorder %s117, %s118
      %p132 = scmp.eq.s32.totalorder %s19, 1
      %p133 = por %p131, %p132
      %p135 = scmp.ne.s32.totalorder %s118, %s134
      %p136 = scmp.eq.s32.totalorder %s19, 0
      %p137 = por %p135, %p136
      %p138 = scmp.le.s32.totalorder 1, %s13
      %p139 = scmp.lt.s32.totalorder %s13, 3
      %p140 = pnand %p138, %p139
      %p141 = pneg %p140
      // Predicated region
      $region9: #{_bottleneck_impl.4} parent=5 // pred_check
        _
      $region10: #{_bottleneck_impl.4} parent=5 // pred_check_branch
        %143 = sbr.rel (%p140) target = $region12
      $region11: #{_bottleneck_impl.4} parent=5 // pred_region
        %s144 = ssub.s32 %s13, 1
        // Predicated region
        $region13: #{_bottleneck_impl.4} parent=11 // pred_check
          %p145 = pneg %p74
        $region14: #{_bottleneck_impl.4} parent=11 // pred_check_branch
          %147 = sbr.rel (%p145) target = $region16
        $region15: #{_bottleneck_impl.4} parent=11 // pred_region
          _
        $region16: #{_bottleneck_impl.4} parent=11 // pred_fallthru
          _
      $region12: #{_bottleneck_impl.4} parent=5 // pred_fallthru
        _
      %p148 = scmp.lt.s32.totalorder %s13, 2
      // Predicated region
      $region17: #{_bottleneck_impl.4} parent=5 // pred_check
        %p149 = pneg %p148
      $region18: #{_bottleneck_impl.4} parent=5 // pred_check_branch
        %151 = sbr.rel (%p149) target = $region20
      $region19: #{_bottleneck_impl.4} parent=5 // pred_region
        // Predicated region
        $region21: #{_bottleneck_impl.4} parent=19 // pred_check
          %p152 = pneg %p47
        $region22: #{_bottleneck_impl.4} parent=19 // pred_check_branch
          %154 = sbr.rel (%p152) target = $region24
        $region23: #{_bottleneck_impl.4} parent=19 // pred_region
          %s155 = sand.u32 %s37, 1
          %s156 = scalar_lea.sflag [#allocation3], %s155
          %s157 = sand.u32 %s37, 1
          %s158 = smul.addr %s157, 256
          %s159 = scalar_lea.vmem [#allocation2], %s158
          %s160 = smul.u32 16, %s21
          %s162 = ssub.s32 4096, 4096
          %163 = vsyncadd %s156, %s162
          %s164 = smul.addr %s160, 2
          %s165 = smul.addr %s20, 32
          %s166 = sadd.s32 %s164, %s165
          %s167 = smul.addr %s166, 128
          %s168 = scalar_lea.hbm %s0, %s167
          %s169 = sshll.u32 %s159, 4
          %s170 = int_to_ptr.vmem [resolvable:$true] %s169
          %175 = dma.hbm_to_vmem [thread:$0]  %s168, 4096, %s170, %s156, 128, 128, 8
        $region24: #{_bottleneck_impl.4} parent=19 // pred_fallthru
          _
      $region20: #{_bottleneck_impl.4} parent=5 // pred_fallthru
        _
      %p176 = scmp.le.s32.totalorder 1, %s13
      %p177 = scmp.lt.s32.totalorder %s13, 3
      %p178 = pnand %p176, %p177
      %p179 = pneg %p178
      // Predicated region
      $region25: #{_bottleneck_impl.4} parent=5 // pred_check
        _
      $region26: #{_bottleneck_impl.4} parent=5 // pred_check_branch
        %181 = sbr.rel (%p178) target = $region28
      $region27: #{_bottleneck_impl.4} parent=5 // pred_region
        %s182 = ssub.s32 %s13, 1
        %s183 = sand.u32 %s40, 1
        %s184 = scalar_lea.sflag [#allocation3], %s183
        %s185 = sand.u32 %s40, 1
        %s186 = smul.addr %s185, 256
        %s187 = scalar_lea.vmem [#allocation2], %s186
        // Predicated region
        $region29: #{_bottleneck_impl.4} parent=27 // pred_check
          %p188 = pneg %p53
        $region30: #{_bottleneck_impl.4} parent=27 // pred_check_branch
          %190 = sbr.rel (%p188) target = $region32
        $region31: #{_bottleneck_impl.4} parent=27 // pred_region
          %191 = dma.done %s184, 4096
        $region32: #{_bottleneck_impl.4} parent=27 // pred_fallthru
          _
        %s192 = sand.u32 %s40, 1
        %s193 = scalar_lea.sflag [#allocation3], %s192
        %s194 = sand.u32 %s40, 1
        %s195 = smul.addr %s194, 256
        %s196 = scalar_lea.vmem [#allocation2], %s195
        %p197 = pneg %p53
        %p198 = pneg %p50
        %p199 = pneg %p74
        %p200 = pneg %p71
        %p201 = pneg %p102
        %p202 = pneg %p99
        %s203 = smul.u32 16, %s23
        %p204 = scmp.lt.s32.totalorder %s22, 1
        %s205 = scalar_select %p204, %s22, 1
        %p206 = scmp.lt.s32.totalorder %s203, 15
        %s207 = scalar_select %p206, %s203, 15
        %s208 = smul.addr %s207, 2
        %s209 = smul.addr %s205, 32
        %s210 = sadd.s32 %s208, %s209
        %s211 = smul.addr %s210, 8
        %s212 = scalar_lea.vmem %s2, %s211
        %p213 = pneg %p130
        %p214 = pneg %p127
        %s215 = sadd.s32 %s22, %s23
        %p216 = scmp.lt.s32.totalorder %s215, 1
        %s217 = scalar_select %p216, %s215, 1
        %s218 = smul.addr %s217, 2
        %s219 = scalar_lea.vmem %s3, %s218
        %s220 = smul.u32 16, %s23
        %s221 = smul.u32 16, %s23
        %p222 = scmp.lt.s32.totalorder %s22, 1
        %s223 = scalar_select %p222, %s22, 1
        %p224 = scmp.lt.s32.totalorder %s221, 15
        %s225 = scalar_select %p224, %s221, 15
        %s226 = smul.addr %s225, 2
        %s227 = smul.addr %s223, 32
        %s228 = sadd.s32 %s226, %s227
        %s229 = smul.addr %s228, 8
        %s230 = scalar_lea.vmem %s2, %s229
        %s231 = smul.u32 16, %s23
        %s232 = sadd.s32 %s22, %s23
        %p233 = scmp.lt.s32.totalorder %s232, 1
        %s234 = scalar_select %p233, %s232, 1
        %s235 = smul.addr %s234, 2
        %s236 = scalar_lea.vmem %s3, %s235
        %s237 = sadd.s32 %s22, %s23
        %v238 = vld [vmem:[%s187] sm:$0xff]
        %v239 = vld [vmem:[%s187 + $0x8] sm:$0xff]
        %v240 = vld [vmem:[%s187 + $0x10] sm:$0xff]
        %v241 = vld [vmem:[%s187 + $0x18] sm:$0xff]
        %v242 = vld [vmem:[%s187 + $0x20] sm:$0xff]
        %v243 = vld [vmem:[%s187 + $0x28] sm:$0xff]
        %v244 = vld [vmem:[%s187 + $0x30] sm:$0xff]
        %v245 = vld [vmem:[%s187 + $0x38] sm:$0xff]
        %v246 = vld [vmem:[%s187 + $0x40] sm:$0xff]
        %v247 = vld [vmem:[%s187 + $0x48] sm:$0xff]
        %v248 = vld [vmem:[%s187 + $0x50] sm:$0xff]
        %v249 = vld [vmem:[%s187 + $0x58] sm:$0xff]
        %v250 = vld [vmem:[%s187 + $0x60] sm:$0xff]
        %v251 = vld [vmem:[%s187 + $0x68] sm:$0xff]
        %v252 = vld [vmem:[%s187 + $0x70] sm:$0xff]
        %v253 = vld [vmem:[%s187 + $0x78] sm:$0xff]
        %v254 = vld [vmem:[%s187 + $0x80] sm:$0xff]
        %v255 = vld [vmem:[%s187 + $0x88] sm:$0xff]
        %v256 = vld [vmem:[%s187 + $0x90] sm:$0xff]
        %v257 = vld [vmem:[%s187 + $0x98] sm:$0xff]
        %v258 = vld [vmem:[%s187 + $0xa0] sm:$0xff]
        %v259 = vld [vmem:[%s187 + $0xa8] sm:$0xff]
        %v260 = vld [vmem:[%s187 + $0xb0] sm:$0xff]
        %v261 = vld [vmem:[%s187 + $0xb8] sm:$0xff]
        %v262 = vld [vmem:[%s187 + $0xc0] sm:$0xff]
        %v263 = vld [vmem:[%s187 + $0xc8] sm:$0xff]
        %v264 = vld [vmem:[%s187 + $0xd0] sm:$0xff]
        %v265 = vld [vmem:[%s187 + $0xd8] sm:$0xff]
        %v266 = vld [vmem:[%s187 + $0xe0] sm:$0xff]
        %v267 = vld [vmem:[%s187 + $0xe8] sm:$0xff]
        %v268 = vld [vmem:[%s187 + $0xf0] sm:$0xff]
        %v269 = vld [vmem:[%s187 + $0xf8] sm:$0xff]
        %v270 = vld [vmem:[%s1] sm:$0xff]
        %v271 = vld [vmem:[%s1 + $0x8] sm:$0xff]
        %v272 = vld [vmem:[%s1 + $0x10] sm:$0xff]
        %v273 = vld [vmem:[%s1 + $0x18] sm:$0xff]
        %vm274 = vcmask 261120
        %v276 = vsel %vm274, %v238, 0
        %v279 = vsel %vm274, %v239, 0
        %v282 = vsel %vm274, %v240, 0
        %v285 = vsel %vm274, %v241, 0
        %v288 = vsel %vm274, %v242, 0
        %v291 = vsel %vm274, %v243, 0
        %v294 = vsel %vm274, %v244, 0
        %v297 = vsel %vm274, %v245, 0
        %v300 = vsel %vm274, %v246, 0
        %v303 = vsel %vm274, %v247, 0
        %v306 = vsel %vm274, %v248, 0
        %v309 = vsel %vm274, %v249, 0
        %v312 = vsel %vm274, %v250, 0
        %v315 = vsel %vm274, %v251, 0
        %v318 = vsel %vm274, %v252, 0
        %v321 = vsel %vm274, %v253, 0
        %v324 = vsel %vm274, %v254, 0
        %v327 = vsel %vm274, %v255, 0
        %v330 = vsel %vm274, %v256, 0
        %v333 = vsel %vm274, %v257, 0
        %v336 = vsel %vm274, %v258, 0
        %v339 = vsel %vm274, %v259, 0
        %v342 = vsel %vm274, %v260, 0
        %v345 = vsel %vm274, %v261, 0
        %v348 = vsel %vm274, %v262, 0
        %v351 = vsel %vm274, %v263, 0
        %v354 = vsel %vm274, %v264, 0
        %v357 = vsel %vm274, %v265, 0
        %v360 = vsel %vm274, %v266, 0
        %v363 = vsel %vm274, %v267, 0
        %v366 = vsel %vm274, %v268, 0
        %v369 = vsel %vm274, %v269, 0
        %371 = vmatprep.subr.mxu0 0.0
        %372 = vmatpush1.msra.mxu0 %v270
        %373 = vmatprep.subr.mxu0 0.0
        %374 = vmatpush1.msra.mxu0 %v271
        %375 = vmatprep.subr.mxu0 0.0
        %376 = vmatpush1.msra.mxu0 %v272
        %377 = vmatprep.subr.mxu0 0.0
        %378 = vmatpush1.msra.mxu0 %v273
        %379 = vmatprep.subr.mxu0 0.0
        %380 = vmatpush1.msra.mxu0 0.0
        %381 = vmatprep.subr.mxu0 0.0
        %382 = vmatpush1.msra.mxu0 0.0
        %383 = vmatprep.subr.mxu0 0.0
        %384 = vmatpush1.msra.mxu0 0.0
        %385 = vmatprep.subr.mxu0 0.0
        %386 = vmatpush1.msra.mxu0 0.0
        %387 = vmatprep.subr.mxu0 0.0
        %388 = vmatpush1.msra.mxu0 0.0
        %389 = vmatprep.subr.mxu0 0.0
        %390 = vmatpush1.msra.mxu0 0.0
        %391 = vmatprep.subr.mxu0 0.0
        %392 = vmatpush1.msra.mxu0 0.0
        %393 = vmatprep.subr.mxu0 0.0
        %394 = vmatpush1.msra.mxu0 0.0
        %395 = vmatprep.subr.mxu0 0.0
        %396 = vmatpush1.msra.mxu0 0.0
        %397 = vmatprep.subr.mxu0 0.0
        %398 = vmatpush1.msra.mxu0 0.0
        %399 = vmatprep.subr.mxu0 0.0
        %400 = vmatpush1.msra.mxu0 0.0
        %401 = vmatprep.subr.mxu0 0.0
        %402 = vmatpush1.msra.mxu0 0.0
        %403 = vmatprep.subr.mxu0 0.0
        %404 = vmatpush1.msra.mxu0 0.0
        %405 = vmatprep.subr.mxu0 0.0
        %406 = vmatpush1.msra.mxu0 0.0
        %407 = vmatprep.subr.mxu0 0.0
        %408 = vmatpush1.msra.mxu0 0.0
        %409 = vmatprep.subr.mxu0 0.0
        %410 = vmatpush1.msra.mxu0 0.0
        %411 = vmatprep.subr.mxu0 0.0
        %412 = vmatpush1.msra.mxu0 0.0
        %413 = vmatprep.subr.mxu0 0.0
        %414 = vmatpush1.msra.mxu0 0.0
        %415 = vmatprep.subr.mxu0 0.0
        %416 = vmatpush1.msra.mxu0 0.0
        %417 = vmatprep.subr.mxu0 0.0
        %418 = vmatpush1.msra.mxu0 0.0
        %419 = vmatprep.subr.mxu0 0.0
        %420 = vmatpush1.msra.mxu0 0.0
        %421 = vmatprep.subr.mxu0 0.0
        %422 = vmatpush1.msra.mxu0 0.0
        %423 = vmatprep.subr.mxu0 0.0
        %424 = vmatpush1.msra.mxu0 0.0
        %425 = vmatprep.subr.mxu0 0.0
        %426 = vmatpush1.msra.mxu0 0.0
        %427 = vmatprep.subr.mxu0 0.0
        %428 = vmatpush1.msra.mxu0 0.0
        %429 = vmatprep.subr.mxu0 0.0
        %430 = vmatpush1.msra.mxu0 0.0
        %431 = vmatprep.subr.mxu0 0.0
        %432 = vmatpush1.msra.mxu0 0.0
        %433 = vmatprep.subr.mxu0 0.0
        %434 = vmatpush1.msra.mxu0 0.0
        %435 = vmatprep.mubr.f32.mxu0 0.0
        %436 = vmatmul.mubr.f32.gmra.mrb[0].mxu0 %v276
        %v437 = vpop.f32.mrb[0].mxu0
        %v438 = vadd.f32 0.0, %v437
        %v439 = vpop.f32.mrb[0].mxu0
        %440 = vmatprep.mubr.f32.mxu0 0.0
        %441 = vmatmul.mubr.f32.gmra.mrb[0].mxu0 %v279
        %v442 = vpop.f32.mrb[0].mxu0
        %v443 = vadd.f32 0.0, %v442
        %v444 = vpop.f32.mrb[0].mxu0
        %445 = vmatprep.mubr.f32.mxu0 0.0
        %446 = vmatmul.mubr.f32.gmra.mrb[0].mxu0 %v282
        %v447 = vpop.f32.mrb[0].mxu0
        %v448 = vadd.f32 0.0, %v447
        %v449 = vpop.f32.mrb[0].mxu0
        %450 = vmatprep.mubr.f32.mxu0 0.0
        %451 = vmatmul.mubr.f32.gmra.mrb[0].mxu0 %v285
        %v452 = vpop.f32.mrb[0].mxu0
        %v453 = vadd.f32 0.0, %v452
        %v454 = vpop.f32.mrb[0].mxu0
        %455 = vmatprep.mubr.f32.mxu0 0.0
        %456 = vmatmul.mubr.f32.gmra.mrb[0].mxu0 %v288
        %v457 = vpop.f32.mrb[0].mxu0
        %v458 = vadd.f32 0.0, %v457
        %v459 = vpop.f32.mrb[0].mxu0
        %460 = vmatprep.mubr.f32.mxu0 0.0
        %461 = vmatmul.mubr.f32.gmra.mrb[0].mxu0 %v291
        %v462 = vpop.f32.mrb[0].mxu0
        %v463 = vadd.f32 0.0, %v462
        %v464 = vpop.f32.mrb[0].mxu0
        %465 = vmatprep.mubr.f32.mxu0 0.0
        %466 = vmatmul.mubr.f32.gmra.mrb[0].mxu0 %v294
        %v467 = vpop.f32.mrb[0].mxu0
        %v468 = vadd.f32 0.0, %v467
        %v469 = vpop.f32.mrb[0].mxu0
        %470 = vmatprep.mubr.f32.mxu0 0.0
        %471 = vmatmul.mubr.f32.gmra.mrb[0].mxu0 %v297
        %v472 = vpop.f32.mrb[0].mxu0
        %v473 = vadd.f32 0.0, %v472
        %v474 = vpop.f32.mrb[0].mxu0
        %475 = vmatprep.mubr.f32.mxu0 0.0
        %476 = vmatmul.mubr.f32.gmra.mrb[0].mxu0 %v300
        %v477 = vpop.f32.mrb[0].mxu0
        %v478 = vadd.f32 0.0, %v477
        %v479 = vpop.f32.mrb[0].mxu0
        %480 = vmatprep.mubr.f32.mxu0 0.0
        %481 = vmatmul.mubr.f32.gmra.mrb[0].mxu0 %v303
        %v482 = vpop.f32.mrb[0].mxu0
        %v483 = vadd.f32 0.0, %v482
        %v484 = vpop.f32.mrb[0].mxu0
        %485 = vmatprep.mubr.f32.mxu0 0.0
        %486 = vmatmul.mubr.f32.gmra.mrb[0].mxu0 %v306
        %v487 = vpop.f32.mrb[0].mxu0
        %v488 = vadd.f32 0.0, %v487
        %v489 = vpop.f32.mrb[0].mxu0
        %490 = vmatprep.mubr.f32.mxu0 0.0
        %491 = vmatmul.mubr.f32.gmra.mrb[0].mxu0 %v309
        %v492 = vpop.f32.mrb[0].mxu0
        %v493 = vadd.f32 0.0, %v492
        %v494 = vpop.f32.mrb[0].mxu0
        %495 = vmatprep.mubr.f32.mxu0 0.0
        %496 = vmatmul.mubr.f32.gmra.mrb[0].mxu0 %v312
        %v497 = vpop.f32.mrb[0].mxu0
        %v498 = vadd.f32 0.0, %v497
        %v499 = vpop.f32.mrb[0].mxu0
        %500 = vmatprep.mubr.f32.mxu0 0.0
        %501 = vmatmul.mubr.f32.gmra.mrb[0].mxu0 %v315
        %v502 = vpop.f32.mrb[0].mxu0
        %v503 = vadd.f32 0.0, %v502
        %v504 = vpop.f32.mrb[0].mxu0
        %505 = vmatprep.mubr.f32.mxu0 0.0
        %506 = vmatmul.mubr.f32.gmra.mrb[0].mxu0 %v318
        %v507 = vpop.f32.mrb[0].mxu0
        %v508 = vadd.f32 0.0, %v507
        %v509 = vpop.f32.mrb[0].mxu0
        %510 = vmatprep.mubr.f32.mxu0 0.0
        %511 = vmatmul.mubr.f32.gmra.mrb[0].mxu0 %v321
        %v512 = vpop.f32.mrb[0].mxu0
        %v513 = vadd.f32 0.0, %v512
        %v514 = vpop.f32.mrb[0].mxu0
        %515 = vmatprep.mubr.f32.mxu0 0.0
        %516 = vmatmul.mubr.f32.gmra.mrb[0].mxu0 %v324
        %v517 = vpop.f32.mrb[0].mxu0
        %v518 = vadd.f32 0.0, %v517
        %v519 = vpop.f32.mrb[0].mxu0
        %520 = vmatprep.mubr.f32.mxu0 0.0
        %521 = vmatmul.mubr.f32.gmra.mrb[0].mxu0 %v327
        %v522 = vpop.f32.mrb[0].mxu0
        %v523 = vadd.f32 0.0, %v522
        %v524 = vpop.f32.mrb[0].mxu0
        %525 = vmatprep.mubr.f32.mxu0 0.0
        %526 = vmatmul.mubr.f32.gmra.mrb[0].mxu0 %v330
        %v527 = vpop.f32.mrb[0].mxu0
        %v528 = vadd.f32 0.0, %v527
        %v529 = vpop.f32.mrb[0].mxu0
        %530 = vmatprep.mubr.f32.mxu0 0.0
        %531 = vmatmul.mubr.f32.gmra.mrb[0].mxu0 %v333
        %v532 = vpop.f32.mrb[0].mxu0
        %v533 = vadd.f32 0.0, %v532
        %v534 = vpop.f32.mrb[0].mxu0
        %535 = vmatprep.mubr.f32.mxu0 0.0
        %536 = vmatmul.mubr.f32.gmra.mrb[0].mxu0 %v336
        %v537 = vpop.f32.mrb[0].mxu0
        %v538 = vadd.f32 0.0, %v537
        %v539 = vpop.f32.mrb[0].mxu0
        %540 = vmatprep.mubr.f32.mxu0 0.0
        %541 = vmatmul.mubr.f32.gmra.mrb[0].mxu0 %v339
        %v542 = vpop.f32.mrb[0].mxu0
        %v543 = vadd.f32 0.0, %v542
        %v544 = vpop.f32.mrb[0].mxu0
        %545 = vmatprep.mubr.f32.mxu0 0.0
        %546 = vmatmul.mubr.f32.gmra.mrb[0].mxu0 %v342
        %v547 = vpop.f32.mrb[0].mxu0
        %v548 = vadd.f32 0.0, %v547
        %v549 = vpop.f32.mrb[0].mxu0
        %550 = vmatprep.mubr.f32.mxu0 0.0
        %551 = vmatmul.mubr.f32.gmra.mrb[0].mxu0 %v345
        %v552 = vpop.f32.mrb[0].mxu0
        %v553 = vadd.f32 0.0, %v552
        %v554 = vpop.f32.mrb[0].mxu0
        %555 = vmatprep.mubr.f32.mxu0 0.0
        %556 = vmatmul.mubr.f32.gmra.mrb[0].mxu0 %v348
        %v557 = vpop.f32.mrb[0].mxu0
        %v558 = vadd.f32 0.0, %v557
        %v559 = vpop.f32.mrb[0].mxu0
        %560 = vmatprep.mubr.f32.mxu0 0.0
        %561 = vmatmul.mubr.f32.gmra.mrb[0].mxu0 %v351
        %v562 = vpop.f32.mrb[0].mxu0
        %v563 = vadd.f32 0.0, %v562
        %v564 = vpop.f32.mrb[0].mxu0
        %565 = vmatprep.mubr.f32.mxu0 0.0
        %566 = vmatmul.mubr.f32.gmra.mrb[0].mxu0 %v354
        %v567 = vpop.f32.mrb[0].mxu0
        %v568 = vadd.f32 0.0, %v567
        %v569 = vpop.f32.mrb[0].mxu0
        %570 = vmatprep.mubr.f32.mxu0 0.0
        %571 = vmatmul.mubr.f32.gmra.mrb[0].mxu0 %v357
        %v572 = vpop.f32.mrb[0].mxu0
        %v573 = vadd.f32 0.0, %v572
        %v574 = vpop.f32.mrb[0].mxu0
        %575 = vmatprep.mubr.f32.mxu0 0.0
        %576 = vmatmul.mubr.f32.gmra.mrb[0].mxu0 %v360
        %v577 = vpop.f32.mrb[0].mxu0
        %v578 = vadd.f32 0.0, %v577
        %v579 = vpop.f32.mrb[0].mxu0
        %580 = vmatprep.mubr.f32.mxu0 0.0
        %581 = vmatmul.mubr.f32.gmra.mrb[0].mxu0 %v363
        %v582 = vpop.f32.mrb[0].mxu0
        %v583 = vadd.f32 0.0, %v582
        %v584 = vpop.f32.mrb[0].mxu0
        %585 = vmatprep.mubr.f32.mxu0 0.0
        %586 = vmatmul.mubr.f32.gmra.mrb[0].mxu0 %v366
        %v587 = vpop.f32.mrb[0].mxu0
        %v588 = vadd.f32 0.0, %v587
        %v589 = vpop.f32.mrb[0].mxu0
        %590 = vmatprep.mubr.f32.mxu0 0.0
        %591 = vmatmul.mubr.f32.gmra.mrb[0].mxu0 %v369
        %v592 = vpop.f32.mrb[0].mxu0
        %v593 = vadd.f32 0.0, %v592
        %v594 = vpop.f32.mrb[0].mxu0
        %595 = vdwg.mxu0
        %vm596 = vcmask 64512
        %v597 = vsel %vm596, %v438, 0.0
        %v598 = vsel %vm596, %v443, 0.0
        %v599 = vadd.f32 %v597, %v598
        %v600 = vsel %vm596, %v448, 0.0
        %v601 = vadd.f32 %v599, %v600
        %v602 = vsel %vm596, %v453, 0.0
        %v603 = vadd.f32 %v601, %v602
        %v604 = vsel %vm596, %v458, 0.0
        %v605 = vadd.f32 %v603, %v604
        %v606 = vsel %vm596, %v463, 0.0
        %v607 = vadd.f32 %v605, %v606
        %v608 = vsel %vm596, %v468, 0.0
        %v609 = vadd.f32 %v607, %v608
        %v610 = vsel %vm596, %v473, 0.0
        %v611 = vadd.f32 %v609, %v610
        %v612 = vsel %vm596, %v478, 0.0
        %v613 = vadd.f32 %v611, %v612
        %v614 = vsel %vm596, %v483, 0.0
        %v615 = vadd.f32 %v613, %v614
        %v616 = vsel %vm596, %v488, 0.0
        %v617 = vadd.f32 %v615, %v616
        %v618 = vsel %vm596, %v493, 0.0
        %v619 = vadd.f32 %v617, %v618
        %v620 = vsel %vm596, %v498, 0.0
        %v621 = vadd.f32 %v619, %v620
        %v622 = vsel %vm596, %v503, 0.0
        %v623 = vadd.f32 %v621, %v622
        %v624 = vsel %vm596, %v508, 0.0
        %v625 = vadd.f32 %v623, %v624
        %v626 = vsel %vm596, %v513, 0.0
        %v627 = vadd.f32 %v625, %v626
        %v628 = vsel %vm596, %v518, 0.0
        %v629 = vadd.f32 %v627, %v628
        %v630 = vsel %vm596, %v523, 0.0
        %v631 = vadd.f32 %v629, %v630
        %v632 = vsel %vm596, %v528, 0.0
        %v633 = vadd.f32 %v631, %v632
        %v634 = vsel %vm596, %v533, 0.0
        %v635 = vadd.f32 %v633, %v634
        %v636 = vsel %vm596, %v538, 0.0
        %v637 = vadd.f32 %v635, %v636
        %v638 = vsel %vm596, %v543, 0.0
        %v639 = vadd.f32 %v637, %v638
        %v640 = vsel %vm596, %v548, 0.0
        %v641 = vadd.f32 %v639, %v640
        %v642 = vsel %vm596, %v553, 0.0
        %v643 = vadd.f32 %v641, %v642
        %v644 = vsel %vm596, %v558, 0.0
        %v645 = vadd.f32 %v643, %v644
        %v646 = vsel %vm596, %v563, 0.0
        %v647 = vadd.f32 %v645, %v646
        %v648 = vsel %vm596, %v568, 0.0
        %v649 = vadd.f32 %v647, %v648
        %v650 = vsel %vm596, %v573, 0.0
        %v651 = vadd.f32 %v649, %v650
        %v652 = vsel %vm596, %v578, 0.0
        %v653 = vadd.f32 %v651, %v652
        %v654 = vsel %vm596, %v583, 0.0
        %v655 = vadd.f32 %v653, %v654
        %v656 = vsel %vm596, %v588, 0.0
        %v657 = vadd.f32 %v655, %v656
        %v658 = vsel %vm596, %v593, 0.0
        %v659 = vadd.f32 %v657, %v658
        %v660 = vrot.slane %v659, 4
        %v661 = vadd.f32 %v659, %v660
        %v662 = vrot.slane %v661, 2
        %v663 = vadd.f32 %v661, %v662
        %v664 = vrot.slane %v663, 1
        %v665 = vadd.f32 %v663, %v664
        %vm666 = vcmask 57344
        %667 = vst.msk [vmem:[%s236] sm:$0x1] %vm666, %v665
        %v668 = vmul.f32 %v438, %v438
        %v669 = vmul.f32 %v443, %v443
        %v670 = vmul.f32 %v448, %v448
        %v671 = vmul.f32 %v453, %v453
        %v672 = vmul.f32 %v458, %v458
        %v673 = vmul.f32 %v463, %v463
        %v674 = vmul.f32 %v468, %v468
        %v675 = vmul.f32 %v473, %v473
        %v676 = vmul.f32 %v478, %v478
        %v677 = vmul.f32 %v483, %v483
        %v678 = vmul.f32 %v488, %v488
        %v679 = vmul.f32 %v493, %v493
        %v680 = vmul.f32 %v498, %v498
        %v681 = vmul.f32 %v503, %v503
        %v682 = vmul.f32 %v508, %v508
        %v683 = vmul.f32 %v513, %v513
        %v684 = vmul.f32 %v518, %v518
        %v685 = vmul.f32 %v523, %v523
        %v686 = vmul.f32 %v528, %v528
        %v687 = vmul.f32 %v533, %v533
        %v688 = vmul.f32 %v538, %v538
        %v689 = vmul.f32 %v543, %v543
        %v690 = vmul.f32 %v548, %v548
        %v691 = vmul.f32 %v553, %v553
        %v692 = vmul.f32 %v558, %v558
        %v693 = vmul.f32 %v563, %v563
        %v694 = vmul.f32 %v568, %v568
        %v695 = vmul.f32 %v573, %v573
        %v696 = vmul.f32 %v578, %v578
        %v697 = vmul.f32 %v583, %v583
        %v698 = vmul.f32 %v588, %v588
        %v699 = vmul.f32 %v593, %v593
        %v700 = vsel %vm596, %v668, 0.0
        %v701 = vsel %vm596, %v669, 0.0
        %v702 = vadd.f32 %v700, %v701
        %v703 = vsel %vm596, %v670, 0.0
        %v704 = vadd.f32 %v702, %v703
        %v705 = vsel %vm596, %v671, 0.0
        %v706 = vadd.f32 %v704, %v705
        %v707 = vsel %vm596, %v672, 0.0
        %v708 = vadd.f32 %v706, %v707
        %v709 = vsel %vm596, %v673, 0.0
        %v710 = vadd.f32 %v708, %v709
        %v711 = vsel %vm596, %v674, 0.0
        %v712 = vadd.f32 %v710, %v711
        %v713 = vsel %vm596, %v675, 0.0
        %v714 = vadd.f32 %v712, %v713
        %v715 = vsel %vm596, %v676, 0.0
        %v716 = vadd.f32 %v714, %v715
        %v717 = vsel %vm596, %v677, 0.0
        %v718 = vadd.f32 %v716, %v717
        %v719 = vsel %vm596, %v678, 0.0
        %v720 = vadd.f32 %v718, %v719
        %v721 = vsel %vm596, %v679, 0.0
        %v722 = vadd.f32 %v720, %v721
        %v723 = vsel %vm596, %v680, 0.0
        %v724 = vadd.f32 %v722, %v723
        %v725 = vsel %vm596, %v681, 0.0
        %v726 = vadd.f32 %v724, %v725
        %v727 = vsel %vm596, %v682, 0.0
        %v728 = vadd.f32 %v726, %v727
        %v729 = vsel %vm596, %v683, 0.0
        %v730 = vadd.f32 %v728, %v729
        %v731 = vsel %vm596, %v684, 0.0
        %v732 = vadd.f32 %v730, %v731
        %v733 = vsel %vm596, %v685, 0.0
        %v734 = vadd.f32 %v732, %v733
        %v735 = vsel %vm596, %v686, 0.0
        %v736 = vadd.f32 %v734, %v735
        %v737 = vsel %vm596, %v687, 0.0
        %v738 = vadd.f32 %v736, %v737
        %v739 = vsel %vm596, %v688, 0.0
        %v740 = vadd.f32 %v738, %v739
        %v741 = vsel %vm596, %v689, 0.0
        %v742 = vadd.f32 %v740, %v741
        %v743 = vsel %vm596, %v690, 0.0
        %v744 = vadd.f32 %v742, %v743
        %v745 = vsel %vm596, %v691, 0.0
        %v746 = vadd.f32 %v744, %v745
        %v747 = vsel %vm596, %v692, 0.0
        %v748 = vadd.f32 %v746, %v747
        %v749 = vsel %vm596, %v693, 0.0
        %v750 = vadd.f32 %v748, %v749
        %v751 = vsel %vm596, %v694, 0.0
        %v752 = vadd.f32 %v750, %v751
        %v753 = vsel %vm596, %v695, 0.0
        %v754 = vadd.f32 %v752, %v753
        %v755 = vsel %vm596, %v696, 0.0
        %v756 = vadd.f32 %v754, %v755
        %v757 = vsel %vm596, %v697, 0.0
        %v758 = vadd.f32 %v756, %v757
        %v759 = vsel %vm596, %v698, 0.0
        %v760 = vadd.f32 %v758, %v759
        %v761 = vsel %vm596, %v699, 0.0
        %v762 = vadd.f32 %v760, %v761
        %v763 = vrot.slane %v762, 4
        %v764 = vadd.f32 %v762, %v763
        %v765 = vrot.slane %v764, 2
        %v766 = vadd.f32 %v764, %v765
        %v767 = vrot.slane %v766, 1
        %v768 = vadd.f32 %v766, %v767
        %769 = vst.msk [vmem:[%s236 + $0x1] sm:$0x1] %vm666, %v768
        %770 = vst.msk [vmem:[%s230] sm:$0xff] %vm596, %v438
        %771 = vst.msk [vmem:[%s230 + $0x8] sm:$0xff] %vm596, %v443
        %772 = vst.msk [vmem:[%s230 + $0x10] sm:$0xff] %vm596, %v448
        %773 = vst.msk [vmem:[%s230 + $0x18] sm:$0xff] %vm596, %v453
        %774 = vst.msk [vmem:[%s230 + $0x20] sm:$0xff] %vm596, %v458
        %775 = vst.msk [vmem:[%s230 + $0x28] sm:$0xff] %vm596, %v463
        %776 = vst.msk [vmem:[%s230 + $0x30] sm:$0xff] %vm596, %v468
        %777 = vst.msk [vmem:[%s230 + $0x38] sm:$0xff] %vm596, %v473
        %778 = vst.msk [vmem:[%s230 + $0x40] sm:$0xff] %vm596, %v478
        %779 = vst.msk [vmem:[%s230 + $0x48] sm:$0xff] %vm596, %v483
        %780 = vst.msk [vmem:[%s230 + $0x50] sm:$0xff] %vm596, %v488
        %781 = vst.msk [vmem:[%s230 + $0x58] sm:$0xff] %vm596, %v493
        %782 = vst.msk [vmem:[%s230 + $0x60] sm:$0xff] %vm596, %v498
        %783 = vst.msk [vmem:[%s230 + $0x68] sm:$0xff] %vm596, %v503
        %784 = vst.msk [vmem:[%s230 + $0x70] sm:$0xff] %vm596, %v508
        %785 = vst.msk [vmem:[%s230 + $0x78] sm:$0xff] %vm596, %v513
        %786 = vst.msk [vmem:[%s230 + $0x80] sm:$0xff] %vm596, %v518
        %787 = vst.msk [vmem:[%s230 + $0x88] sm:$0xff] %vm596, %v523
        %788 = vst.msk [vmem:[%s230 + $0x90] sm:$0xff] %vm596, %v528
        %789 = vst.msk [vmem:[%s230 + $0x98] sm:$0xff] %vm596, %v533
        %790 = vst.msk [vmem:[%s230 + $0xa0] sm:$0xff] %vm596, %v538
        %791 = vst.msk [vmem:[%s230 + $0xa8] sm:$0xff] %vm596, %v543
        %792 = vst.msk [vmem:[%s230 + $0xb0] sm:$0xff] %vm596, %v548
        %793 = vst.msk [vmem:[%s230 + $0xb8] sm:$0xff] %vm596, %v553
        %794 = vst.msk [vmem:[%s230 + $0xc0] sm:$0xff] %vm596, %v558
        %795 = vst.msk [vmem:[%s230 + $0xc8] sm:$0xff] %vm596, %v563
        %796 = vst.msk [vmem:[%s230 + $0xd0] sm:$0xff] %vm596, %v568
        %797 = vst.msk [vmem:[%s230 + $0xd8] sm:$0xff] %vm596, %v573
        %798 = vst.msk [vmem:[%s230 + $0xe0] sm:$0xff] %vm596, %v578
        %799 = vst.msk [vmem:[%s230 + $0xe8] sm:$0xff] %vm596, %v583
        %800 = vst.msk [vmem:[%s230 + $0xf0] sm:$0xff] %vm596, %v588
        %801 = vst.msk [vmem:[%s230 + $0xf8] sm:$0xff] %vm596, %v593
        %s802 = smul.u32 16, %s23
        %p803 = scmp.lt.s32.totalorder %s22, 1
        %s804 = scalar_select %p803, %s22, 1
        %p805 = scmp.lt.s32.totalorder %s802, 15
        %s806 = scalar_select %p805, %s802, 15
        %s807 = smul.addr %s806, 2
        %s808 = smul.addr %s804, 32
        %s809 = sadd.s32 %s807, %s808
        %s810 = smul.addr %s809, 8
        %s811 = scalar_lea.vmem %s2, %s810
        %s812 = sadd.s32 %s22, %s23
        %p813 = scmp.lt.s32.totalorder %s812, 1
        %s814 = scalar_select %p813, %s812, 1
        %s815 = smul.addr %s814, 2
        %s816 = scalar_lea.vmem %s3, %s815
        // Predicated region
        $region33: #{_bottleneck_impl.4} parent=27 // pred_check
          %p817 = pneg %p99
        $region34: #{_bottleneck_impl.4} parent=27 // pred_check_branch
          %819 = sbr.rel (%p817) target = $region36
        $region35: #{_bottleneck_impl.4} parent=27 // pred_region
          %s820 = smul.u32 16, %s23
        $region36: #{_bottleneck_impl.4} parent=27 // pred_fallthru
          _
        // Predicated region
        $region37: #{_bottleneck_impl.4} parent=27 // pred_check
          %p821 = pneg %p127
        $region38: #{_bottleneck_impl.4} parent=27 // pred_check_branch
          %823 = sbr.rel (%p821) target = $region40
        $region39: #{_bottleneck_impl.4} parent=27 // pred_region
          %s824 = sadd.s32 %s22, %s23
        $region40: #{_bottleneck_impl.4} parent=27 // pred_fallthru
          _
      $region28: #{_bottleneck_impl.4} parent=5 // pred_fallthru
        _
      %p825 = scmp.le.s32.totalorder 2, %s13
      // Predicated region
      $region41: #{_bottleneck_impl.4} parent=5 // pred_check
        %p826 = pneg %p825
      $region42: #{_bottleneck_impl.4} parent=5 // pred_check_branch
        %828 = sbr.rel (%p826) target = $region44
      $region43: #{_bottleneck_impl.4} parent=5 // pred_region
        %s829 = ssub.s32 %s13, 2
        // Predicated region
        $region45: #{_bottleneck_impl.4} parent=43 // pred_check
          %p830 = pneg %p105
        $region46: #{_bottleneck_impl.4} parent=43 // pred_check_branch
          %832 = sbr.rel (%p830) target = $region48
        $region47: #{_bottleneck_impl.4} parent=43 // pred_region
          %s833 = smul.u32 16, %s25
          %p834 = scmp.lt.s32.totalorder %s24, 1
          %s835 = scalar_select %p834, %s24, 1
          %p836 = scmp.lt.s32.totalorder %s833, 15
          %s837 = scalar_select %p836, %s833, 15
          %s838 = smul.addr %s837, 2
          %s839 = smul.addr %s835, 32
          %s840 = sadd.s32 %s838, %s839
          %s841 = smul.addr %s840, 8
          %s842 = scalar_lea.vmem %s2, %s841
        $region48: #{_bottleneck_impl.4} parent=43 // pred_fallthru
          _
        // Predicated region
        $region49: #{_bottleneck_impl.4} parent=43 // pred_check
          %p843 = pneg %p133
        $region50: #{_bottleneck_impl.4} parent=43 // pred_check_branch
          %845 = sbr.rel (%p843) target = $region52
        $region51: #{_bottleneck_impl.4} parent=43 // pred_region
          %s846 = sadd.s32 %s24, %s25
          %p847 = scmp.lt.s32.totalorder %s846, 1
          %s848 = scalar_select %p847, %s846, 1
          %s849 = smul.addr %s848, 2
          %s850 = scalar_lea.vmem %s3, %s849
        $region52: #{_bottleneck_impl.4} parent=43 // pred_fallthru
          _
      $region44: #{_bottleneck_impl.4} parent=5 // pred_fallthru
        _
    $region6: #{_bottleneck_impl.4} parent=1 // loop_footer
      %s17 = sadd.s32 1, %s13
    $region7: #{_bottleneck_impl.4} parent=1 // loop_footer_branch
      %12 = sbr.rel target = $region3
    $region8: #{_bottleneck_impl.4} parent=1 // loop_exit
      _
    %851 = vsyncpa [#allocation3], 1
    %s852 = scalar_lea.sflag [#allocation3], 1
    %853 = vsyncpa %s852, 1

// kernel: _bottleneck_impl.6
$region0: #{_bottleneck_impl.6}
  #allocation0 [shape = 'u32[]', space=smem, size = 0x4, offset = 0x4, fixed_abs, tag = 'smem constant byte address 0x4 - core index']
  #allocation1 [shape = 'u32[144,128]{1,0:T(1,128)}', space=vmem, size = 0x12000, scoped, tag = 'internal scratch']
  %s0 = inlined_call_operand.vmem [shape: f32[2,16,16,8], index: 0, kind: input, shape index: {}]
  %s1 = inlined_call_operand.vmem [shape: f32[1,8], index: 1, kind: input, shape index: {}]
  %s2 = inlined_call_operand.vmem [shape: f32[1,8], index: 2, kind: input, shape index: {}]
  %s3 = inlined_call_operand.vmem [shape: f32[8,32], index: 3, kind: input, shape index: {}]
  %s4 = inlined_call_operand.vmem [shape: f32[2,16,16,32], index: 4, kind: output, shape index: {0}]
  %s5 = inlined_call_operand.vmem [shape: f32[2,2,32], index: 5, kind: output, shape index: {1}]
  %6 = xla_tuple %s4, %s5
  %s7 = sld [smem:[#allocation0]]
  $region57: #{_bottleneck_impl.6} parent=0
    _
  %s9 = ssub.s32 1, %s7
  %s10 = scalar_select 0, %s9, %s7
  loop: start=0, step=1, limit=4
  $region2: #{_bottleneck_impl.6} parent=0 // loop_pre_header
    _
  $region3: #{_bottleneck_impl.6} parent=0 // loop_header
    %s12 = sphi 0, %s16
    %p13 = scmp.ge.s32.totalorder %s12, 4
    %s19 = sphi 0, %s31
    %s20 = sphi 0, %s27
    %s21 = sphi 0, %s19
    %s22 = sphi 0, %s20
    %s23 = sphi 0, %s21
    %s24 = sphi 0, %s22
    %s36 = sphi 0, %s38
    %s39 = sphi 0, %s36
    %s40 = sphi 0, %s39
    %s56 = sphi 0, %s40
    %s60 = sphi 0, %s60
    %s62 = sphi 0, %s60
    %s63 = sphi 0, %s62
    %s77 = sphi 0, %s63
    %s81 = sphi 0, %s81
    %s83 = sphi 0, %s81
    %s84 = sphi 0, %s83
    %s98 = sphi 0, %s84
    %s102 = sphi 0, %s102
    %s104 = sphi 0, %s102
    %s105 = sphi 0, %s104
    %s119 = sphi 0, %s105
    %s127 = sphi 0, %s129
    %s130 = sphi 0, %s127
    %s131 = sphi 0, %s130
    %s147 = sphi 0, %s131
    %s155 = sphi 0, %s157
    %s158 = sphi 0, %s155
    %s159 = sphi 0, %s158
    %s175 = sphi 0, %s159
  $region4: #{_bottleneck_impl.6} parent=0 // loop_header_branch
    %15 = sbr.rel (%p13) target = $region8
  $region5: #{_bottleneck_impl.6} parent=0 // loop_body
    %s17 = ssub.s32 %s12, 1
    %s18 = ssub.s32 %s12, 2
    %s25 = sadd.s32 1, %s20
    %p26 = scmp.ge.s32.totalorder %s25, 1
    %s27 = scalar_select %p26, 0, %s25
    %s28 = sadd.s32 1, %s19
    %s29 = scalar_select %p26, %s28, %s19
    %p30 = scmp.ge.s32.totalorder %s29, 2
    %s31 = scalar_select %p30, 0, %s29
    %s32 = ssub.s32 %s19, %s31
    %s33 = ssub.s32 %s20, %s27
    %s34 = sor.u32 %s32, %s33
    %p35 = scmp.eq.s32.totalorder %s34, 0
    %s37 = sadd.s32 %s36, 1
    %s38 = scalar_select %p35, %s36, %s37
    %p41 = pneg %p35
    %p42 = scmp.eq.s32.totalorder %s12, 1
    %p43 = por %p41, %p42
    %p44 = scmp.ne.s32.totalorder %s36, %s39
    %p45 = scmp.eq.s32.totalorder %s12, 0
    %p46 = por %p44, %p45
    %p47 = scmp.ne.s32.totalorder %s36, %s39
    %p48 = scmp.eq.s32.totalorder %s17, 1
    %p49 = por %p47, %p48
    %p50 = scmp.ne.s32.totalorder %s39, %s40
    %p51 = scmp.eq.s32.totalorder %s17, 0
    %p52 = por %p50, %p51
    %p53 = scmp.ne.s32.totalorder %s39, %s40
    %p54 = scmp.eq.s32.totalorder %s18, 1
    %p55 = por %p53, %p54
    %p57 = scmp.ne.s32.totalorder %s40, %s56
    %p58 = scmp.eq.s32.totalorder %s18, 0
    %p59 = por %p57, %p58
    %s61 = sadd.s32 %s60, 1
    %p64 = scmp.eq.s32.totalorder %s12, 1
    %p65 = scmp.ne.s32.totalorder %s60, %s62
    %p66 = scmp.eq.s32.totalorder %s12, 0
    %p67 = por %p65, %p66
    %p68 = scmp.ne.s32.totalorder %s60, %s62
    %p69 = scmp.eq.s32.totalorder %s17, 1
    %p70 = por %p68, %p69
    %p71 = scmp.ne.s32.totalorder %s62, %s63
    %p72 = scmp.eq.s32.totalorder %s17, 0
    %p73 = por %p71, %p72
    %p74 = scmp.ne.s32.totalorder %s62, %s63
    %p75 = scmp.eq.s32.totalorder %s18, 1
    %p76 = por %p74, %p75
    %p78 = scmp.ne.s32.totalorder %s63, %s77
    %p79 = scmp.eq.s32.totalorder %s18, 0
    %p80 = por %p78, %p79
    %s82 = sadd.s32 %s81, 1
    %p85 = scmp.eq.s32.totalorder %s12, 1
    %p86 = scmp.ne.s32.totalorder %s81, %s83
    %p87 = scmp.eq.s32.totalorder %s12, 0
    %p88 = por %p86, %p87
    %p89 = scmp.ne.s32.totalorder %s81, %s83
    %p90 = scmp.eq.s32.totalorder %s17, 1
    %p91 = por %p89, %p90
    %p92 = scmp.ne.s32.totalorder %s83, %s84
    %p93 = scmp.eq.s32.totalorder %s17, 0
    %p94 = por %p92, %p93
    %p95 = scmp.ne.s32.totalorder %s83, %s84
    %p96 = scmp.eq.s32.totalorder %s18, 1
    %p97 = por %p95, %p96
    %p99 = scmp.ne.s32.totalorder %s84, %s98
    %p100 = scmp.eq.s32.totalorder %s18, 0
    %p101 = por %p99, %p100
    %s103 = sadd.s32 %s102, 1
    %p106 = scmp.eq.s32.totalorder %s12, 1
    %p107 = scmp.ne.s32.totalorder %s102, %s104
    %p108 = scmp.eq.s32.totalorder %s12, 0
    %p109 = por %p107, %p108
    %p110 = scmp.ne.s32.totalorder %s102, %s104
    %p111 = scmp.eq.s32.totalorder %s17, 1
    %p112 = por %p110, %p111
    %p113 = scmp.ne.s32.totalorder %s104, %s105
    %p114 = scmp.eq.s32.totalorder %s17, 0
    %p115 = por %p113, %p114
    %p116 = scmp.ne.s32.totalorder %s104, %s105
    %p117 = scmp.eq.s32.totalorder %s18, 1
    %p118 = por %p116, %p117
    %p120 = scmp.ne.s32.totalorder %s105, %s119
    %p121 = scmp.eq.s32.totalorder %s18, 0
    %p122 = por %p120, %p121
    %s123 = ssub.s32 %s19, %s31
    %s124 = ssub.s32 %s20, %s27
    %s125 = sor.u32 %s123, %s124
    %p126 = scmp.eq.s32.totalorder %s125, 0
    %s128 = sadd.s32 %s127, 1
    %s129 = scalar_select %p126, %s127, %s128
    %p132 = pneg %p126
    %p133 = scmp.eq.s32.totalorder %s12, 1
    %p134 = por %p132, %p133
    %p135 = scmp.ne.s32.totalorder %s127, %s130
    %p136 = scmp.eq.s32.totalorder %s12, 0
    %p137 = por %p135, %p136
    %p138 = scmp.ne.s32.totalorder %s127, %s130
    %p139 = scmp.eq.s32.totalorder %s17, 1
    %p140 = por %p138, %p139
    %p141 = scmp.ne.s32.totalorder %s130, %s131
    %p142 = scmp.eq.s32.totalorder %s17, 0
    %p143 = por %p141, %p142
    %p144 = scmp.ne.s32.totalorder %s130, %s131
    %p145 = scmp.eq.s32.totalorder %s18, 1
    %p146 = por %p144, %p145
    %p148 = scmp.ne.s32.totalorder %s131, %s147
    %p149 = scmp.eq.s32.totalorder %s18, 0
    %p150 = por %p148, %p149
    %s151 = sadd.s32 %s19, %s20
    %s152 = sadd.s32 %s31, %s27
    %s153 = ssub.s32 %s151, %s152
    %p154 = scmp.eq.s32.totalorder %s153, 0
    %s156 = sadd.s32 %s155, 1
    %s157 = scalar_select %p154, %s155, %s156
    %p160 = pneg %p154
    %p161 = scmp.eq.s32.totalorder %s12, 1
    %p162 = por %p160, %p161
    %p163 = scmp.ne.s32.totalorder %s155, %s158
    %p164 = scmp.eq.s32.totalorder %s12, 0
    %p165 = por %p163, %p164
    %p166 = scmp.ne.s32.totalorder %s155, %s158
    %p167 = scmp.eq.s32.totalorder %s17, 1
    %p168 = por %p166, %p167
    %p169 = scmp.ne.s32.totalorder %s158, %s159
    %p170 = scmp.eq.s32.totalorder %s17, 0
    %p171 = por %p169, %p170
    %p172 = scmp.ne.s32.totalorder %s158, %s159
    %p173 = scmp.eq.s32.totalorder %s18, 1
    %p174 = por %p172, %p173
    %p176 = scmp.ne.s32.totalorder %s159, %s175
    %p177 = scmp.eq.s32.totalorder %s18, 0
    %p178 = por %p176, %p177
    %p179 = scmp.le.s32.totalorder 1, %s12
    %p180 = scmp.lt.s32.totalorder %s12, 3
    %p181 = pnand %p179, %p180
    %p182 = pneg %p181
    // Predicated region
    $region9: #{_bottleneck_impl.6} parent=5 // pred_check
      _
    $region10: #{_bottleneck_impl.6} parent=5 // pred_check_branch
      %184 = sbr.rel (%p181) target = $region12
    $region11: #{_bottleneck_impl.6} parent=5 // pred_region
      %s185 = ssub.s32 %s12, 1
      // Predicated region
      $region13: #{_bottleneck_impl.6} parent=11 // pred_check
        %p186 = pneg %p73
      $region14: #{_bottleneck_impl.6} parent=11 // pred_check_branch
        %188 = sbr.rel (%p186) target = $region16
      $region15: #{_bottleneck_impl.6} parent=11 // pred_region
        _
      $region16: #{_bottleneck_impl.6} parent=11 // pred_fallthru
        _
      // Predicated region
      $region17: #{_bottleneck_impl.6} parent=11 // pred_check
        %p189 = pneg %p94
      $region18: #{_bottleneck_impl.6} parent=11 // pred_check_branch
        %191 = sbr.rel (%p189) target = $region20
      $region19: #{_bottleneck_impl.6} parent=11 // pred_region
        _
      $region20: #{_bottleneck_impl.6} parent=11 // pred_fallthru
        _
      // Predicated region
      $region21: #{_bottleneck_impl.6} parent=11 // pred_check
        %p192 = pneg %p115
      $region22: #{_bottleneck_impl.6} parent=11 // pred_check_branch
        %194 = sbr.rel (%p192) target = $region24
      $region23: #{_bottleneck_impl.6} parent=11 // pred_region
        _
      $region24: #{_bottleneck_impl.6} parent=11 // pred_fallthru
        _
    $region12: #{_bottleneck_impl.6} parent=5 // pred_fallthru
      _
    %p195 = scmp.lt.s32.totalorder %s12, 2
    // Predicated region
    $region25: #{_bottleneck_impl.6} parent=5 // pred_check
      %p196 = pneg %p195
    $region26: #{_bottleneck_impl.6} parent=5 // pred_check_branch
      %198 = sbr.rel (%p196) target = $region28
    $region27: #{_bottleneck_impl.6} parent=5 // pred_region
      // Predicated region
      $region29: #{_bottleneck_impl.6} parent=27 // pred_check
        %p199 = pneg %p46
      $region30: #{_bottleneck_impl.6} parent=27 // pred_check_branch
        %201 = sbr.rel (%p199) target = $region32
      $region31: #{_bottleneck_impl.6} parent=27 // pred_region
        %s202 = smul.u32 16, %s20
        %p203 = scmp.lt.s32.totalorder %s19, 1
        %s204 = scalar_select %p203, %s19, 1
        %p205 = scmp.lt.s32.totalorder %s202, 15
        %s206 = scalar_select %p205, %s202, 15
        %s207 = smul.addr %s206, 2
        %s208 = smul.addr %s204, 32
        %s209 = sadd.s32 %s207, %s208
        %s210 = smul.addr %s209, 8
        %s211 = scalar_lea.vmem %s0, %s210
        %s212 = smul.u32 16, %s20
      $region32: #{_bottleneck_impl.6} parent=27 // pred_fallthru
        _
    $region28: #{_bottleneck_impl.6} parent=5 // pred_fallthru
      _
    %p213 = scmp.le.s32.totalorder 1, %s12
    %p214 = scmp.lt.s32.totalorder %s12, 3
    %p215 = pnand %p213, %p214
    %p216 = pneg %p215
    // Predicated region
    $region33: #{_bottleneck_impl.6} parent=5 // pred_check
      _
    $region34: #{_bottleneck_impl.6} parent=5 // pred_check_branch
      %218 = sbr.rel (%p215) target = $region36
    $region35: #{_bottleneck_impl.6} parent=5 // pred_region
      %s219 = ssub.s32 %s12, 1
      %s220 = smul.u32 16, %s22
      %p221 = scmp.lt.s32.totalorder %s21, 1
      %s222 = scalar_select %p221, %s21, 1
      %p223 = scmp.lt.s32.totalorder %s220, 15
      %s224 = scalar_select %p223, %s220, 15
      %s225 = smul.addr %s224, 2
      %s226 = smul.addr %s222, 32
      %s227 = sadd.s32 %s225, %s226
      %s228 = smul.addr %s227, 8
      %s229 = scalar_lea.vmem %s0, %s228
      %p230 = pneg %p52
      %p231 = pneg %p49
      %p232 = pneg %p73
      %p233 = pneg %p70
      %p234 = pneg %p94
      %p235 = pneg %p91
      %p236 = pneg %p115
      %p237 = pneg %p112
      %p238 = pneg %p143
      %p239 = pneg %p140
      %s240 = smul.u32 16, %s22
      %p241 = scmp.lt.s32.totalorder %s21, 1
      %s242 = scalar_select %p241, %s21, 1
      %p243 = scmp.lt.s32.totalorder %s240, 15
      %s244 = scalar_select %p243, %s240, 15
      %s245 = smul.addr %s244, 2
      %s246 = smul.addr %s242, 32
      %s247 = sadd.s32 %s245, %s246
      %s248 = smul.addr %s247, 8
      %s249 = scalar_lea.vmem %s4, %s248
      %p250 = pneg %p171
      %p251 = pneg %p168
      %s252 = sadd.s32 %s21, %s22
      %p253 = scmp.lt.s32.totalorder %s252, 1
      %s254 = scalar_select %p253, %s252, 1
      %s255 = smul.addr %s254, 2
      %s256 = scalar_lea.vmem %s5, %s255
      %s257 = smul.u32 16, %s22
      %p258 = scmp.lt.s32.totalorder %s21, 1
      %s259 = scalar_select %p258, %s21, 1
      %p260 = scmp.lt.s32.totalorder %s257, 15
      %s261 = scalar_select %p260, %s257, 15
      %s262 = smul.addr %s261, 2
      %s263 = smul.addr %s259, 32
      %s264 = sadd.s32 %s262, %s263
      %s265 = smul.addr %s264, 8
      %s266 = scalar_lea.vmem %s0, %s265
      %s267 = smul.u32 16, %s22
      %s268 = smul.u32 16, %s22
      %p269 = scmp.lt.s32.totalorder %s21, 1
      %s270 = scalar_select %p269, %s21, 1
      %p271 = scmp.lt.s32.totalorder %s268, 15
      %s272 = scalar_select %p271, %s268, 15
      %s273 = smul.addr %s272, 2
      %s274 = smul.addr %s270, 32
      %s275 = sadd.s32 %s273, %s274
      %s276 = smul.addr %s275, 8
      %s277 = scalar_lea.vmem %s4, %s276
      %s278 = smul.u32 16, %s22
      %s279 = sadd.s32 %s21, %s22
      %p280 = scmp.lt.s32.totalorder %s279, 1
      %s281 = scalar_select %p280, %s279, 1
      %s282 = smul.addr %s281, 2
      %s283 = scalar_lea.vmem %s5, %s282
      %s284 = sadd.s32 %s21, %s22
      %v285 = vld [vmem:[%s266] sm:$0xff]
      %v286 = vld [vmem:[%s266 + $0x8] sm:$0xff]
      %v287 = vld [vmem:[%s266 + $0x10] sm:$0xff]
      %v288 = vld [vmem:[%s266 + $0x18] sm:$0xff]
      %v289 = vld [vmem:[%s266 + $0x20] sm:$0xff]
      %v290 = vld [vmem:[%s266 + $0x28] sm:$0xff]
      %v291 = vld [vmem:[%s266 + $0x30] sm:$0xff]
      %v292 = vld [vmem:[%s266 + $0x38] sm:$0xff]
      %v293 = vld [vmem:[%s266 + $0x40] sm:$0xff]
      %v294 = vld [vmem:[%s266 + $0x48] sm:$0xff]
      %v295 = vld [vmem:[%s266 + $0x50] sm:$0xff]
      %v296 = vld [vmem:[%s266 + $0x58] sm:$0xff]
      %v297 = vld [vmem:[%s266 + $0x60] sm:$0xff]
      %v298 = vld [vmem:[%s266 + $0x68] sm:$0xff]
      %v299 = vld [vmem:[%s266 + $0x70] sm:$0xff]
      %v300 = vld [vmem:[%s266 + $0x78] sm:$0xff]
      %v301 = vld [vmem:[%s266 + $0x80] sm:$0xff]
      %v302 = vld [vmem:[%s266 + $0x88] sm:$0xff]
      %v303 = vld [vmem:[%s266 + $0x90] sm:$0xff]
      %v304 = vld [vmem:[%s266 + $0x98] sm:$0xff]
      %v305 = vld [vmem:[%s266 + $0xa0] sm:$0xff]
      %v306 = vld [vmem:[%s266 + $0xa8] sm:$0xff]
      %v307 = vld [vmem:[%s266 + $0xb0] sm:$0xff]
      %v308 = vld [vmem:[%s266 + $0xb8] sm:$0xff]
      %v309 = vld [vmem:[%s266 + $0xc0] sm:$0xff]
      %v310 = vld [vmem:[%s266 + $0xc8] sm:$0xff]
      %v311 = vld [vmem:[%s266 + $0xd0] sm:$0xff]
      %v312 = vld [vmem:[%s266 + $0xd8] sm:$0xff]
      %v313 = vld [vmem:[%s266 + $0xe0] sm:$0xff]
      %v314 = vld [vmem:[%s266 + $0xe8] sm:$0xff]
      %v315 = vld [vmem:[%s266 + $0xf0] sm:$0xff]
      %v316 = vld [vmem:[%s266 + $0xf8] sm:$0xff]
      %v317 = vld [vmem:[%s1] sm:$0x1]
      %v319 = vlaneseq
      %v320 = vshrl.u32 %v319, 7
      %v321 = vsub.s32 0, %v320
      %v322 = vrot.slane %v317, %v321
      %v324 = vmul.f32 %v285, %v322
      %v325 = vmul.f32 %v286, %v322
      %v326 = vmul.f32 %v287, %v322
      %v327 = vmul.f32 %v288, %v322
      %v328 = vmul.f32 %v289, %v322
      %v329 = vmul.f32 %v290, %v322
      %v330 = vmul.f32 %v291, %v322
      %v331 = vmul.f32 %v292, %v322
      %v332 = vmul.f32 %v293, %v322
      %v333 = vmul.f32 %v294, %v322
      %v334 = vmul.f32 %v295, %v322
      %v335 = vmul.f32 %v296, %v322
      %v336 = vmul.f32 %v297, %v322
      %v337 = vmul.f32 %v298, %v322
      %v338 = vmul.f32 %v299, %v322
      %v339 = vmul.f32 %v300, %v322
      %v340 = vmul.f32 %v301, %v322
      %v341 = vmul.f32 %v302, %v322
      %v342 = vmul.f32 %v303, %v322
      %v343 = vmul.f32 %v304, %v322
      %v344 = vmul.f32 %v305, %v322
      %v345 = vmul.f32 %v306, %v322
      %v346 = vmul.f32 %v307, %v322
      %v347 = vmul.f32 %v308, %v322
      %v348 = vmul.f32 %v309, %v322
      %v349 = vmul.f32 %v310, %v322
      %v350 = vmul.f32 %v311, %v322
      %v351 = vmul.f32 %v312, %v322
      %v352 = vmul.f32 %v313, %v322
      %v353 = vmul.f32 %v314, %v322
      %v354 = vmul.f32 %v315, %v322
      %v355 = vmul.f32 %v316, %v322
      %v356 = vld [vmem:[%s2] sm:$0x1]
      %v358 = vlaneseq
      %v359 = vshrl.u32 %v358, 7
      %v360 = vsub.s32 0, %v359
      %v361 = vrot.slane %v356, %v360
      %v363 = vadd.f32 %v324, %v361
      %v364 = vadd.f32 %v325, %v361
      %v365 = vadd.f32 %v326, %v361
      %v366 = vadd.f32 %v327, %v361
      %v367 = vadd.f32 %v328, %v361
      %v368 = vadd.f32 %v329, %v361
      %v369 = vadd.f32 %v330, %v361
      %v370 = vadd.f32 %v331, %v361
      %v371 = vadd.f32 %v332, %v361
      %v372 = vadd.f32 %v333, %v361
      %v373 = vadd.f32 %v334, %v361
      %v374 = vadd.f32 %v335, %v361
      %v375 = vadd.f32 %v336, %v361
      %v376 = vadd.f32 %v337, %v361
      %v377 = vadd.f32 %v338, %v361
      %v378 = vadd.f32 %v339, %v361
      %v379 = vadd.f32 %v340, %v361
      %v380 = vadd.f32 %v341, %v361
      %v381 = vadd.f32 %v342, %v361
      %v382 = vadd.f32 %v343, %v361
      %v383 = vadd.f32 %v344, %v361
      %v384 = vadd.f32 %v345, %v361
      %v385 = vadd.f32 %v346, %v361
      %v386 = vadd.f32 %v347, %v361
      %v387 = vadd.f32 %v348, %v361
      %v388 = vadd.f32 %v349, %v361
      %v389 = vadd.f32 %v350, %v361
      %v390 = vadd.f32 %v351, %v361
      %v391 = vadd.f32 %v352, %v361
      %v392 = vadd.f32 %v353, %v361
      %v393 = vadd.f32 %v354, %v361
      %v394 = vadd.f32 %v355, %v361
      %v395 = vmax.f32 %v363, 0.0
      %v396 = vmax.f32 %v364, 0.0
      %v397 = vmax.f32 %v365, 0.0
      %v398 = vmax.f32 %v366, 0.0
      %v399 = vmax.f32 %v367, 0.0
      %v400 = vmax.f32 %v368, 0.0
      %v401 = vmax.f32 %v369, 0.0
      %v402 = vmax.f32 %v370, 0.0
      %v403 = vmax.f32 %v371, 0.0
      %v404 = vmax.f32 %v372, 0.0
      %v405 = vmax.f32 %v373, 0.0
      %v406 = vmax.f32 %v374, 0.0
      %v407 = vmax.f32 %v375, 0.0
      %v408 = vmax.f32 %v376, 0.0
      %v409 = vmax.f32 %v377, 0.0
      %v410 = vmax.f32 %v378, 0.0
      %v411 = vmax.f32 %v379, 0.0
      %v412 = vmax.f32 %v380, 0.0
      %v413 = vmax.f32 %v381, 0.0
      %v414 = vmax.f32 %v382, 0.0
      %v415 = vmax.f32 %v383, 0.0
      %v416 = vmax.f32 %v384, 0.0
      %v417 = vmax.f32 %v385, 0.0
      %v418 = vmax.f32 %v386, 0.0
      %v419 = vmax.f32 %v387, 0.0
      %v420 = vmax.f32 %v388, 0.0
      %v421 = vmax.f32 %v389, 0.0
      %v422 = vmax.f32 %v390, 0.0
      %v423 = vmax.f32 %v391, 0.0
      %v424 = vmax.f32 %v392, 0.0
      %v425 = vmax.f32 %v393, 0.0
      %v426 = vmax.f32 %v394, 0.0
      %v427 = vld [vmem:[%s3] sm:$0xff]
      %vm428 = vcmask 64512
      %v430 = vsel %vm428, %v395, 0
      %v433 = vsel %vm428, %v396, 0
      %v436 = vsel %vm428, %v397, 0
      %v439 = vsel %vm428, %v398, 0
      %v442 = vsel %vm428, %v399, 0
      %v445 = vsel %vm428, %v400, 0
      %v448 = vsel %vm428, %v401, 0
      %v451 = vsel %vm428, %v402, 0
      %v454 = vsel %vm428, %v403, 0
      %v457 = vsel %vm428, %v404, 0
      %v460 = vsel %vm428, %v405, 0
      %v463 = vsel %vm428, %v406, 0
      %v466 = vsel %vm428, %v407, 0
      %v469 = vsel %vm428, %v408, 0
      %v472 = vsel %vm428, %v409, 0
      %v475 = vsel %vm428, %v410, 0
      %v478 = vsel %vm428, %v411, 0
      %v481 = vsel %vm428, %v412, 0
      %v484 = vsel %vm428, %v413, 0
      %v487 = vsel %vm428, %v414, 0
      %v490 = vsel %vm428, %v415, 0
      %v493 = vsel %vm428, %v416, 0
      %v496 = vsel %vm428, %v417, 0
      %v499 = vsel %vm428, %v418, 0
      %v502 = vsel %vm428, %v419, 0
      %v505 = vsel %vm428, %v420, 0
      %v508 = vsel %vm428, %v421, 0
      %v511 = vsel %vm428, %v422, 0
      %v514 = vsel %vm428, %v423, 0
      %v517 = vsel %vm428, %v424, 0
      %v520 = vsel %vm428, %v425, 0
      %v523 = vsel %vm428, %v426, 0
      %525 = vmatprep.subr.mxu0 0.0
      %526 = vmatpush1.msra.mxu0 %v427
      %527 = vmatprep.subr.mxu0 0.0
      %528 = vmatpush1.msra.mxu0 0.0
      %529 = vmatprep.subr.mxu0 0.0
      %530 = vmatpush1.msra.mxu0 0.0
      %531 = vmatprep.subr.mxu0 0.0
      %532 = vmatpush1.msra.mxu0 0.0
      %533 = vmatprep.subr.mxu0 0.0
      %534 = vmatpush1.msra.mxu0 0.0
      %535 = vmatprep.subr.mxu0 0.0
      %536 = vmatpush1.msra.mxu0 0.0
      %537 = vmatprep.subr.mxu0 0.0
      %538 = vmatpush1.msra.mxu0 0.0
      %539 = vmatprep.subr.mxu0 0.0
      %540 = vmatpush1.msra.mxu0 0.0
      %541 = vmatprep.subr.mxu0 0.0
      %542 = vmatpush1.msra.mxu0 0.0
      %543 = vmatprep.subr.mxu0 0.0
      %544 = vmatpush1.msra.mxu0 0.0
      %545 = vmatprep.subr.mxu0 0.0
      %546 = vmatpush1.msra.mxu0 0.0
      %547 = vmatprep.subr.mxu0 0.0
      %548 = vmatpush1.msra.mxu0 0.0
      %549 = vmatprep.subr.mxu0 0.0
      %550 = vmatpush1.msra.mxu0 0.0
      %551 = vmatprep.subr.mxu0 0.0
      %552 = vmatpush1.msra.mxu0 0.0
      %553 = vmatprep.subr.mxu0 0.0
      %554 = vmatpush1.msra.mxu0 0.0
      %555 = vmatprep.subr.mxu0 0.0
      %556 = vmatpush1.msra.mxu0 0.0
      %557 = vmatprep.subr.mxu0 0.0
      %558 = vmatpush1.msra.mxu0 0.0
      %559 = vmatprep.subr.mxu0 0.0
      %560 = vmatpush1.msra.mxu0 0.0
      %561 = vmatprep.subr.mxu0 0.0
      %562 = vmatpush1.msra.mxu0 0.0
      %563 = vmatprep.subr.mxu0 0.0
      %564 = vmatpush1.msra.mxu0 0.0
      %565 = vmatprep.subr.mxu0 0.0
      %566 = vmatpush1.msra.mxu0 0.0
      %567 = vmatprep.subr.mxu0 0.0
      %568 = vmatpush1.msra.mxu0 0.0
      %569 = vmatprep.subr.mxu0 0.0
      %570 = vmatpush1.msra.mxu0 0.0
      %571 = vmatprep.subr.mxu0 0.0
      %572 = vmatpush1.msra.mxu0 0.0
      %573 = vmatprep.subr.mxu0 0.0
      %574 = vmatpush1.msra.mxu0 0.0
      %575 = vmatprep.subr.mxu0 0.0
      %576 = vmatpush1.msra.mxu0 0.0
      %577 = vmatprep.subr.mxu0 0.0
      %578 = vmatpush1.msra.mxu0 0.0
      %579 = vmatprep.subr.mxu0 0.0
      %580 = vmatpush1.msra.mxu0 0.0
      %581 = vmatprep.subr.mxu0 0.0
      %582 = vmatpush1.msra.mxu0 0.0
      %583 = vmatprep.subr.mxu0 0.0
      %584 = vmatpush1.msra.mxu0 0.0
      %585 = vmatprep.subr.mxu0 0.0
      %586 = vmatpush1.msra.mxu0 0.0
      %587 = vmatprep.subr.mxu0 0.0
      %588 = vmatpush1.msra.mxu0 0.0
      %589 = vmatprep.mubr.f32.mxu0 0.0
      %590 = vmatmul.mubr.f32.gmra.mrb[0].mxu0 %v430
      %v591 = vpop.f32.mrb[0].mxu0
      %v592 = vadd.f32 0.0, %v591
      %v593 = vpop.f32.mrb[0].mxu0
      %594 = vmatprep.mubr.f32.mxu0 0.0
      %595 = vmatmul.mubr.f32.gmra.mrb[0].mxu0 %v433
      %v596 = vpop.f32.mrb[0].mxu0
      %v597 = vadd.f32 0.0, %v596
      %v598 = vpop.f32.mrb[0].mxu0
      %599 = vmatprep.mubr.f32.mxu0 0.0
      %600 = vmatmul.mubr.f32.gmra.mrb[0].mxu0 %v436
      %v601 = vpop.f32.mrb[0].mxu0
      %v602 = vadd.f32 0.0, %v601
      %v603 = vpop.f32.mrb[0].mxu0
      %604 = vmatprep.mubr.f32.mxu0 0.0
      %605 = vmatmul.mubr.f32.gmra.mrb[0].mxu0 %v439
      %v606 = vpop.f32.mrb[0].mxu0
      %v607 = vadd.f32 0.0, %v606
      %v608 = vpop.f32.mrb[0].mxu0
      %609 = vmatprep.mubr.f32.mxu0 0.0
      %610 = vmatmul.mubr.f32.gmra.mrb[0].mxu0 %v442
      %v611 = vpop.f32.mrb[0].mxu0
      %v612 = vadd.f32 0.0, %v611
      %v613 = vpop.f32.mrb[0].mxu0
      %614 = vmatprep.mubr.f32.mxu0 0.0
      %615 = vmatmul.mubr.f32.gmra.mrb[0].mxu0 %v445
      %v616 = vpop.f32.mrb[0].mxu0
      %v617 = vadd.f32 0.0, %v616
      %v618 = vpop.f32.mrb[0].mxu0
      %619 = vmatprep.mubr.f32.mxu0 0.0
      %620 = vmatmul.mubr.f32.gmra.mrb[0].mxu0 %v448
      %v621 = vpop.f32.mrb[0].mxu0
      %v622 = vadd.f32 0.0, %v621
      %v623 = vpop.f32.mrb[0].mxu0
      %624 = vmatprep.mubr.f32.mxu0 0.0
      %625 = vmatmul.mubr.f32.gmra.mrb[0].mxu0 %v451
      %v626 = vpop.f32.mrb[0].mxu0
      %v627 = vadd.f32 0.0, %v626
      %v628 = vpop.f32.mrb[0].mxu0
      %629 = vmatprep.mubr.f32.mxu0 0.0
      %630 = vmatmul.mubr.f32.gmra.mrb[0].mxu0 %v454
      %v631 = vpop.f32.mrb[0].mxu0
      %v632 = vadd.f32 0.0, %v631
      %v633 = vpop.f32.mrb[0].mxu0
      %634 = vmatprep.mubr.f32.mxu0 0.0
      %635 = vmatmul.mubr.f32.gmra.mrb[0].mxu0 %v457
      %v636 = vpop.f32.mrb[0].mxu0
      %v637 = vadd.f32 0.0, %v636
      %v638 = vpop.f32.mrb[0].mxu0
      %639 = vmatprep.mubr.f32.mxu0 0.0
      %640 = vmatmul.mubr.f32.gmra.mrb[0].mxu0 %v460
      %v641 = vpop.f32.mrb[0].mxu0
      %v642 = vadd.f32 0.0, %v641
      %v643 = vpop.f32.mrb[0].mxu0
      %644 = vmatprep.mubr.f32.mxu0 0.0
      %645 = vmatmul.mubr.f32.gmra.mrb[0].mxu0 %v463
      %v646 = vpop.f32.mrb[0].mxu0
      %v647 = vadd.f32 0.0, %v646
      %v648 = vpop.f32.mrb[0].mxu0
      %649 = vmatprep.mubr.f32.mxu0 0.0
      %650 = vmatmul.mubr.f32.gmra.mrb[0].mxu0 %v466
      %v651 = vpop.f32.mrb[0].mxu0
      %v652 = vadd.f32 0.0, %v651
      %v653 = vpop.f32.mrb[0].mxu0
      %654 = vmatprep.mubr.f32.mxu0 0.0
      %655 = vmatmul.mubr.f32.gmra.mrb[0].mxu0 %v469
      %v656 = vpop.f32.mrb[0].mxu0
      %v657 = vadd.f32 0.0, %v656
      %v658 = vpop.f32.mrb[0].mxu0
      %659 = vmatprep.mubr.f32.mxu0 0.0
      %660 = vmatmul.mubr.f32.gmra.mrb[0].mxu0 %v472
      %v661 = vpop.f32.mrb[0].mxu0
      %v662 = vadd.f32 0.0, %v661
      %v663 = vpop.f32.mrb[0].mxu0
      %664 = vmatprep.mubr.f32.mxu0 0.0
      %665 = vmatmul.mubr.f32.gmra.mrb[0].mxu0 %v475
      %v666 = vpop.f32.mrb[0].mxu0
      %v667 = vadd.f32 0.0, %v666
      %v668 = vpop.f32.mrb[0].mxu0
      %669 = vmatprep.mubr.f32.mxu0 0.0
      %670 = vmatmul.mubr.f32.gmra.mrb[0].mxu0 %v478
      %v671 = vpop.f32.mrb[0].mxu0
      %v672 = vadd.f32 0.0, %v671
      %v673 = vpop.f32.mrb[0].mxu0
      %674 = vmatprep.mubr.f32.mxu0 0.0
      %675 = vmatmul.mubr.f32.gmra.mrb[0].mxu0 %v481
      %v676 = vpop.f32.mrb[0].mxu0
      %v677 = vadd.f32 0.0, %v676
      %v678 = vpop.f32.mrb[0].mxu0
      %679 = vmatprep.mubr.f32.mxu0 0.0
      %680 = vmatmul.mubr.f32.gmra.mrb[0].mxu0 %v484
      %v681 = vpop.f32.mrb[0].mxu0
      %v682 = vadd.f32 0.0, %v681
      %v683 = vpop.f32.mrb[0].mxu0
      %684 = vmatprep.mubr.f32.mxu0 0.0
      %685 = vmatmul.mubr.f32.gmra.mrb[0].mxu0 %v487
      %v686 = vpop.f32.mrb[0].mxu0
      %v687 = vadd.f32 0.0, %v686
      %v688 = vpop.f32.mrb[0].mxu0
      %689 = vmatprep.mubr.f32.mxu0 0.0
      %690 = vmatmul.mubr.f32.gmra.mrb[0].mxu0 %v490
      %v691 = vpop.f32.mrb[0].mxu0
      %v692 = vadd.f32 0.0, %v691
      %v693 = vpop.f32.mrb[0].mxu0
      %694 = vmatprep.mubr.f32.mxu0 0.0
      %695 = vmatmul.mubr.f32.gmra.mrb[0].mxu0 %v493
      %v696 = vpop.f32.mrb[0].mxu0
      %v697 = vadd.f32 0.0, %v696
      %v698 = vpop.f32.mrb[0].mxu0
      %699 = vmatprep.mubr.f32.mxu0 0.0
      %700 = vmatmul.mubr.f32.gmra.mrb[0].mxu0 %v496
      %v701 = vpop.f32.mrb[0].mxu0
      %v702 = vadd.f32 0.0, %v701
      %v703 = vpop.f32.mrb[0].mxu0
      %704 = vmatprep.mubr.f32.mxu0 0.0
      %705 = vmatmul.mubr.f32.gmra.mrb[0].mxu0 %v499
      %v706 = vpop.f32.mrb[0].mxu0
      %v707 = vadd.f32 0.0, %v706
      %v708 = vpop.f32.mrb[0].mxu0
      %709 = vmatprep.mubr.f32.mxu0 0.0
      %710 = vmatmul.mubr.f32.gmra.mrb[0].mxu0 %v502
      %v711 = vpop.f32.mrb[0].mxu0
      %v712 = vadd.f32 0.0, %v711
      %v713 = vpop.f32.mrb[0].mxu0
      %714 = vmatprep.mubr.f32.mxu0 0.0
      %715 = vmatmul.mubr.f32.gmra.mrb[0].mxu0 %v505
      %v716 = vpop.f32.mrb[0].mxu0
      %v717 = vadd.f32 0.0, %v716
      %v718 = vpop.f32.mrb[0].mxu0
      %719 = vmatprep.mubr.f32.mxu0 0.0
      %720 = vmatmul.mubr.f32.gmra.mrb[0].mxu0 %v508
      %v721 = vpop.f32.mrb[0].mxu0
      %v722 = vadd.f32 0.0, %v721
      %v723 = vpop.f32.mrb[0].mxu0
      %724 = vmatprep.mubr.f32.mxu0 0.0
      %725 = vmatmul.mubr.f32.gmra.mrb[0].mxu0 %v511
      %v726 = vpop.f32.mrb[0].mxu0
      %v727 = vadd.f32 0.0, %v726
      %v728 = vpop.f32.mrb[0].mxu0
      %729 = vmatprep.mubr.f32.mxu0 0.0
      %730 = vmatmul.mubr.f32.gmra.mrb[0].mxu0 %v514
      %v731 = vpop.f32.mrb[0].mxu0
      %v732 = vadd.f32 0.0, %v731
      %v733 = vpop.f32.mrb[0].mxu0
      %734 = vmatprep.mubr.f32.mxu0 0.0
      %735 = vmatmul.mubr.f32.gmra.mrb[0].mxu0 %v517
      %v736 = vpop.f32.mrb[0].mxu0
      %v737 = vadd.f32 0.0, %v736
      %v738 = vpop.f32.mrb[0].mxu0
      %739 = vmatprep.mubr.f32.mxu0 0.0
      %740 = vmatmul.mubr.f32.gmra.mrb[0].mxu0 %v520
      %v741 = vpop.f32.mrb[0].mxu0
      %v742 = vadd.f32 0.0, %v741
      %v743 = vpop.f32.mrb[0].mxu0
      %744 = vmatprep.mubr.f32.mxu0 0.0
      %745 = vmatmul.mubr.f32.gmra.mrb[0].mxu0 %v523
      %v746 = vpop.f32.mrb[0].mxu0
      %v747 = vadd.f32 0.0, %v746
      %v748 = vpop.f32.mrb[0].mxu0
      %749 = vdwg.mxu0
      %vm750 = vcmask 261120
      %v751 = vsel %vm750, %v592, 0.0
      %v752 = vsel %vm750, %v597, 0.0
      %v753 = vadd.f32 %v751, %v752
      %v754 = vsel %vm750, %v602, 0.0
      %v755 = vadd.f32 %v753, %v754
      %v756 = vsel %vm750, %v607, 0.0
      %v757 = vadd.f32 %v755, %v756
      %v758 = vsel %vm750, %v612, 0.0
      %v759 = vadd.f32 %v757, %v758
      %v760 = vsel %vm750, %v617, 0.0
      %v761 = vadd.f32 %v759, %v760
      %v762 = vsel %vm750, %v622, 0.0
      %v763 = vadd.f32 %v761, %v762
      %v764 = vsel %vm750, %v627, 0.0
      %v765 = vadd.f32 %v763, %v764
      %v766 = vsel %vm750, %v632, 0.0
      %v767 = vadd.f32 %v765, %v766
      %v768 = vsel %vm750, %v637, 0.0
      %v769 = vadd.f32 %v767, %v768
      %v770 = vsel %vm750, %v642, 0.0
      %v771 = vadd.f32 %v769, %v770
      %v772 = vsel %vm750, %v647, 0.0
      %v773 = vadd.f32 %v771, %v772
      %v774 = vsel %vm750, %v652, 0.0
      %v775 = vadd.f32 %v773, %v774
      %v776 = vsel %vm750, %v657, 0.0
      %v777 = vadd.f32 %v775, %v776
      %v778 = vsel %vm750, %v662, 0.0
      %v779 = vadd.f32 %v777, %v778
      %v780 = vsel %vm750, %v667, 0.0
      %v781 = vadd.f32 %v779, %v780
      %v782 = vsel %vm750, %v672, 0.0
      %v783 = vadd.f32 %v781, %v782
      %v784 = vsel %vm750, %v677, 0.0
      %v785 = vadd.f32 %v783, %v784
      %v786 = vsel %vm750, %v682, 0.0
      %v787 = vadd.f32 %v785, %v786
      %v788 = vsel %vm750, %v687, 0.0
      %v789 = vadd.f32 %v787, %v788
      %v790 = vsel %vm750, %v692, 0.0
      %v791 = vadd.f32 %v789, %v790
      %v792 = vsel %vm750, %v697, 0.0
      %v793 = vadd.f32 %v791, %v792
      %v794 = vsel %vm750, %v702, 0.0
      %v795 = vadd.f32 %v793, %v794
      %v796 = vsel %vm750, %v707, 0.0
      %v797 = vadd.f32 %v795, %v796
      %v798 = vsel %vm750, %v712, 0.0
      %v799 = vadd.f32 %v797, %v798
      %v800 = vsel %vm750, %v717, 0.0
      %v801 = vadd.f32 %v799, %v800
      %v802 = vsel %vm750, %v722, 0.0
      %v803 = vadd.f32 %v801, %v802
      %v804 = vsel %vm750, %v727, 0.0
      %v805 = vadd.f32 %v803, %v804
      %v806 = vsel %vm750, %v732, 0.0
      %v807 = vadd.f32 %v805, %v806
      %v808 = vsel %vm750, %v737, 0.0
      %v809 = vadd.f32 %v807, %v808
      %v810 = vsel %vm750, %v742, 0.0
      %v811 = vadd.f32 %v809, %v810
      %v812 = vsel %vm750, %v747, 0.0
      %v813 = vadd.f32 %v811, %v812
      %v814 = vrot.slane %v813, 4
      %v815 = vadd.f32 %v813, %v814
      %v816 = vrot.slane %v815, 2
      %v817 = vadd.f32 %v815, %v816
      %v818 = vrot.slane %v817, 1
      %v819 = vadd.f32 %v817, %v818
      %vm820 = vcmask 253952
      %821 = vst.msk [vmem:[%s283] sm:$0x1] %vm820, %v819
      %v822 = vmul.f32 %v592, %v592
      %v823 = vmul.f32 %v597, %v597
      %v824 = vmul.f32 %v602, %v602
      %v825 = vmul.f32 %v607, %v607
      %v826 = vmul.f32 %v612, %v612
      %v827 = vmul.f32 %v617, %v617
      %v828 = vmul.f32 %v622, %v622
      %v829 = vmul.f32 %v627, %v627
      %v830 = vmul.f32 %v632, %v632
      %v831 = vmul.f32 %v637, %v637
      %v832 = vmul.f32 %v642, %v642
      %v833 = vmul.f32 %v647, %v647
      %v834 = vmul.f32 %v652, %v652
      %v835 = vmul.f32 %v657, %v657
      %v836 = vmul.f32 %v662, %v662
      %v837 = vmul.f32 %v667, %v667
      %v838 = vmul.f32 %v672, %v672
      %v839 = vmul.f32 %v677, %v677
      %v840 = vmul.f32 %v682, %v682
      %v841 = vmul.f32 %v687, %v687
      %v842 = vmul.f32 %v692, %v692
      %v843 = vmul.f32 %v697, %v697
      %v844 = vmul.f32 %v702, %v702
      %v845 = vmul.f32 %v707, %v707
      %v846 = vmul.f32 %v712, %v712
      %v847 = vmul.f32 %v717, %v717
      %v848 = vmul.f32 %v722, %v722
      %v849 = vmul.f32 %v727, %v727
      %v850 = vmul.f32 %v732, %v732
      %v851 = vmul.f32 %v737, %v737
      %v852 = vmul.f32 %v742, %v742
      %v853 = vmul.f32 %v747, %v747
      %v854 = vsel %vm750, %v822, 0.0
      %v855 = vsel %vm750, %v823, 0.0
      %v856 = vadd.f32 %v854, %v855
      %v857 = vsel %vm750, %v824, 0.0
      %v858 = vadd.f32 %v856, %v857
      %v859 = vsel %vm750, %v825, 0.0
      %v860 = vadd.f32 %v858, %v859
      %v861 = vsel %vm750, %v826, 0.0
      %v862 = vadd.f32 %v860, %v861
      %v863 = vsel %vm750, %v827, 0.0
      %v864 = vadd.f32 %v862, %v863
      %v865 = vsel %vm750, %v828, 0.0
      %v866 = vadd.f32 %v864, %v865
      %v867 = vsel %vm750, %v829, 0.0
      %v868 = vadd.f32 %v866, %v867
      %v869 = vsel %vm750, %v830, 0.0
      %v870 = vadd.f32 %v868, %v869
      %v871 = vsel %vm750, %v831, 0.0
      %v872 = vadd.f32 %v870, %v871
      %v873 = vsel %vm750, %v832, 0.0
      %v874 = vadd.f32 %v872, %v873
      %v875 = vsel %vm750, %v833, 0.0
      %v876 = vadd.f32 %v874, %v875
      %v877 = vsel %vm750, %v834, 0.0
      %v878 = vadd.f32 %v876, %v877
      %v879 = vsel %vm750, %v835, 0.0
      %v880 = vadd.f32 %v878, %v879
      %v881 = vsel %vm750, %v836, 0.0
      %v882 = vadd.f32 %v880, %v881
      %v883 = vsel %vm750, %v837, 0.0
      %v884 = vadd.f32 %v882, %v883
      %v885 = vsel %vm750, %v838, 0.0
      %v886 = vadd.f32 %v884, %v885
      %v887 = vsel %vm750, %v839, 0.0
      %v888 = vadd.f32 %v886, %v887
      %v889 = vsel %vm750, %v840, 0.0
      %v890 = vadd.f32 %v888, %v889
      %v891 = vsel %vm750, %v841, 0.0
      %v892 = vadd.f32 %v890, %v891
      %v893 = vsel %vm750, %v842, 0.0
      %v894 = vadd.f32 %v892, %v893
      %v895 = vsel %vm750, %v843, 0.0
      %v896 = vadd.f32 %v894, %v895
      %v897 = vsel %vm750, %v844, 0.0
      %v898 = vadd.f32 %v896, %v897
      %v899 = vsel %vm750, %v845, 0.0
      %v900 = vadd.f32 %v898, %v899
      %v901 = vsel %vm750, %v846, 0.0
      %v902 = vadd.f32 %v900, %v901
      %v903 = vsel %vm750, %v847, 0.0
      %v904 = vadd.f32 %v902, %v903
      %v905 = vsel %vm750, %v848, 0.0
      %v906 = vadd.f32 %v904, %v905
      %v907 = vsel %vm750, %v849, 0.0
      %v908 = vadd.f32 %v906, %v907
      %v909 = vsel %vm750, %v850, 0.0
      %v910 = vadd.f32 %v908, %v909
      %v911 = vsel %vm750, %v851, 0.0
      %v912 = vadd.f32 %v910, %v911
      %v913 = vsel %vm750, %v852, 0.0
      %v914 = vadd.f32 %v912, %v913
      %v915 = vsel %vm750, %v853, 0.0
      %v916 = vadd.f32 %v914, %v915
      %v917 = vrot.slane %v916, 4
      %v918 = vadd.f32 %v916, %v917
      %v919 = vrot.slane %v918, 2
      %v920 = vadd.f32 %v918, %v919
      %v921 = vrot.slane %v920, 1
      %v922 = vadd.f32 %v920, %v921
      %923 = vst.msk [vmem:[%s283 + $0x1] sm:$0x1] %vm820, %v922
      %924 = vst.msk [vmem:[%s277] sm:$0xff] %vm750, %v592
      %925 = vst.msk [vmem:[%s277 + $0x8] sm:$0xff] %vm750, %v597
      %926 = vst.msk [vmem:[%s277 + $0x10] sm:$0xff] %vm750, %v602
      %927 = vst.msk [vmem:[%s277 + $0x18] sm:$0xff] %vm750, %v607
      %928 = vst.msk [vmem:[%s277 + $0x20] sm:$0xff] %vm750, %v612
      %929 = vst.msk [vmem:[%s277 + $0x28] sm:$0xff] %vm750, %v617
      %930 = vst.msk [vmem:[%s277 + $0x30] sm:$0xff] %vm750, %v622
      %931 = vst.msk [vmem:[%s277 + $0x38] sm:$0xff] %vm750, %v627
      %932 = vst.msk [vmem:[%s277 + $0x40] sm:$0xff] %vm750, %v632
      %933 = vst.msk [vmem:[%s277 + $0x48] sm:$0xff] %vm750, %v637
      %934 = vst.msk [vmem:[%s277 + $0x50] sm:$0xff] %vm750, %v642
      %935 = vst.msk [vmem:[%s277 + $0x58] sm:$0xff] %vm750, %v647
      %936 = vst.msk [vmem:[%s277 + $0x60] sm:$0xff] %vm750, %v652
      %937 = vst.msk [vmem:[%s277 + $0x68] sm:$0xff] %vm750, %v657
      %938 = vst.msk [vmem:[%s277 + $0x70] sm:$0xff] %vm750, %v662
      %939 = vst.msk [vmem:[%s277 + $0x78] sm:$0xff] %vm750, %v667
      %940 = vst.msk [vmem:[%s277 + $0x80] sm:$0xff] %vm750, %v672
      %941 = vst.msk [vmem:[%s277 + $0x88] sm:$0xff] %vm750, %v677
      %942 = vst.msk [vmem:[%s277 + $0x90] sm:$0xff] %vm750, %v682
      %943 = vst.msk [vmem:[%s277 + $0x98] sm:$0xff] %vm750, %v687
      %944 = vst.msk [vmem:[%s277 + $0xa0] sm:$0xff] %vm750, %v692
      %945 = vst.msk [vmem:[%s277 + $0xa8] sm:$0xff] %vm750, %v697
      %946 = vst.msk [vmem:[%s277 + $0xb0] sm:$0xff] %vm750, %v702
      %947 = vst.msk [vmem:[%s277 + $0xb8] sm:$0xff] %vm750, %v707
      %948 = vst.msk [vmem:[%s277 + $0xc0] sm:$0xff] %vm750, %v712
      %949 = vst.msk [vmem:[%s277 + $0xc8] sm:$0xff] %vm750, %v717
      %950 = vst.msk [vmem:[%s277 + $0xd0] sm:$0xff] %vm750, %v722
      %951 = vst.msk [vmem:[%s277 + $0xd8] sm:$0xff] %vm750, %v727
      %952 = vst.msk [vmem:[%s277 + $0xe0] sm:$0xff] %vm750, %v732
      %953 = vst.msk [vmem:[%s277 + $0xe8] sm:$0xff] %vm750, %v737
      %954 = vst.msk [vmem:[%s277 + $0xf0] sm:$0xff] %vm750, %v742
      %955 = vst.msk [vmem:[%s277 + $0xf8] sm:$0xff] %vm750, %v747
      %s956 = smul.u32 16, %s22
      %p957 = scmp.lt.s32.totalorder %s21, 1
      %s958 = scalar_select %p957, %s21, 1
      %p959 = scmp.lt.s32.totalorder %s956, 15
      %s960 = scalar_select %p959, %s956, 15
      %s961 = smul.addr %s960, 2
      %s962 = smul.addr %s958, 32
      %s963 = sadd.s32 %s961, %s962
      %s964 = smul.addr %s963, 8
      %s965 = scalar_lea.vmem %s4, %s964
      %s966 = sadd.s32 %s21, %s22
      %p967 = scmp.lt.s32.totalorder %s966, 1
      %s968 = scalar_select %p967, %s966, 1
      %s969 = smul.addr %s968, 2
      %s970 = scalar_lea.vmem %s5, %s969
      // Predicated region
      $region37: #{_bottleneck_impl.6} parent=35 // pred_check
        %p971 = pneg %p140
      $region38: #{_bottleneck_impl.6} parent=35 // pred_check_branch
        %973 = sbr.rel (%p971) target = $region40
      $region39: #{_bottleneck_impl.6} parent=35 // pred_region
        %s974 = smul.u32 16, %s22
      $region40: #{_bottleneck_impl.6} parent=35 // pred_fallthru
        _
      // Predicated region
      $region41: #{_bottleneck_impl.6} parent=35 // pred_check
        %p975 = pneg %p168
      $region42: #{_bottleneck_impl.6} parent=35 // pred_check_branch
        %977 = sbr.rel (%p975) target = $region44
      $region43: #{_bottleneck_impl.6} parent=35 // pred_region
        %s978 = sadd.s32 %s21, %s22
      $region44: #{_bottleneck_impl.6} parent=35 // pred_fallthru
        _
    $region36: #{_bottleneck_impl.6} parent=5 // pred_fallthru
      _
    %p979 = scmp.le.s32.totalorder 2, %s12
    // Predicated region
    $region45: #{_bottleneck_impl.6} parent=5 // pred_check
      %p980 = pneg %p979
    $region46: #{_bottleneck_impl.6} parent=5 // pred_check_branch
      %982 = sbr.rel (%p980) target = $region48
    $region47: #{_bottleneck_impl.6} parent=5 // pred_region
      %s983 = ssub.s32 %s12, 2
      // Predicated region
      $region49: #{_bottleneck_impl.6} parent=47 // pred_check
        %p984 = pneg %p146
      $region50: #{_bottleneck_impl.6} parent=47 // pred_check_branch
        %986 = sbr.rel (%p984) target = $region52
      $region51: #{_bottleneck_impl.6} parent=47 // pred_region
        %s987 = smul.u32 16, %s24
        %p988 = scmp.lt.s32.totalorder %s23, 1
        %s989 = scalar_select %p988, %s23, 1
        %p990 = scmp.lt.s32.totalorder %s987, 15
        %s991 = scalar_select %p990, %s987, 15
        %s992 = smul.addr %s991, 2
        %s993 = smul.addr %s989, 32
        %s994 = sadd.s32 %s992, %s993
        %s995 = smul.addr %s994, 8
        %s996 = scalar_lea.vmem %s4, %s995
      $region52: #{_bottleneck_impl.6} parent=47 // pred_fallthru
        _
      // Predicated region
      $region53: #{_bottleneck_impl.6} parent=47 // pred_check
        %p997 = pneg %p174
      $region54: #{_bottleneck_impl.6} parent=47 // pred_check_branch
        %999 = sbr.rel (%p997) target = $region56
      $region55: #{_bottleneck_impl.6} parent=47 // pred_region
        %s1000 = sadd.s32 %s23, %s24
        %p1001 = scmp.lt.s32.totalorder %s1000, 1
        %s1002 = scalar_select %p1001, %s1000, 1
        %s1003 = smul.addr %s1002, 2
        %s1004 = scalar_lea.vmem %s5, %s1003
      $region56: #{_bottleneck_impl.6} parent=47 // pred_fallthru
        _
    $region48: #{_bottleneck_impl.6} parent=5 // pred_fallthru
      _
  $region6: #{_bottleneck_impl.6} parent=0 // loop_footer
    %s16 = sadd.s32 1, %s12
  $region7: #{_bottleneck_impl.6} parent=0 // loop_footer_branch
    %11 = sbr.rel target = $region3
  $region8: #{_bottleneck_impl.6} parent=0 // loop_exit
    _

// kernel: _bottleneck_impl.5
$region0: #{_bottleneck_impl.5}
  #allocation0 [shape = 'u32[]', space=smem, size = 0x4, offset = 0x4, fixed_abs, tag = 'smem constant byte address 0x4 - core index']
  #allocation1 [shape = 'u32[144,128]{1,0:T(1,128)}', space=vmem, size = 0x12000, scoped, tag = 'internal scratch']
  #allocation2 [shape = 'f32[18,18,8]{2,1,0:T(8,128)}', space=vmem, size = 0x36000, scoped, tag = 'scratch operand']
  #allocation3 [shape = 'f32[256,72]{1,0:T(8,128)}', space=vmem, size = 0x20000, scoped, tag = 'scratch operand']
  %s0 = inlined_call_operand.vmem [shape: f32[2,16,16,8], index: 0, kind: input, shape index: {}]
  %s1 = inlined_call_operand.vmem [shape: f32[1,8], index: 1, kind: input, shape index: {}]
  %s2 = inlined_call_operand.vmem [shape: f32[1,8], index: 2, kind: input, shape index: {}]
  %s3 = inlined_call_operand.vmem [shape: f32[72,8], index: 3, kind: input, shape index: {}]
  %s4 = inlined_call_operand.vmem [shape: f32[2,16,16,8], index: 4, kind: output, shape index: {0}]
  %s5 = inlined_call_operand.vmem [shape: f32[2,2,8], index: 5, kind: output, shape index: {1}]
  %6 = xla_tuple %s4, %s5
  %s7 = sld [smem:[#allocation0]]
  $region57: #{_bottleneck_impl.5} parent=0
    _
  %s9 = ssub.s32 1, %s7
  %s10 = scalar_select 0, %s9, %s7
  loop: start=0, step=1, limit=4
  $region2: #{_bottleneck_impl.5} parent=0 // loop_pre_header
    _
  $region3: #{_bottleneck_impl.5} parent=0 // loop_header
    %s12 = sphi 0, %s16
    %p13 = scmp.ge.s32.totalorder %s12, 4
    %s22 = sphi 0, %s24
    %s25 = sphi 0, %s22
    %s26 = sphi 0, %s25
    %s42 = sphi 0, %s26
    %s46 = sphi 0, %s46
    %s48 = sphi 0, %s46
    %s49 = sphi 0, %s48
    %s63 = sphi 0, %s49
    %s67 = sphi 0, %s67
    %s69 = sphi 0, %s67
    %s70 = sphi 0, %s69
    %s84 = sphi 0, %s70
    %s88 = sphi 0, %s88
    %s90 = sphi 0, %s88
    %s91 = sphi 0, %s90
    %s105 = sphi 0, %s91
    %s111 = sphi 0, %s113
    %s114 = sphi 0, %s111
    %s115 = sphi 0, %s114
    %s131 = sphi 0, %s115
    %s137 = sphi 0, %s139
    %s140 = sphi 0, %s137
    %s141 = sphi 0, %s140
    %s157 = sphi 0, %s141
  $region4: #{_bottleneck_impl.5} parent=0 // loop_header_branch
    %15 = sbr.rel (%p13) target = $region8
  $region5: #{_bottleneck_impl.5} parent=0 // loop_body
    %s17 = ssub.s32 %s12, 1
    %s18 = ssub.s32 %s12, 2
    %s19 = sadd.s32 %s12, 1
    %s20 = ssub.s32 %s12, %s19
    %p21 = scmp.eq.s32.totalorder %s20, 0
    %s23 = sadd.s32 %s22, 1
    %s24 = scalar_select %p21, %s22, %s23
    %p27 = pneg %p21
    %p28 = scmp.eq.s32.totalorder %s12, 1
    %p29 = por %p27, %p28
    %p30 = scmp.ne.s32.totalorder %s22, %s25
    %p31 = scmp.eq.s32.totalorder %s12, 0
    %p32 = por %p30, %p31
    %p33 = scmp.ne.s32.totalorder %s22, %s25
    %p34 = scmp.eq.s32.totalorder %s17, 1
    %p35 = por %p33, %p34
    %p36 = scmp.ne.s32.totalorder %s25, %s26
    %p37 = scmp.eq.s32.totalorder %s17, 0
    %p38 = por %p36, %p37
    %p39 = scmp.ne.s32.totalorder %s25, %s26
    %p40 = scmp.eq.s32.totalorder %s18, 1
    %p41 = por %p39, %p40
    %p43 = scmp.ne.s32.totalorder %s26, %s42
    %p44 = scmp.eq.s32.totalorder %s18, 0
    %p45 = por %p43, %p44
    %s47 = sadd.s32 %s46, 1
    %p50 = scmp.eq.s32.totalorder %s12, 1
    %p51 = scmp.ne.s32.totalorder %s46, %s48
    %p52 = scmp.eq.s32.totalorder %s12, 0
    %p53 = por %p51, %p52
    %p54 = scmp.ne.s32.totalorder %s46, %s48
    %p55 = scmp.eq.s32.totalorder %s17, 1
    %p56 = por %p54, %p55
    %p57 = scmp.ne.s32.totalorder %s48, %s49
    %p58 = scmp.eq.s32.totalorder %s17, 0
    %p59 = por %p57, %p58
    %p60 = scmp.ne.s32.totalorder %s48, %s49
    %p61 = scmp.eq.s32.totalorder %s18, 1
    %p62 = por %p60, %p61
    %p64 = scmp.ne.s32.totalorder %s49, %s63
    %p65 = scmp.eq.s32.totalorder %s18, 0
    %p66 = por %p64, %p65
    %s68 = sadd.s32 %s67, 1
    %p71 = scmp.eq.s32.totalorder %s12, 1
    %p72 = scmp.ne.s32.totalorder %s67, %s69
    %p73 = scmp.eq.s32.totalorder %s12, 0
    %p74 = por %p72, %p73
    %p75 = scmp.ne.s32.totalorder %s67, %s69
    %p76 = scmp.eq.s32.totalorder %s17, 1
    %p77 = por %p75, %p76
    %p78 = scmp.ne.s32.totalorder %s69, %s70
    %p79 = scmp.eq.s32.totalorder %s17, 0
    %p80 = por %p78, %p79
    %p81 = scmp.ne.s32.totalorder %s69, %s70
    %p82 = scmp.eq.s32.totalorder %s18, 1
    %p83 = por %p81, %p82
    %p85 = scmp.ne.s32.totalorder %s70, %s84
    %p86 = scmp.eq.s32.totalorder %s18, 0
    %p87 = por %p85, %p86
    %s89 = sadd.s32 %s88, 1
    %p92 = scmp.eq.s32.totalorder %s12, 1
    %p93 = scmp.ne.s32.totalorder %s88, %s90
    %p94 = scmp.eq.s32.totalorder %s12, 0
    %p95 = por %p93, %p94
    %p96 = scmp.ne.s32.totalorder %s88, %s90
    %p97 = scmp.eq.s32.totalorder %s17, 1
    %p98 = por %p96, %p97
    %p99 = scmp.ne.s32.totalorder %s90, %s91
    %p100 = scmp.eq.s32.totalorder %s17, 0
    %p101 = por %p99, %p100
    %p102 = scmp.ne.s32.totalorder %s90, %s91
    %p103 = scmp.eq.s32.totalorder %s18, 1
    %p104 = por %p102, %p103
    %p106 = scmp.ne.s32.totalorder %s91, %s105
    %p107 = scmp.eq.s32.totalorder %s18, 0
    %p108 = por %p106, %p107
    %s109 = ssub.s32 %s12, %s19
    %p110 = scmp.eq.s32.totalorder %s109, 0
    %s112 = sadd.s32 %s111, 1
    %s113 = scalar_select %p110, %s111, %s112
    %p116 = pneg %p110
    %p117 = scmp.eq.s32.totalorder %s12, 1
    %p118 = por %p116, %p117
    %p119 = scmp.ne.s32.totalorder %s111, %s114
    %p120 = scmp.eq.s32.totalorder %s12, 0
    %p121 = por %p119, %p120
    %p122 = scmp.ne.s32.totalorder %s111, %s114
    %p123 = scmp.eq.s32.totalorder %s17, 1
    %p124 = por %p122, %p123
    %p125 = scmp.ne.s32.totalorder %s114, %s115
    %p126 = scmp.eq.s32.totalorder %s17, 0
    %p127 = por %p125, %p126
    %p128 = scmp.ne.s32.totalorder %s114, %s115
    %p129 = scmp.eq.s32.totalorder %s18, 1
    %p130 = por %p128, %p129
    %p132 = scmp.ne.s32.totalorder %s115, %s131
    %p133 = scmp.eq.s32.totalorder %s18, 0
    %p134 = por %p132, %p133
    %s135 = ssub.s32 %s12, %s19
    %p136 = scmp.eq.s32.totalorder %s135, 0
    %s138 = sadd.s32 %s137, 1
    %s139 = scalar_select %p136, %s137, %s138
    %p142 = pneg %p136
    %p143 = scmp.eq.s32.totalorder %s12, 1
    %p144 = por %p142, %p143
    %p145 = scmp.ne.s32.totalorder %s137, %s140
    %p146 = scmp.eq.s32.totalorder %s12, 0
    %p147 = por %p145, %p146
    %p148 = scmp.ne.s32.totalorder %s137, %s140
    %p149 = scmp.eq.s32.totalorder %s17, 1
    %p150 = por %p148, %p149
    %p151 = scmp.ne.s32.totalorder %s140, %s141
    %p152 = scmp.eq.s32.totalorder %s17, 0
    %p153 = por %p151, %p152
    %p154 = scmp.ne.s32.totalorder %s140, %s141
    %p155 = scmp.eq.s32.totalorder %s18, 1
    %p156 = por %p154, %p155
    %p158 = scmp.ne.s32.totalorder %s141, %s157
    %p159 = scmp.eq.s32.totalorder %s18, 0
    %p160 = por %p158, %p159
    %p161 = scmp.le.s32.totalorder 1, %s12
    %p162 = scmp.lt.s32.totalorder %s12, 3
    %p163 = pnand %p161, %p162
    %p164 = pneg %p163
    // Predicated region
    $region9: #{_bottleneck_impl.5} parent=5 // pred_check
      _
    $region10: #{_bottleneck_impl.5} parent=5 // pred_check_branch
      %166 = sbr.rel (%p163) target = $region12
    $region11: #{_bottleneck_impl.5} parent=5 // pred_region
      %s167 = ssub.s32 %s12, 1
      // Predicated region
      $region13: #{_bottleneck_impl.5} parent=11 // pred_check
        %p168 = pneg %p59
      $region14: #{_bottleneck_impl.5} parent=11 // pred_check_branch
        %170 = sbr.rel (%p168) target = $region16
      $region15: #{_bottleneck_impl.5} parent=11 // pred_region
        _
      $region16: #{_bottleneck_impl.5} parent=11 // pred_fallthru
        _
      // Predicated region
      $region17: #{_bottleneck_impl.5} parent=11 // pred_check
        %p171 = pneg %p80
      $region18: #{_bottleneck_impl.5} parent=11 // pred_check_branch
        %173 = sbr.rel (%p171) target = $region20
      $region19: #{_bottleneck_impl.5} parent=11 // pred_region
        _
      $region20: #{_bottleneck_impl.5} parent=11 // pred_fallthru
        _
      // Predicated region
      $region21: #{_bottleneck_impl.5} parent=11 // pred_check
        %p174 = pneg %p101
      $region22: #{_bottleneck_impl.5} parent=11 // pred_check_branch
        %176 = sbr.rel (%p174) target = $region24
      $region23: #{_bottleneck_impl.5} parent=11 // pred_region
        _
      $region24: #{_bottleneck_impl.5} parent=11 // pred_fallthru
        _
    $region12: #{_bottleneck_impl.5} parent=5 // pred_fallthru
      _
    %p177 = scmp.lt.s32.totalorder %s12, 2
    // Predicated region
    $region25: #{_bottleneck_impl.5} parent=5 // pred_check
      %p178 = pneg %p177
    $region26: #{_bottleneck_impl.5} parent=5 // pred_check_branch
      %180 = sbr.rel (%p178) target = $region28
    $region27: #{_bottleneck_impl.5} parent=5 // pred_region
      // Predicated region
      $region29: #{_bottleneck_impl.5} parent=27 // pred_check
        %p181 = pneg %p32
      $region30: #{_bottleneck_impl.5} parent=27 // pred_check_branch
        %183 = sbr.rel (%p181) target = $region32
      $region31: #{_bottleneck_impl.5} parent=27 // pred_region
        %p184 = scmp.lt.s32.totalorder %s12, 1
        %s185 = scalar_select %p184, %s12, 1
        %s186 = smul.addr %s185, 32
        %s187 = smul.addr %s186, 8
        %s188 = scalar_lea.vmem %s0, %s187
      $region32: #{_bottleneck_impl.5} parent=27 // pred_fallthru
        _
    $region28: #{_bottleneck_impl.5} parent=5 // pred_fallthru
      _
    %p189 = scmp.le.s32.totalorder 1, %s12
    %p190 = scmp.lt.s32.totalorder %s12, 3
    %p191 = pnand %p189, %p190
    %p192 = pneg %p191
    // Predicated region
    $region33: #{_bottleneck_impl.5} parent=5 // pred_check
      _
    $region34: #{_bottleneck_impl.5} parent=5 // pred_check_branch
      %194 = sbr.rel (%p191) target = $region36
    $region35: #{_bottleneck_impl.5} parent=5 // pred_region
      %s195 = ssub.s32 %s12, 1
      %p196 = scmp.lt.s32.totalorder %s17, 1
      %s197 = scalar_select %p196, %s17, 1
      %s198 = smul.addr %s197, 32
      %s199 = smul.addr %s198, 8
      %s200 = scalar_lea.vmem %s0, %s199
      %p201 = pneg %p38
      %p202 = pneg %p35
      %p203 = pneg %p59
      %p204 = pneg %p56
      %p205 = pneg %p80
      %p206 = pneg %p77
      %p207 = pneg %p101
      %p208 = pneg %p98
      %p209 = pneg %p127
      %p210 = pneg %p124
      %p211 = scmp.lt.s32.totalorder %s17, 1
      %s212 = scalar_select %p211, %s17, 1
      %s213 = smul.addr %s212, 32
      %s214 = smul.addr %s213, 8
      %s215 = scalar_lea.vmem %s4, %s214
      %p216 = pneg %p153
      %p217 = pneg %p150
      %p218 = scmp.lt.s32.totalorder %s17, 1
      %s219 = scalar_select %p218, %s17, 1
      %s220 = smul.addr %s219, 2
      %s221 = scalar_lea.vmem %s5, %s220
      %p222 = scmp.lt.s32.totalorder %s17, 1
      %s223 = scalar_select %p222, %s17, 1
      %s224 = smul.addr %s223, 32
      %s225 = smul.addr %s224, 8
      %s226 = scalar_lea.vmem %s0, %s225
      %p227 = scmp.lt.s32.totalorder %s17, 1
      %s228 = scalar_select %p227, %s17, 1
      %s229 = smul.addr %s228, 32
      %s230 = smul.addr %s229, 8
      %s231 = scalar_lea.vmem %s4, %s230
      %p232 = scmp.lt.s32.totalorder %s17, 1
      %s233 = scalar_select %p232, %s17, 1
      %s234 = smul.addr %s233, 2
      %s235 = scalar_lea.vmem %s5, %s234
      %v236 = vld [vmem:[%s226] sm:$0xff]
      %v237 = vld [vmem:[%s226 + $0x8] sm:$0xff]
      %v238 = vld [vmem:[%s226 + $0x10] sm:$0xff]
      %v239 = vld [vmem:[%s226 + $0x18] sm:$0xff]
      %v240 = vld [vmem:[%s226 + $0x20] sm:$0xff]
      %v241 = vld [vmem:[%s226 + $0x28] sm:$0xff]
      %v242 = vld [vmem:[%s226 + $0x30] sm:$0xff]
      %v243 = vld [vmem:[%s226 + $0x38] sm:$0xff]
      %v244 = vld [vmem:[%s226 + $0x40] sm:$0xff]
      %v245 = vld [vmem:[%s226 + $0x48] sm:$0xff]
      %v246 = vld [vmem:[%s226 + $0x50] sm:$0xff]
      %v247 = vld [vmem:[%s226 + $0x58] sm:$0xff]
      %v248 = vld [vmem:[%s226 + $0x60] sm:$0xff]
      %v249 = vld [vmem:[%s226 + $0x68] sm:$0xff]
      %v250 = vld [vmem:[%s226 + $0x70] sm:$0xff]
      %v251 = vld [vmem:[%s226 + $0x78] sm:$0xff]
      %v252 = vld [vmem:[%s226 + $0x80] sm:$0xff]
      %v253 = vld [vmem:[%s226 + $0x88] sm:$0xff]
      %v254 = vld [vmem:[%s226 + $0x90] sm:$0xff]
      %v255 = vld [vmem:[%s226 + $0x98] sm:$0xff]
      %v256 = vld [vmem:[%s226 + $0xa0] sm:$0xff]
      %v257 = vld [vmem:[%s226 + $0xa8] sm:$0xff]
      %v258 = vld [vmem:[%s226 + $0xb0] sm:$0xff]
      %v259 = vld [vmem:[%s226 + $0xb8] sm:$0xff]
      %v260 = vld [vmem:[%s226 + $0xc0] sm:$0xff]
      %v261 = vld [vmem:[%s226 + $0xc8] sm:$0xff]
      %v262 = vld [vmem:[%s226 + $0xd0] sm:$0xff]
      %v263 = vld [vmem:[%s226 + $0xd8] sm:$0xff]
      %v264 = vld [vmem:[%s226 + $0xe0] sm:$0xff]
      %v265 = vld [vmem:[%s226 + $0xe8] sm:$0xff]
      %v266 = vld [vmem:[%s226 + $0xf0] sm:$0xff]
      %v267 = vld [vmem:[%s226 + $0xf8] sm:$0xff]
      %v268 = vld [vmem:[%s1] sm:$0x1]
      %v270 = vlaneseq
      %v271 = vshrl.u32 %v270, 7
      %v272 = vsub.s32 0, %v271
      %v273 = vrot.slane %v268, %v272
      %v275 = vmul.f32 %v236, %v273
      %v276 = vmul.f32 %v237, %v273
      %v277 = vmul.f32 %v238, %v273
      %v278 = vmul.f32 %v239, %v273
      %v279 = vmul.f32 %v240, %v273
      %v280 = vmul.f32 %v241, %v273
      %v281 = vmul.f32 %v242, %v273
      %v282 = vmul.f32 %v243, %v273
      %v283 = vmul.f32 %v244, %v273
      %v284 = vmul.f32 %v245, %v273
      %v285 = vmul.f32 %v246, %v273
      %v286 = vmul.f32 %v247, %v273
      %v287 = vmul.f32 %v248, %v273
      %v288 = vmul.f32 %v249, %v273
      %v289 = vmul.f32 %v250, %v273
      %v290 = vmul.f32 %v251, %v273
      %v291 = vmul.f32 %v252, %v273
      %v292 = vmul.f32 %v253, %v273
      %v293 = vmul.f32 %v254, %v273
      %v294 = vmul.f32 %v255, %v273
      %v295 = vmul.f32 %v256, %v273
      %v296 = vmul.f32 %v257, %v273
      %v297 = vmul.f32 %v258, %v273
      %v298 = vmul.f32 %v259, %v273
      %v299 = vmul.f32 %v260, %v273
      %v300 = vmul.f32 %v261, %v273
      %v301 = vmul.f32 %v262, %v273
      %v302 = vmul.f32 %v263, %v273
      %v303 = vmul.f32 %v264, %v273
      %v304 = vmul.f32 %v265, %v273
      %v305 = vmul.f32 %v266, %v273
      %v306 = vmul.f32 %v267, %v273
      %v307 = vld [vmem:[%s2] sm:$0x1]
      %v309 = vlaneseq
      %v310 = vshrl.u32 %v309, 7
      %v311 = vsub.s32 0, %v310
      %v312 = vrot.slane %v307, %v311
      %v314 = vadd.f32 %v275, %v312
      %v315 = vadd.f32 %v276, %v312
      %v316 = vadd.f32 %v277, %v312
      %v317 = vadd.f32 %v278, %v312
      %v318 = vadd.f32 %v279, %v312
      %v319 = vadd.f32 %v280, %v312
      %v320 = vadd.f32 %v281, %v312
      %v321 = vadd.f32 %v282, %v312
      %v322 = vadd.f32 %v283, %v312
      %v323 = vadd.f32 %v284, %v312
      %v324 = vadd.f32 %v285, %v312
      %v325 = vadd.f32 %v286, %v312
      %v326 = vadd.f32 %v287, %v312
      %v327 = vadd.f32 %v288, %v312
      %v328 = vadd.f32 %v289, %v312
      %v329 = vadd.f32 %v290, %v312
      %v330 = vadd.f32 %v291, %v312
      %v331 = vadd.f32 %v292, %v312
      %v332 = vadd.f32 %v293, %v312
      %v333 = vadd.f32 %v294, %v312
      %v334 = vadd.f32 %v295, %v312
      %v335 = vadd.f32 %v296, %v312
      %v336 = vadd.f32 %v297, %v312
      %v337 = vadd.f32 %v298, %v312
      %v338 = vadd.f32 %v299, %v312
      %v339 = vadd.f32 %v300, %v312
      %v340 = vadd.f32 %v301, %v312
      %v341 = vadd.f32 %v302, %v312
      %v342 = vadd.f32 %v303, %v312
      %v343 = vadd.f32 %v304, %v312
      %v344 = vadd.f32 %v305, %v312
      %v345 = vadd.f32 %v306, %v312
      %v346 = vmax.f32 %v314, 0.0
      %v347 = vmax.f32 %v315, 0.0
      %v348 = vmax.f32 %v316, 0.0
      %v349 = vmax.f32 %v317, 0.0
      %v350 = vmax.f32 %v318, 0.0
      %v351 = vmax.f32 %v319, 0.0
      %v352 = vmax.f32 %v320, 0.0
      %v353 = vmax.f32 %v321, 0.0
      %v354 = vmax.f32 %v322, 0.0
      %v355 = vmax.f32 %v323, 0.0
      %v356 = vmax.f32 %v324, 0.0
      %v357 = vmax.f32 %v325, 0.0
      %v358 = vmax.f32 %v326, 0.0
      %v359 = vmax.f32 %v327, 0.0
      %v360 = vmax.f32 %v328, 0.0
      %v361 = vmax.f32 %v329, 0.0
      %v362 = vmax.f32 %v330, 0.0
      %v363 = vmax.f32 %v331, 0.0
      %v364 = vmax.f32 %v332, 0.0
      %v365 = vmax.f32 %v333, 0.0
      %v366 = vmax.f32 %v334, 0.0
      %v367 = vmax.f32 %v335, 0.0
      %v368 = vmax.f32 %v336, 0.0
      %v369 = vmax.f32 %v337, 0.0
      %v370 = vmax.f32 %v338, 0.0
      %v371 = vmax.f32 %v339, 0.0
      %v372 = vmax.f32 %v340, 0.0
      %v373 = vmax.f32 %v341, 0.0
      %v374 = vmax.f32 %v342, 0.0
      %v375 = vmax.f32 %v343, 0.0
      %v376 = vmax.f32 %v344, 0.0
      %v377 = vmax.f32 %v345, 0.0
      %vm378 = vcmask 64512
      %379 = vst.msk [vmem:[#allocation2] sm:$0xff] %vm378, 0.0
      %380 = vst.msk [vmem:[#allocation2 + $0x8] sm:$0xff] %vm378, 0.0
      %vm381 = vcmask 58368
      %382 = vst.msk [vmem:[#allocation2 + $0x10] sm:$0x3] %vm381, 0.0
      %s383 = scalar_lea.vmem [#allocation2], 408
      %384 = vst.msk [vmem:[%s383] sm:$0xff] %vm378, 0.0
      %385 = vst.msk [vmem:[%s383 + $0x8] sm:$0xff] %vm378, 0.0
      %386 = vst.msk [vmem:[%s383 + $0x10] sm:$0x3] %vm381, 0.0
      %vm419 = vcmask 1040384
      %v420 = vrot.slane %v346, 7
      %v421 = vrot.slane %v347, 7
      %v422 = vsel %vm419, %v420, %v421
      %v423 = vrot.slane %v348, 7
      %v424 = vrot.slane %v349, 7
      %v425 = vsel %vm419, %v423, %v424
      %v426 = vrot.slane %v350, 7
      %v427 = vrot.slane %v351, 7
      %v428 = vsel %vm419, %v426, %v427
      %v429 = vrot.slane %v352, 7
      %v430 = vrot.slane %v353, 7
      %v431 = vsel %vm419, %v429, %v430
      %v432 = vrot.slane %v354, 7
      %v433 = vrot.slane %v355, 7
      %v434 = vsel %vm419, %v432, %v433
      %v435 = vrot.slane %v356, 7
      %v436 = vrot.slane %v357, 7
      %v437 = vsel %vm419, %v435, %v436
      %v438 = vrot.slane %v358, 7
      %v439 = vrot.slane %v359, 7
      %v440 = vsel %vm419, %v438, %v439
      %v441 = vrot.slane %v360, 7
      %v442 = vrot.slane %v361, 7
      %v443 = vsel %vm419, %v441, %v442
      %v444 = vrot.slane %v362, 7
      %v445 = vrot.slane %v363, 7
      %v446 = vsel %vm419, %v444, %v445
      %v447 = vrot.slane %v364, 7
      %v448 = vrot.slane %v365, 7
      %v449 = vsel %vm419, %v447, %v448
      %v450 = vrot.slane %v366, 7
      %v451 = vrot.slane %v367, 7
      %v452 = vsel %vm419, %v450, %v451
      %v453 = vrot.slane %v368, 7
      %v454 = vrot.slane %v369, 7
      %v455 = vsel %vm419, %v453, %v454
      %v456 = vrot.slane %v370, 7
      %v457 = vrot.slane %v371, 7
      %v458 = vsel %vm419, %v456, %v457
      %v459 = vrot.slane %v372, 7
      %v460 = vrot.slane %v373, 7
      %v461 = vsel %vm419, %v459, %v460
      %v462 = vrot.slane %v374, 7
      %v463 = vrot.slane %v375, 7
      %v464 = vsel %vm419, %v462, %v463
      %v465 = vrot.slane %v376, 7
      %v466 = vrot.slane %v377, 7
      %v467 = vsel %vm419, %v465, %v466
      %v516 = vsel %vm419, 0.0, %v420
      %v517 = vsel %vm419, 0.0, %v423
      %v518 = vsel %vm419, 0.0, %v426
      %v519 = vsel %vm419, 0.0, %v429
      %v520 = vsel %vm419, 0.0, %v432
      %v521 = vsel %vm419, 0.0, %v435
      %v522 = vsel %vm419, 0.0, %v438
      %v523 = vsel %vm419, 0.0, %v441
      %v524 = vsel %vm419, 0.0, %v444
      %v525 = vsel %vm419, 0.0, %v447
      %v526 = vsel %vm419, 0.0, %v450
      %v527 = vsel %vm419, 0.0, %v453
      %v528 = vsel %vm419, 0.0, %v456
      %v529 = vsel %vm419, 0.0, %v459
      %v530 = vsel %vm419, 0.0, %v462
      %v531 = vsel %vm419, 0.0, %v465
      %v532 = vsel %vm419, %v421, 0.0
      %v533 = vsel %vm419, %v424, 0.0
      %v534 = vsel %vm419, %v427, 0.0
      %v535 = vsel %vm419, %v430, 0.0
      %v536 = vsel %vm419, %v433, 0.0
      %v537 = vsel %vm419, %v436, 0.0
      %v538 = vsel %vm419, %v439, 0.0
      %v539 = vsel %vm419, %v442, 0.0
      %v540 = vsel %vm419, %v445, 0.0
      %v541 = vsel %vm419, %v448, 0.0
      %v542 = vsel %vm419, %v451, 0.0
      %v543 = vsel %vm419, %v454, 0.0
      %v544 = vsel %vm419, %v457, 0.0
      %v545 = vsel %vm419, %v460, 0.0
      %v546 = vsel %vm419, %v463, 0.0
      %v547 = vsel %vm419, %v466, 0.0
      %s548 = scalar_lea.vmem [#allocation2], 24
      %549 = vst.msk [vmem:[%s548] sm:$0xff] %vm378, %v516
      %550 = vst.msk [vmem:[%s548 + $0x8] sm:$0xff] %vm378, %v422
      %551 = vst.msk [vmem:[%s548 + $0x10] sm:$0x3] %vm381, %v532
      %552 = vst.msk [vmem:[%s548 + $0x18] sm:$0xff] %vm378, %v517
      %553 = vst.msk [vmem:[%s548 + $0x20] sm:$0xff] %vm378, %v425
      %554 = vst.msk [vmem:[%s548 + $0x28] sm:$0x3] %vm381, %v533
      %555 = vst.msk [vmem:[%s548 + $0x30] sm:$0xff] %vm378, %v518
      %556 = vst.msk [vmem:[%s548 + $0x38] sm:$0xff] %vm378, %v428
      %557 = vst.msk [vmem:[%s548 + $0x40] sm:$0x3] %vm381, %v534
      %558 = vst.msk [vmem:[%s548 + $0x48] sm:$0xff] %vm378, %v519
      %559 = vst.msk [vmem:[%s548 + $0x50] sm:$0xff] %vm378, %v431
      %560 = vst.msk [vmem:[%s548 + $0x58] sm:$0x3] %vm381, %v535
      %561 = vst.msk [vmem:[%s548 + $0x60] sm:$0xff] %vm378, %v520
      %562 = vst.msk [vmem:[%s548 + $0x68] sm:$0xff] %vm378, %v434
      %563 = vst.msk [vmem:[%s548 + $0x70] sm:$0x3] %vm381, %v536
      %564 = vst.msk [vmem:[%s548 + $0x78] sm:$0xff] %vm378, %v521
      %565 = vst.msk [vmem:[%s548 + $0x80] sm:$0xff] %vm378, %v437
      %566 = vst.msk [vmem:[%s548 + $0x88] sm:$0x3] %vm381, %v537
      %567 = vst.msk [vmem:[%s548 + $0x90] sm:$0xff] %vm378, %v522
      %568 = vst.msk [vmem:[%s548 + $0x98] sm:$0xff] %vm378, %v440
      %569 = vst.msk [vmem:[%s548 + $0xa0] sm:$0x3] %vm381, %v538
      %570 = vst.msk [vmem:[%s548 + $0xa8] sm:$0xff] %vm378, %v523
      %571 = vst.msk [vmem:[%s548 + $0xb0] sm:$0xff] %vm378, %v443
      %572 = vst.msk [vmem:[%s548 + $0xb8] sm:$0x3] %vm381, %v539
      %573 = vst.msk [vmem:[%s548 + $0xc0] sm:$0xff] %vm378, %v524
      %574 = vst.msk [vmem:[%s548 + $0xc8] sm:$0xff] %vm378, %v446
      %575 = vst.msk [vmem:[%s548 + $0xd0] sm:$0x3] %vm381, %v540
      %576 = vst.msk [vmem:[%s548 + $0xd8] sm:$0xff] %vm378, %v525
      %577 = vst.msk [vmem:[%s548 + $0xe0] sm:$0xff] %vm378, %v449
      %578 = vst.msk [vmem:[%s548 + $0xe8] sm:$0x3] %vm381, %v541
      %579 = vst.msk [vmem:[%s548 + $0xf0] sm:$0xff] %vm378, %v526
      %580 = vst.msk [vmem:[%s548 + $0xf8] sm:$0xff] %vm378, %v452
      %581 = vst.msk [vmem:[%s548 + $0x100] sm:$0x3] %vm381, %v542
      %582 = vst.msk [vmem:[%s548 + $0x108] sm:$0xff] %vm378, %v527
      %583 = vst.msk [vmem:[%s548 + $0x110] sm:$0xff] %vm378, %v455
      %584 = vst.msk [vmem:[%s548 + $0x118] sm:$0x3] %vm381, %v543
      %585 = vst.msk [vmem:[%s548 + $0x120] sm:$0xff] %vm378, %v528
      %586 = vst.msk [vmem:[%s548 + $0x128] sm:$0xff] %vm378, %v458
      %587 = vst.msk [vmem:[%s548 + $0x130] sm:$0x3] %vm381, %v544
      %588 = vst.msk [vmem:[%s548 + $0x138] sm:$0xff] %vm378, %v529
      %589 = vst.msk [vmem:[%s548 + $0x140] sm:$0xff] %vm378, %v461
      %590 = vst.msk [vmem:[%s548 + $0x148] sm:$0x3] %vm381, %v545
      %591 = vst.msk [vmem:[%s548 + $0x150] sm:$0xff] %vm378, %v530
      %592 = vst.msk [vmem:[%s548 + $0x158] sm:$0xff] %vm378, %v464
      %593 = vst.msk [vmem:[%s548 + $0x160] sm:$0x3] %vm381, %v546
      %594 = vst.msk [vmem:[%s548 + $0x168] sm:$0xff] %vm378, %v531
      %595 = vst.msk [vmem:[%s548 + $0x170] sm:$0xff] %vm378, %v467
      %596 = vst.msk [vmem:[%s548 + $0x178] sm:$0x3] %vm381, %v547
      %v597 = vld [vmem:[#allocation2] sm:$0xff]
      %v598 = vld [vmem:[#allocation2 + $0x8] sm:$0xff]
      %v599 = vld [vmem:[#allocation2 + $0x18] sm:$0xff]
      %v600 = vld [vmem:[#allocation2 + $0x20] sm:$0xff]
      %v601 = vld [vmem:[#allocation2 + $0x30] sm:$0xff]
      %v602 = vld [vmem:[#allocation2 + $0x38] sm:$0xff]
      %v603 = vld [vmem:[#allocation2 + $0x48] sm:$0xff]
      %v604 = vld [vmem:[#allocation2 + $0x50] sm:$0xff]
      %v605 = vld [vmem:[#allocation2 + $0x60] sm:$0xff]
      %v606 = vld [vmem:[#allocation2 + $0x68] sm:$0xff]
      %v607 = vld [vmem:[#allocation2 + $0x78] sm:$0xff]
      %v608 = vld [vmem:[#allocation2 + $0x80] sm:$0xff]
      %v609 = vld [vmem:[#allocation2 + $0x90] sm:$0xff]
      %v610 = vld [vmem:[#allocation2 + $0x98] sm:$0xff]
      %v611 = vld [vmem:[#allocation2 + $0xa8] sm:$0xff]
      %v612 = vld [vmem:[#allocation2 + $0xb0] sm:$0xff]
      %v613 = vld [vmem:[#allocation2 + $0xc0] sm:$0xff]
      %v614 = vld [vmem:[#allocation2 + $0xc8] sm:$0xff]
      %v615 = vld [vmem:[#allocation2 + $0xd8] sm:$0xff]
      %v616 = vld [vmem:[#allocation2 + $0xe0] sm:$0xff]
      %v617 = vld [vmem:[#allocation2 + $0xf0] sm:$0xff]
      %v618 = vld [vmem:[#allocation2 + $0xf8] sm:$0xff]
      %v619 = vld [vmem:[#allocation2 + $0x108] sm:$0xff]
      %v620 = vld [vmem:[#allocation2 + $0x110] sm:$0xff]
      %v621 = vld [vmem:[#allocation2 + $0x120] sm:$0xff]
      %v622 = vld [vmem:[#allocation2 + $0x128] sm:$0xff]
      %v623 = vld [vmem:[#allocation2 + $0x138] sm:$0xff]
      %v624 = vld [vmem:[#allocation2 + $0x140] sm:$0xff]
      %v625 = vld [vmem:[#allocation2 + $0x150] sm:$0xff]
      %v626 = vld [vmem:[#allocation2 + $0x158] sm:$0xff]
      %v627 = vld [vmem:[#allocation2 + $0x168] sm:$0xff]
      %v628 = vld [vmem:[#allocation2 + $0x170] sm:$0xff]
      %629 = vst.msk [vmem:[#allocation3] sm:$0xff] %vm378, %v597
      %630 = vst.msk [vmem:[#allocation3 + $0x8] sm:$0xff] %vm378, %v598
      %631 = vst.msk [vmem:[#allocation3 + $0x10] sm:$0xff] %vm378, %v599
      %632 = vst.msk [vmem:[#allocation3 + $0x18] sm:$0xff] %vm378, %v600
      %633 = vst.msk [vmem:[#allocation3 + $0x20] sm:$0xff] %vm378, %v601
      %634 = vst.msk [vmem:[#allocation3 + $0x28] sm:$0xff] %vm378, %v602
      %635 = vst.msk [vmem:[#allocation3 + $0x30] sm:$0xff] %vm378, %v603
      %636 = vst.msk [vmem:[#allocation3 + $0x38] sm:$0xff] %vm378, %v604
      %637 = vst.msk [vmem:[#allocation3 + $0x40] sm:$0xff] %vm378, %v605
      %638 = vst.msk [vmem:[#allocation3 + $0x48] sm:$0xff] %vm378, %v606
      %639 = vst.msk [vmem:[#allocation3 + $0x50] sm:$0xff] %vm378, %v607
      %640 = vst.msk [vmem:[#allocation3 + $0x58] sm:$0xff] %vm378, %v608
      %641 = vst.msk [vmem:[#allocation3 + $0x60] sm:$0xff] %vm378, %v609
      %642 = vst.msk [vmem:[#allocation3 + $0x68] sm:$0xff] %vm378, %v610
      %643 = vst.msk [vmem:[#allocation3 + $0x70] sm:$0xff] %vm378, %v611
      %644 = vst.msk [vmem:[#allocation3 + $0x78] sm:$0xff] %vm378, %v612
      %645 = vst.msk [vmem:[#allocation3 + $0x80] sm:$0xff] %vm378, %v613
      %646 = vst.msk [vmem:[#allocation3 + $0x88] sm:$0xff] %vm378, %v614
      %647 = vst.msk [vmem:[#allocation3 + $0x90] sm:$0xff] %vm378, %v615
      %648 = vst.msk [vmem:[#allocation3 + $0x98] sm:$0xff] %vm378, %v616
      %649 = vst.msk [vmem:[#allocation3 + $0xa0] sm:$0xff] %vm378, %v617
      %650 = vst.msk [vmem:[#allocation3 + $0xa8] sm:$0xff] %vm378, %v618
      %651 = vst.msk [vmem:[#allocation3 + $0xb0] sm:$0xff] %vm378, %v619
      %652 = vst.msk [vmem:[#allocation3 + $0xb8] sm:$0xff] %vm378, %v620
      %653 = vst.msk [vmem:[#allocation3 + $0xc0] sm:$0xff] %vm378, %v621
      %654 = vst.msk [vmem:[#allocation3 + $0xc8] sm:$0xff] %vm378, %v622
      %655 = vst.msk [vmem:[#allocation3 + $0xd0] sm:$0xff] %vm378, %v623
      %656 = vst.msk [vmem:[#allocation3 + $0xd8] sm:$0xff] %vm378, %v624
      %657 = vst.msk [vmem:[#allocation3 + $0xe0] sm:$0xff] %vm378, %v625
      %658 = vst.msk [vmem:[#allocation3 + $0xe8] sm:$0xff] %vm378, %v626
      %659 = vst.msk [vmem:[#allocation3 + $0xf0] sm:$0xff] %vm378, %v627
      %660 = vst.msk [vmem:[#allocation3 + $0xf8] sm:$0xff] %vm378, %v628
      %v661 = vld [vmem:[#allocation2 + $0x1] sm:$0xff]
      %v662 = vld [vmem:[#allocation2 + $0x9] sm:$0xff]
      %v663 = vld [vmem:[#allocation2 + $0x19] sm:$0xff]
      %v664 = vld [vmem:[#allocation2 + $0x21] sm:$0xff]
      %v665 = vld [vmem:[#allocation2 + $0x31] sm:$0xff]
      %v666 = vld [vmem:[#allocation2 + $0x39] sm:$0xff]
      %v667 = vld [vmem:[#allocation2 + $0x49] sm:$0xff]
      %v668 = vld [vmem:[#allocation2 + $0x51] sm:$0xff]
      %v669 = vld [vmem:[#allocation2 + $0x61] sm:$0xff]
      %v670 = vld [vmem:[#allocation2 + $0x69] sm:$0xff]
      %v671 = vld [vmem:[#allocation2 + $0x79] sm:$0xff]
      %v672 = vld [vmem:[#allocation2 + $0x81] sm:$0xff]
      %v673 = vld [vmem:[#allocation2 + $0x91] sm:$0xff]
      %v674 = vld [vmem:[#allocation2 + $0x99] sm:$0xff]
      %v675 = vld [vmem:[#allocation2 + $0xa9] sm:$0xff]
      %v676 = vld [vmem:[#allocation2 + $0xb1] sm:$0xff]
      %v677 = vld [vmem:[#allocation2 + $0xc1] sm:$0xff]
      %v678 = vld [vmem:[#allocation2 + $0xc9] sm:$0xff]
      %v679 = vld [vmem:[#allocation2 + $0xd9] sm:$0xff]
      %v680 = vld [vmem:[#allocation2 + $0xe1] sm:$0xff]
      %v681 = vld [vmem:[#allocation2 + $0xf1] sm:$0xff]
      %v682 = vld [vmem:[#allocation2 + $0xf9] sm:$0xff]
      %v683 = vld [vmem:[#allocation2 + $0x109] sm:$0xff]
      %v684 = vld [vmem:[#allocation2 + $0x111] sm:$0xff]
      %v685 = vld [vmem:[#allocation2 + $0x121] sm:$0xff]
      %v686 = vld [vmem:[#allocation2 + $0x129] sm:$0xff]
      %v687 = vld [vmem:[#allocation2 + $0x139] sm:$0xff]
      %v688 = vld [vmem:[#allocation2 + $0x141] sm:$0xff]
      %v689 = vld [vmem:[#allocation2 + $0x151] sm:$0xff]
      %v690 = vld [vmem:[#allocation2 + $0x159] sm:$0xff]
      %v691 = vld [vmem:[#allocation2 + $0x169] sm:$0xff]
      %v692 = vld [vmem:[#allocation2 + $0x171] sm:$0xff]
      %725 = vrot.lane.b32.xlu0 %v661, 8
      %v726 = vpop.permute.xlu0 %725
      %727 = vrot.lane.b32.xlu0 %v662, 8
      %v728 = vpop.permute.xlu0 %727
      %729 = vrot.lane.b32.xlu0 %v663, 8
      %v730 = vpop.permute.xlu0 %729
      %731 = vrot.lane.b32.xlu0 %v664, 8
      %v732 = vpop.permute.xlu0 %731
      %733 = vrot.lane.b32.xlu0 %v665, 8
      %v734 = vpop.permute.xlu0 %733
      %735 = vrot.lane.b32.xlu0 %v666, 8
      %v736 = vpop.permute.xlu0 %735
      %737 = vrot.lane.b32.xlu0 %v667, 8
      %v738 = vpop.permute.xlu0 %737
      %739 = vrot.lane.b32.xlu0 %v668, 8
      %v740 = vpop.permute.xlu0 %739
      %741 = vrot.lane.b32.xlu0 %v669, 8
      %v742 = vpop.permute.xlu0 %741
      %743 = vrot.lane.b32.xlu0 %v670, 8
      %v744 = vpop.permute.xlu0 %743
      %745 = vrot.lane.b32.xlu0 %v671, 8
      %v746 = vpop.permute.xlu0 %745
      %747 = vrot.lane.b32.xlu0 %v672, 8
      %v748 = vpop.permute.xlu0 %747
      %749 = vrot.lane.b32.xlu0 %v673, 8
      %v750 = vpop.permute.xlu0 %749
      %751 = vrot.lane.b32.xlu0 %v674, 8
      %v752 = vpop.permute.xlu0 %751
      %753 = vrot.lane.b32.xlu0 %v675, 8
      %v754 = vpop.permute.xlu0 %753
      %755 = vrot.lane.b32.xlu0 %v676, 8
      %v756 = vpop.permute.xlu0 %755
      %757 = vrot.lane.b32.xlu0 %v677, 8
      %v758 = vpop.permute.xlu0 %757
      %759 = vrot.lane.b32.xlu0 %v678, 8
      %v760 = vpop.permute.xlu0 %759
      %761 = vrot.lane.b32.xlu0 %v679, 8
      %v762 = vpop.permute.xlu0 %761
      %763 = vrot.lane.b32.xlu0 %v680, 8
      %v764 = vpop.permute.xlu0 %763
      %765 = vrot.lane.b32.xlu0 %v681, 8
      %v766 = vpop.permute.xlu0 %765
      %767 = vrot.lane.b32.xlu0 %v682, 8
      %v768 = vpop.permute.xlu0 %767
      %769 = vrot.lane.b32.xlu0 %v683, 8
      %v770 = vpop.permute.xlu0 %769
      %771 = vrot.lane.b32.xlu0 %v684, 8
      %v772 = vpop.permute.xlu0 %771
      %773 = vrot.lane.b32.xlu0 %v685, 8
      %v774 = vpop.permute.xlu0 %773
      %775 = vrot.lane.b32.xlu0 %v686, 8
      %v776 = vpop.permute.xlu0 %775
      %777 = vrot.lane.b32.xlu0 %v687, 8
      %v778 = vpop.permute.xlu0 %777
      %779 = vrot.lane.b32.xlu0 %v688, 8
      %v780 = vpop.permute.xlu0 %779
      %781 = vrot.lane.b32.xlu0 %v689, 8
      %v782 = vpop.permute.xlu0 %781
      %783 = vrot.lane.b32.xlu0 %v690, 8
      %v784 = vpop.permute.xlu0 %783
      %785 = vrot.lane.b32.xlu0 %v691, 8
      %v786 = vpop.permute.xlu0 %785
      %787 = vrot.lane.b32.xlu0 %v692, 8
      %v788 = vpop.permute.xlu0 %787
      %vm821 = vcmask 130112
      %822 = vst.msk [vmem:[#allocation3] sm:$0xff] %vm821, %v726
      %823 = vst.msk [vmem:[#allocation3 + $0x8] sm:$0xff] %vm821, %v728
      %824 = vst.msk [vmem:[#allocation3 + $0x10] sm:$0xff] %vm821, %v730
      %825 = vst.msk [vmem:[#allocation3 + $0x18] sm:$0xff] %vm821, %v732
      %826 = vst.msk [vmem:[#allocation3 + $0x20] sm:$0xff] %vm821, %v734
      %827 = vst.msk [vmem:[#allocation3 + $0x28] sm:$0xff] %vm821, %v736
      %828 = vst.msk [vmem:[#allocation3 + $0x30] sm:$0xff] %vm821, %v738
      %829 = vst.msk [vmem:[#allocation3 + $0x38] sm:$0xff] %vm821, %v740
      %830 = vst.msk [vmem:[#allocation3 + $0x40] sm:$0xff] %vm821, %v742
      %831 = vst.msk [vmem:[#allocation3 + $0x48] sm:$0xff] %vm821, %v744
      %832 = vst.msk [vmem:[#allocation3 + $0x50] sm:$0xff] %vm821, %v746
      %833 = vst.msk [vmem:[#allocation3 + $0x58] sm:$0xff] %vm821, %v748
      %834 = vst.msk [vmem:[#allocation3 + $0x60] sm:$0xff] %vm821, %v750
      %835 = vst.msk [vmem:[#allocation3 + $0x68] sm:$0xff] %vm821, %v752
      %836 = vst.msk [vmem:[#allocation3 + $0x70] sm:$0xff] %vm821, %v754
      %837 = vst.msk [vmem:[#allocation3 + $0x78] sm:$0xff] %vm821, %v756
      %838 = vst.msk [vmem:[#allocation3 + $0x80] sm:$0xff] %vm821, %v758
      %839 = vst.msk [vmem:[#allocation3 + $0x88] sm:$0xff] %vm821, %v760
      %840 = vst.msk [vmem:[#allocation3 + $0x90] sm:$0xff] %vm821, %v762
      %841 = vst.msk [vmem:[#allocation3 + $0x98] sm:$0xff] %vm821, %v764
      %842 = vst.msk [vmem:[#allocation3 + $0xa0] sm:$0xff] %vm821, %v766
      %843 = vst.msk [vmem:[#allocation3 + $0xa8] sm:$0xff] %vm821, %v768
      %844 = vst.msk [vmem:[#allocation3 + $0xb0] sm:$0xff] %vm821, %v770
      %845 = vst.msk [vmem:[#allocation3 + $0xb8] sm:$0xff] %vm821, %v772
      %846 = vst.msk [vmem:[#allocation3 + $0xc0] sm:$0xff] %vm821, %v774
      %847 = vst.msk [vmem:[#allocation3 + $0xc8] sm:$0xff] %vm821, %v776
      %848 = vst.msk [vmem:[#allocation3 + $0xd0] sm:$0xff] %vm821, %v778
      %849 = vst.msk [vmem:[#allocation3 + $0xd8] sm:$0xff] %vm821, %v780
      %850 = vst.msk [vmem:[#allocation3 + $0xe0] sm:$0xff] %vm821, %v782
      %851 = vst.msk [vmem:[#allocation3 + $0xe8] sm:$0xff] %vm821, %v784
      %852 = vst.msk [vmem:[#allocation3 + $0xf0] sm:$0xff] %vm821, %v786
      %853 = vst.msk [vmem:[#allocation3 + $0xf8] sm:$0xff] %vm821, %v788
      %v854 = vld [vmem:[#allocation2 + $0x2] sm:$0xff]
      %v855 = vld [vmem:[#allocation2 + $0xa] sm:$0xff]
      %v856 = vld [vmem:[#allocation2 + $0x1a] sm:$0xff]
      %v857 = vld [vmem:[#allocation2 + $0x22] sm:$0xff]
      %v858 = vld [vmem:[#allocation2 + $0x32] sm:$0xff]
      %v859 = vld [vmem:[#allocation2 + $0x3a] sm:$0xff]
      %v860 = vld [vmem:[#allocation2 + $0x4a] sm:$0xff]
      %v861 = vld [vmem:[#allocation2 + $0x52] sm:$0xff]
      %v862 = vld [vmem:[#allocation2 + $0x62] sm:$0xff]
      %v863 = vld [vmem:[#allocation2 + $0x6a] sm:$0xff]
      %v864 = vld [vmem:[#allocation2 + $0x7a] sm:$0xff]
      %v865 = vld [vmem:[#allocation2 + $0x82] sm:$0xff]
      %v866 = vld [vmem:[#allocation2 + $0x92] sm:$0xff]
      %v867 = vld [vmem:[#allocation2 + $0x9a] sm:$0xff]
      %v868 = vld [vmem:[#allocation2 + $0xaa] sm:$0xff]
      %v869 = vld [vmem:[#allocation2 + $0xb2] sm:$0xff]
      %v870 = vld [vmem:[#allocation2 + $0xc2] sm:$0xff]
      %v871 = vld [vmem:[#allocation2 + $0xca] sm:$0xff]
      %v872 = vld [vmem:[#allocation2 + $0xda] sm:$0xff]
      %v873 = vld [vmem:[#allocation2 + $0xe2] sm:$0xff]
      %v874 = vld [vmem:[#allocation2 + $0xf2] sm:$0xff]
      %v875 = vld [vmem:[#allocation2 + $0xfa] sm:$0xff]
      %v876 = vld [vmem:[#allocation2 + $0x10a] sm:$0xff]
      %v877 = vld [vmem:[#allocation2 + $0x112] sm:$0xff]
      %v878 = vld [vmem:[#allocation2 + $0x122] sm:$0xff]
      %v879 = vld [vmem:[#allocation2 + $0x12a] sm:$0xff]
      %v880 = vld [vmem:[#allocation2 + $0x13a] sm:$0xff]
      %v881 = vld [vmem:[#allocation2 + $0x142] sm:$0xff]
      %v882 = vld [vmem:[#allocation2 + $0x152] sm:$0xff]
      %v883 = vld [vmem:[#allocation2 + $0x15a] sm:$0xff]
      %v884 = vld [vmem:[#allocation2 + $0x16a] sm:$0xff]
      %v885 = vld [vmem:[#allocation2 + $0x172] sm:$0xff]
      %918 = vrot.lane.b32.xlu0 %v854, 16
      %v919 = vpop.permute.xlu0 %918
      %920 = vrot.lane.b32.xlu0 %v855, 16
      %v921 = vpop.permute.xlu0 %920
      %922 = vrot.lane.b32.xlu0 %v856, 16
      %v923 = vpop.permute.xlu0 %922
      %924 = vrot.lane.b32.xlu0 %v857, 16
      %v925 = vpop.permute.xlu0 %924
      %926 = vrot.lane.b32.xlu0 %v858, 16
      %v927 = vpop.permute.xlu0 %926
      %928 = vrot.lane.b32.xlu0 %v859, 16
      %v929 = vpop.permute.xlu0 %928
      %930 = vrot.lane.b32.xlu0 %v860, 16
      %v931 = vpop.permute.xlu0 %930
      %932 = vrot.lane.b32.xlu0 %v861, 16
      %v933 = vpop.permute.xlu0 %932
      %934 = vrot.lane.b32.xlu0 %v862, 16
      %v935 = vpop.permute.xlu0 %934
      %936 = vrot.lane.b32.xlu0 %v863, 16
      %v937 = vpop.permute.xlu0 %936
      %938 = vrot.lane.b32.xlu0 %v864, 16
      %v939 = vpop.permute.xlu0 %938
      %940 = vrot.lane.b32.xlu0 %v865, 16
      %v941 = vpop.permute.xlu0 %940
      %942 = vrot.lane.b32.xlu0 %v866, 16
      %v943 = vpop.permute.xlu0 %942
      %944 = vrot.lane.b32.xlu0 %v867, 16
      %v945 = vpop.permute.xlu0 %944
      %946 = vrot.lane.b32.xlu0 %v868, 16
      %v947 = vpop.permute.xlu0 %946
      %948 = vrot.lane.b32.xlu0 %v869, 16
      %v949 = vpop.permute.xlu0 %948
      %950 = vrot.lane.b32.xlu0 %v870, 16
      %v951 = vpop.permute.xlu0 %950
      %952 = vrot.lane.b32.xlu0 %v871, 16
      %v953 = vpop.permute.xlu0 %952
      %954 = vrot.lane.b32.xlu0 %v872, 16
      %v955 = vpop.permute.xlu0 %954
      %956 = vrot.lane.b32.xlu0 %v873, 16
      %v957 = vpop.permute.xlu0 %956
      %958 = vrot.lane.b32.xlu0 %v874, 16
      %v959 = vpop.permute.xlu0 %958
      %960 = vrot.lane.b32.xlu0 %v875, 16
      %v961 = vpop.permute.xlu0 %960
      %962 = vrot.lane.b32.xlu0 %v876, 16
      %v963 = vpop.permute.xlu0 %962
      %964 = vrot.lane.b32.xlu0 %v877, 16
      %v965 = vpop.permute.xlu0 %964
      %966 = vrot.lane.b32.xlu0 %v878, 16
      %v967 = vpop.permute.xlu0 %966
      %968 = vrot.lane.b32.xlu0 %v879, 16
      %v969 = vpop.permute.xlu0 %968
      %970 = vrot.lane.b32.xlu0 %v880, 16
      %v971 = vpop.permute.xlu0 %970
      %972 = vrot.lane.b32.xlu0 %v881, 16
      %v973 = vpop.permute.xlu0 %972
      %974 = vrot.lane.b32.xlu0 %v882, 16
      %v975 = vpop.permute.xlu0 %974
      %976 = vrot.lane.b32.xlu0 %v883, 16
      %v977 = vpop.permute.xlu0 %976
      %978 = vrot.lane.b32.xlu0 %v884, 16
      %v979 = vpop.permute.xlu0 %978
      %980 = vrot.lane.b32.xlu0 %v885, 16
      %v981 = vpop.permute.xlu0 %980
      %vm1014 = vcmask 195712
      %1015 = vst.msk [vmem:[#allocation3] sm:$0xff] %vm1014, %v919
      %1016 = vst.msk [vmem:[#allocation3 + $0x8] sm:$0xff] %vm1014, %v921
      %1017 = vst.msk [vmem:[#allocation3 + $0x10] sm:$0xff] %vm1014, %v923
      %1018 = vst.msk [vmem:[#allocation3 + $0x18] sm:$0xff] %vm1014, %v925
      %1019 = vst.msk [vmem:[#allocation3 + $0x20] sm:$0xff] %vm1014, %v927
      %1020 = vst.msk [vmem:[#allocation3 + $0x28] sm:$0xff] %vm1014, %v929
      %1021 = vst.msk [vmem:[#allocation3 + $0x30] sm:$0xff] %vm1014, %v931
      %1022 = vst.msk [vmem:[#allocation3 + $0x38] sm:$0xff] %vm1014, %v933
      %1023 = vst.msk [vmem:[#allocation3 + $0x40] sm:$0xff] %vm1014, %v935
      %1024 = vst.msk [vmem:[#allocation3 + $0x48] sm:$0xff] %vm1014, %v937
      %1025 = vst.msk [vmem:[#allocation3 + $0x50] sm:$0xff] %vm1014, %v939
      %1026 = vst.msk [vmem:[#allocation3 + $0x58] sm:$0xff] %vm1014, %v941
      %1027 = vst.msk [vmem:[#allocation3 + $0x60] sm:$0xff] %vm1014, %v943
      %1028 = vst.msk [vmem:[#allocation3 + $0x68] sm:$0xff] %vm1014, %v945
      %1029 = vst.msk [vmem:[#allocation3 + $0x70] sm:$0xff] %vm1014, %v947
      %1030 = vst.msk [vmem:[#allocation3 + $0x78] sm:$0xff] %vm1014, %v949
      %1031 = vst.msk [vmem:[#allocation3 + $0x80] sm:$0xff] %vm1014, %v951
      %1032 = vst.msk [vmem:[#allocation3 + $0x88] sm:$0xff] %vm1014, %v953
      %1033 = vst.msk [vmem:[#allocation3 + $0x90] sm:$0xff] %vm1014, %v955
      %1034 = vst.msk [vmem:[#allocation3 + $0x98] sm:$0xff] %vm1014, %v957
      %1035 = vst.msk [vmem:[#allocation3 + $0xa0] sm:$0xff] %vm1014, %v959
      %1036 = vst.msk [vmem:[#allocation3 + $0xa8] sm:$0xff] %vm1014, %v961
      %1037 = vst.msk [vmem:[#allocation3 + $0xb0] sm:$0xff] %vm1014, %v963
      %1038 = vst.msk [vmem:[#allocation3 + $0xb8] sm:$0xff] %vm1014, %v965
      %1039 = vst.msk [vmem:[#allocation3 + $0xc0] sm:$0xff] %vm1014, %v967
      %1040 = vst.msk [vmem:[#allocation3 + $0xc8] sm:$0xff] %vm1014, %v969
      %1041 = vst.msk [vmem:[#allocation3 + $0xd0] sm:$0xff] %vm1014, %v971
      %1042 = vst.msk [vmem:[#allocation3 + $0xd8] sm:$0xff] %vm1014, %v973
      %1043 = vst.msk [vmem:[#allocation3 + $0xe0] sm:$0xff] %vm1014, %v975
      %1044 = vst.msk [vmem:[#allocation3 + $0xe8] sm:$0xff] %vm1014, %v977
      %1045 = vst.msk [vmem:[#allocation3 + $0xf0] sm:$0xff] %vm1014, %v979
      %1046 = vst.msk [vmem:[#allocation3 + $0xf8] sm:$0xff] %vm1014, %v981
      %v1047 = vld [vmem:[%s548] sm:$0xff]
      %v1048 = vld [vmem:[%s548 + $0x8] sm:$0xff]
      %v1049 = vld [vmem:[%s548 + $0x18] sm:$0xff]
      %v1050 = vld [vmem:[%s548 + $0x20] sm:$0xff]
      %v1051 = vld [vmem:[%s548 + $0x30] sm:$0xff]
      %v1052 = vld [vmem:[%s548 + $0x38] sm:$0xff]
      %v1053 = vld [vmem:[%s548 + $0x48] sm:$0xff]
      %v1054 = vld [vmem:[%s548 + $0x50] sm:$0xff]
      %v1055 = vld [vmem:[%s548 + $0x60] sm:$0xff]
      %v1056 = vld [vmem:[%s548 + $0x68] sm:$0xff]
      %v1057 = vld [vmem:[%s548 + $0x78] sm:$0xff]
      %v1058 = vld [vmem:[%s548 + $0x80] sm:$0xff]
      %v1059 = vld [vmem:[%s548 + $0x90] sm:$0xff]
      %v1060 = vld [vmem:[%s548 + $0x98] sm:$0xff]
      %v1061 = vld [vmem:[%s548 + $0xa8] sm:$0xff]
      %v1062 = vld [vmem:[%s548 + $0xb0] sm:$0xff]
      %v1063 = vld [vmem:[%s548 + $0xc0] sm:$0xff]
      %v1064 = vld [vmem:[%s548 + $0xc8] sm:$0xff]
      %v1065 = vld [vmem:[%s548 + $0xd8] sm:$0xff]
      %v1066 = vld [vmem:[%s548 + $0xe0] sm:$0xff]
      %v1067 = vld [vmem:[%s548 + $0xf0] sm:$0xff]
      %v1068 = vld [vmem:[%s548 + $0xf8] sm:$0xff]
      %v1069 = vld [vmem:[%s548 + $0x108] sm:$0xff]
      %v1070 = vld [vmem:[%s548 + $0x110] sm:$0xff]
      %v1071 = vld [vmem:[%s548 + $0x120] sm:$0xff]
      %v1072 = vld [vmem:[%s548 + $0x128] sm:$0xff]
      %v1073 = vld [vmem:[%s548 + $0x138] sm:$0xff]
      %v1074 = vld [vmem:[%s548 + $0x140] sm:$0xff]
      %v1075 = vld [vmem:[%s548 + $0x150] sm:$0xff]
      %v1076 = vld [vmem:[%s548 + $0x158] sm:$0xff]
      %v1077 = vld [vmem:[%s548 + $0x168] sm:$0xff]
      %v1078 = vld [vmem:[%s548 + $0x170] sm:$0xff]
      %1111 = vrot.lane.b32.xlu0 %v1047, 24
      %v1112 = vpop.permute.xlu0 %1111
      %1113 = vrot.lane.b32.xlu0 %v1048, 24
      %v1114 = vpop.permute.xlu0 %1113
      %1115 = vrot.lane.b32.xlu0 %v1049, 24
      %v1116 = vpop.permute.xlu0 %1115
      %1117 = vrot.lane.b32.xlu0 %v1050, 24
      %v1118 = vpop.permute.xlu0 %1117
      %1119 = vrot.lane.b32.xlu0 %v1051, 24
      %v1120 = vpop.permute.xlu0 %1119
      %1121 = vrot.lane.b32.xlu0 %v1052, 24
      %v1122 = vpop.permute.xlu0 %1121
      %1123 = vrot.lane.b32.xlu0 %v1053, 24
      %v1124 = vpop.permute.xlu0 %1123
      %1125 = vrot.lane.b32.xlu0 %v1054, 24
      %v1126 = vpop.permute.xlu0 %1125
      %1127 = vrot.lane.b32.xlu0 %v1055, 24
      %v1128 = vpop.permute.xlu0 %1127
      %1129 = vrot.lane.b32.xlu0 %v1056, 24
      %v1130 = vpop.permute.xlu0 %1129
      %1131 = vrot.lane.b32.xlu0 %v1057, 24
      %v1132 = vpop.permute.xlu0 %1131
      %1133 = vrot.lane.b32.xlu0 %v1058, 24
      %v1134 = vpop.permute.xlu0 %1133
      %1135 = vrot.lane.b32.xlu0 %v1059, 24
      %v1136 = vpop.permute.xlu0 %1135
      %1137 = vrot.lane.b32.xlu0 %v1060, 24
      %v1138 = vpop.permute.xlu0 %1137
      %1139 = vrot.lane.b32.xlu0 %v1061, 24
      %v1140 = vpop.permute.xlu0 %1139
      %1141 = vrot.lane.b32.xlu0 %v1062, 24
      %v1142 = vpop.permute.xlu0 %1141
      %1143 = vrot.lane.b32.xlu0 %v1063, 24
      %v1144 = vpop.permute.xlu0 %1143
      %1145 = vrot.lane.b32.xlu0 %v1064, 24
      %v1146 = vpop.permute.xlu0 %1145
      %1147 = vrot.lane.b32.xlu0 %v1065, 24
      %v1148 = vpop.permute.xlu0 %1147
      %1149 = vrot.lane.b32.xlu0 %v1066, 24
      %v1150 = vpop.permute.xlu0 %1149
      %1151 = vrot.lane.b32.xlu0 %v1067, 24
      %v1152 = vpop.permute.xlu0 %1151
      %1153 = vrot.lane.b32.xlu0 %v1068, 24
      %v1154 = vpop.permute.xlu0 %1153
      %1155 = vrot.lane.b32.xlu0 %v1069, 24
      %v1156 = vpop.permute.xlu0 %1155
      %1157 = vrot.lane.b32.xlu0 %v1070, 24
      %v1158 = vpop.permute.xlu0 %1157
      %1159 = vrot.lane.b32.xlu0 %v1071, 24
      %v1160 = vpop.permute.xlu0 %1159
      %1161 = vrot.lane.b32.xlu0 %v1072, 24
      %v1162 = vpop.permute.xlu0 %1161
      %1163 = vrot.lane.b32.xlu0 %v1073, 24
      %v1164 = vpop.permute.xlu0 %1163
      %1165 = vrot.lane.b32.xlu0 %v1074, 24
      %v1166 = vpop.permute.xlu0 %1165
      %1167 = vrot.lane.b32.xlu0 %v1075, 24
      %v1168 = vpop.permute.xlu0 %1167
      %1169 = vrot.lane.b32.xlu0 %v1076, 24
      %v1170 = vpop.permute.xlu0 %1169
      %1171 = vrot.lane.b32.xlu0 %v1077, 24
      %v1172 = vpop.permute.xlu0 %1171
      %1173 = vrot.lane.b32.xlu0 %v1078, 24
      %v1174 = vpop.permute.xlu0 %1173
      %vm1207 = vcmask 261312
      %1208 = vst.msk [vmem:[#allocation3] sm:$0xff] %vm1207, %v1112
      %1209 = vst.msk [vmem:[#allocation3 + $0x8] sm:$0xff] %vm1207, %v1114
      %1210 = vst.msk [vmem:[#allocation3 + $0x10] sm:$0xff] %vm1207, %v1116
      %1211 = vst.msk [vmem:[#allocation3 + $0x18] sm:$0xff] %vm1207, %v1118
      %1212 = vst.msk [vmem:[#allocation3 + $0x20] sm:$0xff] %vm1207, %v1120
      %1213 = vst.msk [vmem:[#allocation3 + $0x28] sm:$0xff] %vm1207, %v1122
      %1214 = vst.msk [vmem:[#allocation3 + $0x30] sm:$0xff] %vm1207, %v1124
      %1215 = vst.msk [vmem:[#allocation3 + $0x38] sm:$0xff] %vm1207, %v1126
      %1216 = vst.msk [vmem:[#allocation3 + $0x40] sm:$0xff] %vm1207, %v1128
      %1217 = vst.msk [vmem:[#allocation3 + $0x48] sm:$0xff] %vm1207, %v1130
      %1218 = vst.msk [vmem:[#allocation3 + $0x50] sm:$0xff] %vm1207, %v1132
      %1219 = vst.msk [vmem:[#allocation3 + $0x58] sm:$0xff] %vm1207, %v1134
      %1220 = vst.msk [vmem:[#allocation3 + $0x60] sm:$0xff] %vm1207, %v1136
      %1221 = vst.msk [vmem:[#allocation3 + $0x68] sm:$0xff] %vm1207, %v1138
      %1222 = vst.msk [vmem:[#allocation3 + $0x70] sm:$0xff] %vm1207, %v1140
      %1223 = vst.msk [vmem:[#allocation3 + $0x78] sm:$0xff] %vm1207, %v1142
      %1224 = vst.msk [vmem:[#allocation3 + $0x80] sm:$0xff] %vm1207, %v1144
      %1225 = vst.msk [vmem:[#allocation3 + $0x88] sm:$0xff] %vm1207, %v1146
      %1226 = vst.msk [vmem:[#allocation3 + $0x90] sm:$0xff] %vm1207, %v1148
      %1227 = vst.msk [vmem:[#allocation3 + $0x98] sm:$0xff] %vm1207, %v1150
      %1228 = vst.msk [vmem:[#allocation3 + $0xa0] sm:$0xff] %vm1207, %v1152
      %1229 = vst.msk [vmem:[#allocation3 + $0xa8] sm:$0xff] %vm1207, %v1154
      %1230 = vst.msk [vmem:[#allocation3 + $0xb0] sm:$0xff] %vm1207, %v1156
      %1231 = vst.msk [vmem:[#allocation3 + $0xb8] sm:$0xff] %vm1207, %v1158
      %1232 = vst.msk [vmem:[#allocation3 + $0xc0] sm:$0xff] %vm1207, %v1160
      %1233 = vst.msk [vmem:[#allocation3 + $0xc8] sm:$0xff] %vm1207, %v1162
      %1234 = vst.msk [vmem:[#allocation3 + $0xd0] sm:$0xff] %vm1207, %v1164
      %1235 = vst.msk [vmem:[#allocation3 + $0xd8] sm:$0xff] %vm1207, %v1166
      %1236 = vst.msk [vmem:[#allocation3 + $0xe0] sm:$0xff] %vm1207, %v1168
      %1237 = vst.msk [vmem:[#allocation3 + $0xe8] sm:$0xff] %vm1207, %v1170
      %1238 = vst.msk [vmem:[#allocation3 + $0xf0] sm:$0xff] %vm1207, %v1172
      %1239 = vst.msk [vmem:[#allocation3 + $0xf8] sm:$0xff] %vm1207, %v1174
      %v1240 = vld [vmem:[%s548 + $0x1] sm:$0xff]
      %v1241 = vld [vmem:[%s548 + $0x9] sm:$0xff]
      %v1242 = vld [vmem:[%s548 + $0x19] sm:$0xff]
      %v1243 = vld [vmem:[%s548 + $0x21] sm:$0xff]
      %v1244 = vld [vmem:[%s548 + $0x31] sm:$0xff]
      %v1245 = vld [vmem:[%s548 + $0x39] sm:$0xff]
      %v1246 = vld [vmem:[%s548 + $0x49] sm:$0xff]
      %v1247 = vld [vmem:[%s548 + $0x51] sm:$0xff]
      %v1248 = vld [vmem:[%s548 + $0x61] sm:$0xff]
      %v1249 = vld [vmem:[%s548 + $0x69] sm:$0xff]
      %v1250 = vld [vmem:[%s548 + $0x79] sm:$0xff]
      %v1251 = vld [vmem:[%s548 + $0x81] sm:$0xff]
      %v1252 = vld [vmem:[%s548 + $0x91] sm:$0xff]
      %v1253 = vld [vmem:[%s548 + $0x99] sm:$0xff]
      %v1254 = vld [vmem:[%s548 + $0xa9] sm:$0xff]
      %v1255 = vld [vmem:[%s548 + $0xb1] sm:$0xff]
      %v1256 = vld [vmem:[%s548 + $0xc1] sm:$0xff]
      %v1257 = vld [vmem:[%s548 + $0xc9] sm:$0xff]
      %v1258 = vld [vmem:[%s548 + $0xd9] sm:$0xff]
      %v1259 = vld [vmem:[%s548 + $0xe1] sm:$0xff]
      %v1260 = vld [vmem:[%s548 + $0xf1] sm:$0xff]
      %v1261 = vld [vmem:[%s548 + $0xf9] sm:$0xff]
      %v1262 = vld [vmem:[%s548 + $0x109] sm:$0xff]
      %v1263 = vld [vmem:[%s548 + $0x111] sm:$0xff]
      %v1264 = vld [vmem:[%s548 + $0x121] sm:$0xff]
      %v1265 = vld [vmem:[%s548 + $0x129] sm:$0xff]
      %v1266 = vld [vmem:[%s548 + $0x139] sm:$0xff]
      %v1267 = vld [vmem:[%s548 + $0x141] sm:$0xff]
      %v1268 = vld [vmem:[%s548 + $0x151] sm:$0xff]
      %v1269 = vld [vmem:[%s548 + $0x159] sm:$0xff]
      %v1270 = vld [vmem:[%s548 + $0x169] sm:$0xff]
      %v1271 = vld [vmem:[%s548 + $0x171] sm:$0xff]
      %1304 = vrot.lane.b32.xlu0 %v1240, 32
      %v1305 = vpop.permute.xlu0 %1304
      %1306 = vrot.lane.b32.xlu0 %v1241, 32
      %v1307 = vpop.permute.xlu0 %1306
      %1308 = vrot.lane.b32.xlu0 %v1242, 32
      %v1309 = vpop.permute.xlu0 %1308
      %1310 = vrot.lane.b32.xlu0 %v1243, 32
      %v1311 = vpop.permute.xlu0 %1310
      %1312 = vrot.lane.b32.xlu0 %v1244, 32
      %v1313 = vpop.permute.xlu0 %1312
      %1314 = vrot.lane.b32.xlu0 %v1245, 32
      %v1315 = vpop.permute.xlu0 %1314
      %1316 = vrot.lane.b32.xlu0 %v1246, 32
      %v1317 = vpop.permute.xlu0 %1316
      %1318 = vrot.lane.b32.xlu0 %v1247, 32
      %v1319 = vpop.permute.xlu0 %1318
      %1320 = vrot.lane.b32.xlu0 %v1248, 32
      %v1321 = vpop.permute.xlu0 %1320
      %1322 = vrot.lane.b32.xlu0 %v1249, 32
      %v1323 = vpop.permute.xlu0 %1322
      %1324 = vrot.lane.b32.xlu0 %v1250, 32
      %v1325 = vpop.permute.xlu0 %1324
      %1326 = vrot.lane.b32.xlu0 %v1251, 32
      %v1327 = vpop.permute.xlu0 %1326
      %1328 = vrot.lane.b32.xlu0 %v1252, 32
      %v1329 = vpop.permute.xlu0 %1328
      %1330 = vrot.lane.b32.xlu0 %v1253, 32
      %v1331 = vpop.permute.xlu0 %1330
      %1332 = vrot.lane.b32.xlu0 %v1254, 32
      %v1333 = vpop.permute.xlu0 %1332
      %1334 = vrot.lane.b32.xlu0 %v1255, 32
      %v1335 = vpop.permute.xlu0 %1334
      %1336 = vrot.lane.b32.xlu0 %v1256, 32
      %v1337 = vpop.permute.xlu0 %1336
      %1338 = vrot.lane.b32.xlu0 %v1257, 32
      %v1339 = vpop.permute.xlu0 %1338
      %1340 = vrot.lane.b32.xlu0 %v1258, 32
      %v1341 = vpop.permute.xlu0 %1340
      %1342 = vrot.lane.b32.xlu0 %v1259, 32
      %v1343 = vpop.permute.xlu0 %1342
      %1344 = vrot.lane.b32.xlu0 %v1260, 32
      %v1345 = vpop.permute.xlu0 %1344
      %1346 = vrot.lane.b32.xlu0 %v1261, 32
      %v1347 = vpop.permute.xlu0 %1346
      %1348 = vrot.lane.b32.xlu0 %v1262, 32
      %v1349 = vpop.permute.xlu0 %1348
      %1350 = vrot.lane.b32.xlu0 %v1263, 32
      %v1351 = vpop.permute.xlu0 %1350
      %1352 = vrot.lane.b32.xlu0 %v1264, 32
      %v1353 = vpop.permute.xlu0 %1352
      %1354 = vrot.lane.b32.xlu0 %v1265, 32
      %v1355 = vpop.permute.xlu0 %1354
      %1356 = vrot.lane.b32.xlu0 %v1266, 32
      %v1357 = vpop.permute.xlu0 %1356
      %1358 = vrot.lane.b32.xlu0 %v1267, 32
      %v1359 = vpop.permute.xlu0 %1358
      %1360 = vrot.lane.b32.xlu0 %v1268, 32
      %v1361 = vpop.permute.xlu0 %1360
      %1362 = vrot.lane.b32.xlu0 %v1269, 32
      %v1363 = vpop.permute.xlu0 %1362
      %1364 = vrot.lane.b32.xlu0 %v1270, 32
      %v1365 = vpop.permute.xlu0 %1364
      %1366 = vrot.lane.b32.xlu0 %v1271, 32
      %v1367 = vpop.permute.xlu0 %1366
      %vm1400 = vcmask 326912
      %1401 = vst.msk [vmem:[#allocation3] sm:$0xff] %vm1400, %v1305
      %1402 = vst.msk [vmem:[#allocation3 + $0x8] sm:$0xff] %vm1400, %v1307
      %1403 = vst.msk [vmem:[#allocation3 + $0x10] sm:$0xff] %vm1400, %v1309
      %1404 = vst.msk [vmem:[#allocation3 + $0x18] sm:$0xff] %vm1400, %v1311
      %1405 = vst.msk [vmem:[#allocation3 + $0x20] sm:$0xff] %vm1400, %v1313
      %1406 = vst.msk [vmem:[#allocation3 + $0x28] sm:$0xff] %vm1400, %v1315
      %1407 = vst.msk [vmem:[#allocation3 + $0x30] sm:$0xff] %vm1400, %v1317
      %1408 = vst.msk [vmem:[#allocation3 + $0x38] sm:$0xff] %vm1400, %v1319
      %1409 = vst.msk [vmem:[#allocation3 + $0x40] sm:$0xff] %vm1400, %v1321
      %1410 = vst.msk [vmem:[#allocation3 + $0x48] sm:$0xff] %vm1400, %v1323
      %1411 = vst.msk [vmem:[#allocation3 + $0x50] sm:$0xff] %vm1400, %v1325
      %1412 = vst.msk [vmem:[#allocation3 + $0x58] sm:$0xff] %vm1400, %v1327
      %1413 = vst.msk [vmem:[#allocation3 + $0x60] sm:$0xff] %vm1400, %v1329
      %1414 = vst.msk [vmem:[#allocation3 + $0x68] sm:$0xff] %vm1400, %v1331
      %1415 = vst.msk [vmem:[#allocation3 + $0x70] sm:$0xff] %vm1400, %v1333
      %1416 = vst.msk [vmem:[#allocation3 + $0x78] sm:$0xff] %vm1400, %v1335
      %1417 = vst.msk [vmem:[#allocation3 + $0x80] sm:$0xff] %vm1400, %v1337
      %1418 = vst.msk [vmem:[#allocation3 + $0x88] sm:$0xff] %vm1400, %v1339
      %1419 = vst.msk [vmem:[#allocation3 + $0x90] sm:$0xff] %vm1400, %v1341
      %1420 = vst.msk [vmem:[#allocation3 + $0x98] sm:$0xff] %vm1400, %v1343
      %1421 = vst.msk [vmem:[#allocation3 + $0xa0] sm:$0xff] %vm1400, %v1345
      %1422 = vst.msk [vmem:[#allocation3 + $0xa8] sm:$0xff] %vm1400, %v1347
      %1423 = vst.msk [vmem:[#allocation3 + $0xb0] sm:$0xff] %vm1400, %v1349
      %1424 = vst.msk [vmem:[#allocation3 + $0xb8] sm:$0xff] %vm1400, %v1351
      %1425 = vst.msk [vmem:[#allocation3 + $0xc0] sm:$0xff] %vm1400, %v1353
      %1426 = vst.msk [vmem:[#allocation3 + $0xc8] sm:$0xff] %vm1400, %v1355
      %1427 = vst.msk [vmem:[#allocation3 + $0xd0] sm:$0xff] %vm1400, %v1357
      %1428 = vst.msk [vmem:[#allocation3 + $0xd8] sm:$0xff] %vm1400, %v1359
      %1429 = vst.msk [vmem:[#allocation3 + $0xe0] sm:$0xff] %vm1400, %v1361
      %1430 = vst.msk [vmem:[#allocation3 + $0xe8] sm:$0xff] %vm1400, %v1363
      %1431 = vst.msk [vmem:[#allocation3 + $0xf0] sm:$0xff] %vm1400, %v1365
      %1432 = vst.msk [vmem:[#allocation3 + $0xf8] sm:$0xff] %vm1400, %v1367
      %v1433 = vld [vmem:[%s548 + $0x2] sm:$0xff]
      %v1434 = vld [vmem:[%s548 + $0xa] sm:$0xff]
      %v1435 = vld [vmem:[%s548 + $0x1a] sm:$0xff]
      %v1436 = vld [vmem:[%s548 + $0x22] sm:$0xff]
      %v1437 = vld [vmem:[%s548 + $0x32] sm:$0xff]
      %v1438 = vld [vmem:[%s548 + $0x3a] sm:$0xff]
      %v1439 = vld [vmem:[%s548 + $0x4a] sm:$0xff]
      %v1440 = vld [vmem:[%s548 + $0x52] sm:$0xff]
      %v1441 = vld [vmem:[%s548 + $0x62] sm:$0xff]
      %v1442 = vld [vmem:[%s548 + $0x6a] sm:$0xff]
      %v1443 = vld [vmem:[%s548 + $0x7a] sm:$0xff]
      %v1444 = vld [vmem:[%s548 + $0x82] sm:$0xff]
      %v1445 = vld [vmem:[%s548 + $0x92] sm:$0xff]
      %v1446 = vld [vmem:[%s548 + $0x9a] sm:$0xff]
      %v1447 = vld [vmem:[%s548 + $0xaa] sm:$0xff]
      %v1448 = vld [vmem:[%s548 + $0xb2] sm:$0xff]
      %v1449 = vld [vmem:[%s548 + $0xc2] sm:$0xff]
      %v1450 = vld [vmem:[%s548 + $0xca] sm:$0xff]
      %v1451 = vld [vmem:[%s548 + $0xda] sm:$0xff]
      %v1452 = vld [vmem:[%s548 + $0xe2] sm:$0xff]
      %v1453 = vld [vmem:[%s548 + $0xf2] sm:$0xff]
      %v1454 = vld [vmem:[%s548 + $0xfa] sm:$0xff]
      %v1455 = vld [vmem:[%s548 + $0x10a] sm:$0xff]
      %v1456 = vld [vmem:[%s548 + $0x112] sm:$0xff]
      %v1457 = vld [vmem:[%s548 + $0x122] sm:$0xff]
      %v1458 = vld [vmem:[%s548 + $0x12a] sm:$0xff]
      %v1459 = vld [vmem:[%s548 + $0x13a] sm:$0xff]
      %v1460 = vld [vmem:[%s548 + $0x142] sm:$0xff]
      %v1461 = vld [vmem:[%s548 + $0x152] sm:$0xff]
      %v1462 = vld [vmem:[%s548 + $0x15a] sm:$0xff]
      %v1463 = vld [vmem:[%s548 + $0x16a] sm:$0xff]
      %v1464 = vld [vmem:[%s548 + $0x172] sm:$0xff]
      %1497 = vrot.lane.b32.xlu0 %v1433, 40
      %v1498 = vpop.permute.xlu0 %1497
      %1499 = vrot.lane.b32.xlu0 %v1434, 40
      %v1500 = vpop.permute.xlu0 %1499
      %1501 = vrot.lane.b32.xlu0 %v1435, 40
      %v1502 = vpop.permute.xlu0 %1501
      %1503 = vrot.lane.b32.xlu0 %v1436, 40
      %v1504 = vpop.permute.xlu0 %1503
      %1505 = vrot.lane.b32.xlu0 %v1437, 40
      %v1506 = vpop.permute.xlu0 %1505
      %1507 = vrot.lane.b32.xlu0 %v1438, 40
      %v1508 = vpop.permute.xlu0 %1507
      %1509 = vrot.lane.b32.xlu0 %v1439, 40
      %v1510 = vpop.permute.xlu0 %1509
      %1511 = vrot.lane.b32.xlu0 %v1440, 40
      %v1512 = vpop.permute.xlu0 %1511
      %1513 = vrot.lane.b32.xlu0 %v1441, 40
      %v1514 = vpop.permute.xlu0 %1513
      %1515 = vrot.lane.b32.xlu0 %v1442, 40
      %v1516 = vpop.permute.xlu0 %1515
      %1517 = vrot.lane.b32.xlu0 %v1443, 40
      %v1518 = vpop.permute.xlu0 %1517
      %1519 = vrot.lane.b32.xlu0 %v1444, 40
      %v1520 = vpop.permute.xlu0 %1519
      %1521 = vrot.lane.b32.xlu0 %v1445, 40
      %v1522 = vpop.permute.xlu0 %1521
      %1523 = vrot.lane.b32.xlu0 %v1446, 40
      %v1524 = vpop.permute.xlu0 %1523
      %1525 = vrot.lane.b32.xlu0 %v1447, 40
      %v1526 = vpop.permute.xlu0 %1525
      %1527 = vrot.lane.b32.xlu0 %v1448, 40
      %v1528 = vpop.permute.xlu0 %1527
      %1529 = vrot.lane.b32.xlu0 %v1449, 40
      %v1530 = vpop.permute.xlu0 %1529
      %1531 = vrot.lane.b32.xlu0 %v1450, 40
      %v1532 = vpop.permute.xlu0 %1531
      %1533 = vrot.lane.b32.xlu0 %v1451, 40
      %v1534 = vpop.permute.xlu0 %1533
      %1535 = vrot.lane.b32.xlu0 %v1452, 40
      %v1536 = vpop.permute.xlu0 %1535
      %1537 = vrot.lane.b32.xlu0 %v1453, 40
      %v1538 = vpop.permute.xlu0 %1537
      %1539 = vrot.lane.b32.xlu0 %v1454, 40
      %v1540 = vpop.permute.xlu0 %1539
      %1541 = vrot.lane.b32.xlu0 %v1455, 40
      %v1542 = vpop.permute.xlu0 %1541
      %1543 = vrot.lane.b32.xlu0 %v1456, 40
      %v1544 = vpop.permute.xlu0 %1543
      %1545 = vrot.lane.b32.xlu0 %v1457, 40
      %v1546 = vpop.permute.xlu0 %1545
      %1547 = vrot.lane.b32.xlu0 %v1458, 40
      %v1548 = vpop.permute.xlu0 %1547
      %1549 = vrot.lane.b32.xlu0 %v1459, 40
      %v1550 = vpop.permute.xlu0 %1549
      %1551 = vrot.lane.b32.xlu0 %v1460, 40
      %v1552 = vpop.permute.xlu0 %1551
      %1553 = vrot.lane.b32.xlu0 %v1461, 40
      %v1554 = vpop.permute.xlu0 %1553
      %1555 = vrot.lane.b32.xlu0 %v1462, 40
      %v1556 = vpop.permute.xlu0 %1555
      %1557 = vrot.lane.b32.xlu0 %v1463, 40
      %v1558 = vpop.permute.xlu0 %1557
      %1559 = vrot.lane.b32.xlu0 %v1464, 40
      %v1560 = vpop.permute.xlu0 %1559
      %vm1593 = vcmask 392512
      %1594 = vst.msk [vmem:[#allocation3] sm:$0xff] %vm1593, %v1498
      %1595 = vst.msk [vmem:[#allocation3 + $0x8] sm:$0xff] %vm1593, %v1500
      %1596 = vst.msk [vmem:[#allocation3 + $0x10] sm:$0xff] %vm1593, %v1502
      %1597 = vst.msk [vmem:[#allocation3 + $0x18] sm:$0xff] %vm1593, %v1504
      %1598 = vst.msk [vmem:[#allocation3 + $0x20] sm:$0xff] %vm1593, %v1506
      %1599 = vst.msk [vmem:[#allocation3 + $0x28] sm:$0xff] %vm1593, %v1508
      %1600 = vst.msk [vmem:[#allocation3 + $0x30] sm:$0xff] %vm1593, %v1510
      %1601 = vst.msk [vmem:[#allocation3 + $0x38] sm:$0xff] %vm1593, %v1512
      %1602 = vst.msk [vmem:[#allocation3 + $0x40] sm:$0xff] %vm1593, %v1514
      %1603 = vst.msk [vmem:[#allocation3 + $0x48] sm:$0xff] %vm1593, %v1516
      %1604 = vst.msk [vmem:[#allocation3 + $0x50] sm:$0xff] %vm1593, %v1518
      %1605 = vst.msk [vmem:[#allocation3 + $0x58] sm:$0xff] %vm1593, %v1520
      %1606 = vst.msk [vmem:[#allocation3 + $0x60] sm:$0xff] %vm1593, %v1522
      %1607 = vst.msk [vmem:[#allocation3 + $0x68] sm:$0xff] %vm1593, %v1524
      %1608 = vst.msk [vmem:[#allocation3 + $0x70] sm:$0xff] %vm1593, %v1526
      %1609 = vst.msk [vmem:[#allocation3 + $0x78] sm:$0xff] %vm1593, %v1528
      %1610 = vst.msk [vmem:[#allocation3 + $0x80] sm:$0xff] %vm1593, %v1530
      %1611 = vst.msk [vmem:[#allocation3 + $0x88] sm:$0xff] %vm1593, %v1532
      %1612 = vst.msk [vmem:[#allocation3 + $0x90] sm:$0xff] %vm1593, %v1534
      %1613 = vst.msk [vmem:[#allocation3 + $0x98] sm:$0xff] %vm1593, %v1536
      %1614 = vst.msk [vmem:[#allocation3 + $0xa0] sm:$0xff] %vm1593, %v1538
      %1615 = vst.msk [vmem:[#allocation3 + $0xa8] sm:$0xff] %vm1593, %v1540
      %1616 = vst.msk [vmem:[#allocation3 + $0xb0] sm:$0xff] %vm1593, %v1542
      %1617 = vst.msk [vmem:[#allocation3 + $0xb8] sm:$0xff] %vm1593, %v1544
      %1618 = vst.msk [vmem:[#allocation3 + $0xc0] sm:$0xff] %vm1593, %v1546
      %1619 = vst.msk [vmem:[#allocation3 + $0xc8] sm:$0xff] %vm1593, %v1548
      %1620 = vst.msk [vmem:[#allocation3 + $0xd0] sm:$0xff] %vm1593, %v1550
      %1621 = vst.msk [vmem:[#allocation3 + $0xd8] sm:$0xff] %vm1593, %v1552
      %1622 = vst.msk [vmem:[#allocation3 + $0xe0] sm:$0xff] %vm1593, %v1554
      %1623 = vst.msk [vmem:[#allocation3 + $0xe8] sm:$0xff] %vm1593, %v1556
      %1624 = vst.msk [vmem:[#allocation3 + $0xf0] sm:$0xff] %vm1593, %v1558
      %1625 = vst.msk [vmem:[#allocation3 + $0xf8] sm:$0xff] %vm1593, %v1560
      %s1626 = scalar_lea.vmem [#allocation2], 48
      %v1627 = vld [vmem:[%s1626] sm:$0xff]
      %v1628 = vld [vmem:[%s1626 + $0x8] sm:$0xff]
      %v1629 = vld [vmem:[%s1626 + $0x18] sm:$0xff]
      %v1630 = vld [vmem:[%s1626 + $0x20] sm:$0xff]
      %v1631 = vld [vmem:[%s1626 + $0x30] sm:$0xff]
      %v1632 = vld [vmem:[%s1626 + $0x38] sm:$0xff]
      %v1633 = vld [vmem:[%s1626 + $0x48] sm:$0xff]
      %v1634 = vld [vmem:[%s1626 + $0x50] sm:$0xff]
      %v1635 = vld [vmem:[%s1626 + $0x60] sm:$0xff]
      %v1636 = vld [vmem:[%s1626 + $0x68] sm:$0xff]
      %v1637 = vld [vmem:[%s1626 + $0x78] sm:$0xff]
      %v1638 = vld [vmem:[%s1626 + $0x80] sm:$0xff]
      %v1639 = vld [vmem:[%s1626 + $0x90] sm:$0xff]
      %v1640 = vld [vmem:[%s1626 + $0x98] sm:$0xff]
      %v1641 = vld [vmem:[%s1626 + $0xa8] sm:$0xff]
      %v1642 = vld [vmem:[%s1626 + $0xb0] sm:$0xff]
      %v1643 = vld [vmem:[%s1626 + $0xc0] sm:$0xff]
      %v1644 = vld [vmem:[%s1626 + $0xc8] sm:$0xff]
      %v1645 = vld [vmem:[%s1626 + $0xd8] sm:$0xff]
      %v1646 = vld [vmem:[%s1626 + $0xe0] sm:$0xff]
      %v1647 = vld [vmem:[%s1626 + $0xf0] sm:$0xff]
      %v1648 = vld [vmem:[%s1626 + $0xf8] sm:$0xff]
      %v1649 = vld [vmem:[%s1626 + $0x108] sm:$0xff]
      %v1650 = vld [vmem:[%s1626 + $0x110] sm:$0xff]
      %v1651 = vld [vmem:[%s1626 + $0x120] sm:$0xff]
      %v1652 = vld [vmem:[%s1626 + $0x128] sm:$0xff]
      %v1653 = vld [vmem:[%s1626 + $0x138] sm:$0xff]
      %v1654 = vld [vmem:[%s1626 + $0x140] sm:$0xff]
      %v1655 = vld [vmem:[%s1626 + $0x150] sm:$0xff]
      %v1656 = vld [vmem:[%s1626 + $0x158] sm:$0xff]
      %v1657 = vld [vmem:[%s1626 + $0x168] sm:$0xff]
      %v1658 = vld [vmem:[%s1626 + $0x170] sm:$0xff]
      %1691 = vrot.lane.b32.xlu0 %v1627, 48
      %v1692 = vpop.permute.xlu0 %1691
      %1693 = vrot.lane.b32.xlu0 %v1628, 48
      %v1694 = vpop.permute.xlu0 %1693
      %1695 = vrot.lane.b32.xlu0 %v1629, 48
      %v1696 = vpop.permute.xlu0 %1695
      %1697 = vrot.lane.b32.xlu0 %v1630, 48
      %v1698 = vpop.permute.xlu0 %1697
      %1699 = vrot.lane.b32.xlu0 %v1631, 48
      %v1700 = vpop.permute.xlu0 %1699
      %1701 = vrot.lane.b32.xlu0 %v1632, 48
      %v1702 = vpop.permute.xlu0 %1701
      %1703 = vrot.lane.b32.xlu0 %v1633, 48
      %v1704 = vpop.permute.xlu0 %1703
      %1705 = vrot.lane.b32.xlu0 %v1634, 48
      %v1706 = vpop.permute.xlu0 %1705
      %1707 = vrot.lane.b32.xlu0 %v1635, 48
      %v1708 = vpop.permute.xlu0 %1707
      %1709 = vrot.lane.b32.xlu0 %v1636, 48
      %v1710 = vpop.permute.xlu0 %1709
      %1711 = vrot.lane.b32.xlu0 %v1637, 48
      %v1712 = vpop.permute.xlu0 %1711
      %1713 = vrot.lane.b32.xlu0 %v1638, 48
      %v1714 = vpop.permute.xlu0 %1713
      %1715 = vrot.lane.b32.xlu0 %v1639, 48
      %v1716 = vpop.permute.xlu0 %1715
      %1717 = vrot.lane.b32.xlu0 %v1640, 48
      %v1718 = vpop.permute.xlu0 %1717
      %1719 = vrot.lane.b32.xlu0 %v1641, 48
      %v1720 = vpop.permute.xlu0 %1719
      %1721 = vrot.lane.b32.xlu0 %v1642, 48
      %v1722 = vpop.permute.xlu0 %1721
      %1723 = vrot.lane.b32.xlu0 %v1643, 48
      %v1724 = vpop.permute.xlu0 %1723
      %1725 = vrot.lane.b32.xlu0 %v1644, 48
      %v1726 = vpop.permute.xlu0 %1725
      %1727 = vrot.lane.b32.xlu0 %v1645, 48
      %v1728 = vpop.permute.xlu0 %1727
      %1729 = vrot.lane.b32.xlu0 %v1646, 48
      %v1730 = vpop.permute.xlu0 %1729
      %1731 = vrot.lane.b32.xlu0 %v1647, 48
      %v1732 = vpop.permute.xlu0 %1731
      %1733 = vrot.lane.b32.xlu0 %v1648, 48
      %v1734 = vpop.permute.xlu0 %1733
      %1735 = vrot.lane.b32.xlu0 %v1649, 48
      %v1736 = vpop.permute.xlu0 %1735
      %1737 = vrot.lane.b32.xlu0 %v1650, 48
      %v1738 = vpop.permute.xlu0 %1737
      %1739 = vrot.lane.b32.xlu0 %v1651, 48
      %v1740 = vpop.permute.xlu0 %1739
      %1741 = vrot.lane.b32.xlu0 %v1652, 48
      %v1742 = vpop.permute.xlu0 %1741
      %1743 = vrot.lane.b32.xlu0 %v1653, 48
      %v1744 = vpop.permute.xlu0 %1743
      %1745 = vrot.lane.b32.xlu0 %v1654, 48
      %v1746 = vpop.permute.xlu0 %1745
      %1747 = vrot.lane.b32.xlu0 %v1655, 48
      %v1748 = vpop.permute.xlu0 %1747
      %1749 = vrot.lane.b32.xlu0 %v1656, 48
      %v1750 = vpop.permute.xlu0 %1749
      %1751 = vrot.lane.b32.xlu0 %v1657, 48
      %v1752 = vpop.permute.xlu0 %1751
      %1753 = vrot.lane.b32.xlu0 %v1658, 48
      %v1754 = vpop.permute.xlu0 %1753
      %vm1787 = vcmask 458112
      %1788 = vst.msk [vmem:[#allocation3] sm:$0xff] %vm1787, %v1692
      %1789 = vst.msk [vmem:[#allocation3 + $0x8] sm:$0xff] %vm1787, %v1694
      %1790 = vst.msk [vmem:[#allocation3 + $0x10] sm:$0xff] %vm1787, %v1696
      %1791 = vst.msk [vmem:[#allocation3 + $0x18] sm:$0xff] %vm1787, %v1698
      %1792 = vst.msk [vmem:[#allocation3 + $0x20] sm:$0xff] %vm1787, %v1700
      %1793 = vst.msk [vmem:[#allocation3 + $0x28] sm:$0xff] %vm1787, %v1702
      %1794 = vst.msk [vmem:[#allocation3 + $0x30] sm:$0xff] %vm1787, %v1704
      %1795 = vst.msk [vmem:[#allocation3 + $0x38] sm:$0xff] %vm1787, %v1706
      %1796 = vst.msk [vmem:[#allocation3 + $0x40] sm:$0xff] %vm1787, %v1708
      %1797 = vst.msk [vmem:[#allocation3 + $0x48] sm:$0xff] %vm1787, %v1710
      %1798 = vst.msk [vmem:[#allocation3 + $0x50] sm:$0xff] %vm1787, %v1712
      %1799 = vst.msk [vmem:[#allocation3 + $0x58] sm:$0xff] %vm1787, %v1714
      %1800 = vst.msk [vmem:[#allocation3 + $0x60] sm:$0xff] %vm1787, %v1716
      %1801 = vst.msk [vmem:[#allocation3 + $0x68] sm:$0xff] %vm1787, %v1718
      %1802 = vst.msk [vmem:[#allocation3 + $0x70] sm:$0xff] %vm1787, %v1720
      %1803 = vst.msk [vmem:[#allocation3 + $0x78] sm:$0xff] %vm1787, %v1722
      %1804 = vst.msk [vmem:[#allocation3 + $0x80] sm:$0xff] %vm1787, %v1724
      %1805 = vst.msk [vmem:[#allocation3 + $0x88] sm:$0xff] %vm1787, %v1726
      %1806 = vst.msk [vmem:[#allocation3 + $0x90] sm:$0xff] %vm1787, %v1728
      %1807 = vst.msk [vmem:[#allocation3 + $0x98] sm:$0xff] %vm1787, %v1730
      %1808 = vst.msk [vmem:[#allocation3 + $0xa0] sm:$0xff] %vm1787, %v1732
      %1809 = vst.msk [vmem:[#allocation3 + $0xa8] sm:$0xff] %vm1787, %v1734
      %1810 = vst.msk [vmem:[#allocation3 + $0xb0] sm:$0xff] %vm1787, %v1736
      %1811 = vst.msk [vmem:[#allocation3 + $0xb8] sm:$0xff] %vm1787, %v1738
      %1812 = vst.msk [vmem:[#allocation3 + $0xc0] sm:$0xff] %vm1787, %v1740
      %1813 = vst.msk [vmem:[#allocation3 + $0xc8] sm:$0xff] %vm1787, %v1742
      %1814 = vst.msk [vmem:[#allocation3 + $0xd0] sm:$0xff] %vm1787, %v1744
      %1815 = vst.msk [vmem:[#allocation3 + $0xd8] sm:$0xff] %vm1787, %v1746
      %1816 = vst.msk [vmem:[#allocation3 + $0xe0] sm:$0xff] %vm1787, %v1748
      %1817 = vst.msk [vmem:[#allocation3 + $0xe8] sm:$0xff] %vm1787, %v1750
      %1818 = vst.msk [vmem:[#allocation3 + $0xf0] sm:$0xff] %vm1787, %v1752
      %1819 = vst.msk [vmem:[#allocation3 + $0xf8] sm:$0xff] %vm1787, %v1754
      %v1820 = vld [vmem:[%s1626 + $0x1] sm:$0xff]
      %v1821 = vld [vmem:[%s1626 + $0x9] sm:$0xff]
      %v1822 = vld [vmem:[%s1626 + $0x19] sm:$0xff]
      %v1823 = vld [vmem:[%s1626 + $0x21] sm:$0xff]
      %v1824 = vld [vmem:[%s1626 + $0x31] sm:$0xff]
      %v1825 = vld [vmem:[%s1626 + $0x39] sm:$0xff]
      %v1826 = vld [vmem:[%s1626 + $0x49] sm:$0xff]
      %v1827 = vld [vmem:[%s1626 + $0x51] sm:$0xff]
      %v1828 = vld [vmem:[%s1626 + $0x61] sm:$0xff]
      %v1829 = vld [vmem:[%s1626 + $0x69] sm:$0xff]
      %v1830 = vld [vmem:[%s1626 + $0x79] sm:$0xff]
      %v1831 = vld [vmem:[%s1626 + $0x81] sm:$0xff]
      %v1832 = vld [vmem:[%s1626 + $0x91] sm:$0xff]
      %v1833 = vld [vmem:[%s1626 + $0x99] sm:$0xff]
      %v1834 = vld [vmem:[%s1626 + $0xa9] sm:$0xff]
      %v1835 = vld [vmem:[%s1626 + $0xb1] sm:$0xff]
      %v1836 = vld [vmem:[%s1626 + $0xc1] sm:$0xff]
      %v1837 = vld [vmem:[%s1626 + $0xc9] sm:$0xff]
      %v1838 = vld [vmem:[%s1626 + $0xd9] sm:$0xff]
      %v1839 = vld [vmem:[%s1626 + $0xe1] sm:$0xff]
      %v1840 = vld [vmem:[%s1626 + $0xf1] sm:$0xff]
      %v1841 = vld [vmem:[%s1626 + $0xf9] sm:$0xff]
      %v1842 = vld [vmem:[%s1626 + $0x109] sm:$0xff]
      %v1843 = vld [vmem:[%s1626 + $0x111] sm:$0xff]
      %v1844 = vld [vmem:[%s1626 + $0x121] sm:$0xff]
      %v1845 = vld [vmem:[%s1626 + $0x129] sm:$0xff]
      %v1846 = vld [vmem:[%s1626 + $0x139] sm:$0xff]
      %v1847 = vld [vmem:[%s1626 + $0x141] sm:$0xff]
      %v1848 = vld [vmem:[%s1626 + $0x151] sm:$0xff]
      %v1849 = vld [vmem:[%s1626 + $0x159] sm:$0xff]
      %v1850 = vld [vmem:[%s1626 + $0x169] sm:$0xff]
      %v1851 = vld [vmem:[%s1626 + $0x171] sm:$0xff]
      %1884 = vrot.lane.b32.xlu0 %v1820, 56
      %v1885 = vpop.permute.xlu0 %1884
      %1886 = vrot.lane.b32.xlu0 %v1821, 56
      %v1887 = vpop.permute.xlu0 %1886
      %1888 = vrot.lane.b32.xlu0 %v1822, 56
      %v1889 = vpop.permute.xlu0 %1888
      %1890 = vrot.lane.b32.xlu0 %v1823, 56
      %v1891 = vpop.permute.xlu0 %1890
      %1892 = vrot.lane.b32.xlu0 %v1824, 56
      %v1893 = vpop.permute.xlu0 %1892
      %1894 = vrot.lane.b32.xlu0 %v1825, 56
      %v1895 = vpop.permute.xlu0 %1894
      %1896 = vrot.lane.b32.xlu0 %v1826, 56
      %v1897 = vpop.permute.xlu0 %1896
      %1898 = vrot.lane.b32.xlu0 %v1827, 56
      %v1899 = vpop.permute.xlu0 %1898
      %1900 = vrot.lane.b32.xlu0 %v1828, 56
      %v1901 = vpop.permute.xlu0 %1900
      %1902 = vrot.lane.b32.xlu0 %v1829, 56
      %v1903 = vpop.permute.xlu0 %1902
      %1904 = vrot.lane.b32.xlu0 %v1830, 56
      %v1905 = vpop.permute.xlu0 %1904
      %1906 = vrot.lane.b32.xlu0 %v1831, 56
      %v1907 = vpop.permute.xlu0 %1906
      %1908 = vrot.lane.b32.xlu0 %v1832, 56
      %v1909 = vpop.permute.xlu0 %1908
      %1910 = vrot.lane.b32.xlu0 %v1833, 56
      %v1911 = vpop.permute.xlu0 %1910
      %1912 = vrot.lane.b32.xlu0 %v1834, 56
      %v1913 = vpop.permute.xlu0 %1912
      %1914 = vrot.lane.b32.xlu0 %v1835, 56
      %v1915 = vpop.permute.xlu0 %1914
      %1916 = vrot.lane.b32.xlu0 %v1836, 56
      %v1917 = vpop.permute.xlu0 %1916
      %1918 = vrot.lane.b32.xlu0 %v1837, 56
      %v1919 = vpop.permute.xlu0 %1918
      %1920 = vrot.lane.b32.xlu0 %v1838, 56
      %v1921 = vpop.permute.xlu0 %1920
      %1922 = vrot.lane.b32.xlu0 %v1839, 56
      %v1923 = vpop.permute.xlu0 %1922
      %1924 = vrot.lane.b32.xlu0 %v1840, 56
      %v1925 = vpop.permute.xlu0 %1924
      %1926 = vrot.lane.b32.xlu0 %v1841, 56
      %v1927 = vpop.permute.xlu0 %1926
      %1928 = vrot.lane.b32.xlu0 %v1842, 56
      %v1929 = vpop.permute.xlu0 %1928
      %1930 = vrot.lane.b32.xlu0 %v1843, 56
      %v1931 = vpop.permute.xlu0 %1930
      %1932 = vrot.lane.b32.xlu0 %v1844, 56
      %v1933 = vpop.permute.xlu0 %1932
      %1934 = vrot.lane.b32.xlu0 %v1845, 56
      %v1935 = vpop.permute.xlu0 %1934
      %1936 = vrot.lane.b32.xlu0 %v1846, 56
      %v1937 = vpop.permute.xlu0 %1936
      %1938 = vrot.lane.b32.xlu0 %v1847, 56
      %v1939 = vpop.permute.xlu0 %1938
      %1940 = vrot.lane.b32.xlu0 %v1848, 56
      %v1941 = vpop.permute.xlu0 %1940
      %1942 = vrot.lane.b32.xlu0 %v1849, 56
      %v1943 = vpop.permute.xlu0 %1942
      %1944 = vrot.lane.b32.xlu0 %v1850, 56
      %v1945 = vpop.permute.xlu0 %1944
      %1946 = vrot.lane.b32.xlu0 %v1851, 56
      %v1947 = vpop.permute.xlu0 %1946
      %vm1980 = vcmask 523712
      %1981 = vst.msk [vmem:[#allocation3] sm:$0xff] %vm1980, %v1885
      %1982 = vst.msk [vmem:[#allocation3 + $0x8] sm:$0xff] %vm1980, %v1887
      %1983 = vst.msk [vmem:[#allocation3 + $0x10] sm:$0xff] %vm1980, %v1889
      %1984 = vst.msk [vmem:[#allocation3 + $0x18] sm:$0xff] %vm1980, %v1891
      %1985 = vst.msk [vmem:[#allocation3 + $0x20] sm:$0xff] %vm1980, %v1893
      %1986 = vst.msk [vmem:[#allocation3 + $0x28] sm:$0xff] %vm1980, %v1895
      %1987 = vst.msk [vmem:[#allocation3 + $0x30] sm:$0xff] %vm1980, %v1897
      %1988 = vst.msk [vmem:[#allocation3 + $0x38] sm:$0xff] %vm1980, %v1899
      %1989 = vst.msk [vmem:[#allocation3 + $0x40] sm:$0xff] %vm1980, %v1901
      %1990 = vst.msk [vmem:[#allocation3 + $0x48] sm:$0xff] %vm1980, %v1903
      %1991 = vst.msk [vmem:[#allocation3 + $0x50] sm:$0xff] %vm1980, %v1905
      %1992 = vst.msk [vmem:[#allocation3 + $0x58] sm:$0xff] %vm1980, %v1907
      %1993 = vst.msk [vmem:[#allocation3 + $0x60] sm:$0xff] %vm1980, %v1909
      %1994 = vst.msk [vmem:[#allocation3 + $0x68] sm:$0xff] %vm1980, %v1911
      %1995 = vst.msk [vmem:[#allocation3 + $0x70] sm:$0xff] %vm1980, %v1913
      %1996 = vst.msk [vmem:[#allocation3 + $0x78] sm:$0xff] %vm1980, %v1915
      %1997 = vst.msk [vmem:[#allocation3 + $0x80] sm:$0xff] %vm1980, %v1917
      %1998 = vst.msk [vmem:[#allocation3 + $0x88] sm:$0xff] %vm1980, %v1919
      %1999 = vst.msk [vmem:[#allocation3 + $0x90] sm:$0xff] %vm1980, %v1921
      %2000 = vst.msk [vmem:[#allocation3 + $0x98] sm:$0xff] %vm1980, %v1923
      %2001 = vst.msk [vmem:[#allocation3 + $0xa0] sm:$0xff] %vm1980, %v1925
      %2002 = vst.msk [vmem:[#allocation3 + $0xa8] sm:$0xff] %vm1980, %v1927
      %2003 = vst.msk [vmem:[#allocation3 + $0xb0] sm:$0xff] %vm1980, %v1929
      %2004 = vst.msk [vmem:[#allocation3 + $0xb8] sm:$0xff] %vm1980, %v1931
      %2005 = vst.msk [vmem:[#allocation3 + $0xc0] sm:$0xff] %vm1980, %v1933
      %2006 = vst.msk [vmem:[#allocation3 + $0xc8] sm:$0xff] %vm1980, %v1935
      %2007 = vst.msk [vmem:[#allocation3 + $0xd0] sm:$0xff] %vm1980, %v1937
      %2008 = vst.msk [vmem:[#allocation3 + $0xd8] sm:$0xff] %vm1980, %v1939
      %2009 = vst.msk [vmem:[#allocation3 + $0xe0] sm:$0xff] %vm1980, %v1941
      %2010 = vst.msk [vmem:[#allocation3 + $0xe8] sm:$0xff] %vm1980, %v1943
      %2011 = vst.msk [vmem:[#allocation3 + $0xf0] sm:$0xff] %vm1980, %v1945
      %2012 = vst.msk [vmem:[#allocation3 + $0xf8] sm:$0xff] %vm1980, %v1947
      %v2013 = vld [vmem:[%s1626 + $0x2] sm:$0xff]
      %v2014 = vld [vmem:[%s1626 + $0xa] sm:$0xff]
      %v2015 = vld [vmem:[%s1626 + $0x1a] sm:$0xff]
      %v2016 = vld [vmem:[%s1626 + $0x22] sm:$0xff]
      %v2017 = vld [vmem:[%s1626 + $0x32] sm:$0xff]
      %v2018 = vld [vmem:[%s1626 + $0x3a] sm:$0xff]
      %v2019 = vld [vmem:[%s1626 + $0x4a] sm:$0xff]
      %v2020 = vld [vmem:[%s1626 + $0x52] sm:$0xff]
      %v2021 = vld [vmem:[%s1626 + $0x62] sm:$0xff]
      %v2022 = vld [vmem:[%s1626 + $0x6a] sm:$0xff]
      %v2023 = vld [vmem:[%s1626 + $0x7a] sm:$0xff]
      %v2024 = vld [vmem:[%s1626 + $0x82] sm:$0xff]
      %v2025 = vld [vmem:[%s1626 + $0x92] sm:$0xff]
      %v2026 = vld [vmem:[%s1626 + $0x9a] sm:$0xff]
      %v2027 = vld [vmem:[%s1626 + $0xaa] sm:$0xff]
      %v2028 = vld [vmem:[%s1626 + $0xb2] sm:$0xff]
      %v2029 = vld [vmem:[%s1626 + $0xc2] sm:$0xff]
      %v2030 = vld [vmem:[%s1626 + $0xca] sm:$0xff]
      %v2031 = vld [vmem:[%s1626 + $0xda] sm:$0xff]
      %v2032 = vld [vmem:[%s1626 + $0xe2] sm:$0xff]
      %v2033 = vld [vmem:[%s1626 + $0xf2] sm:$0xff]
      %v2034 = vld [vmem:[%s1626 + $0xfa] sm:$0xff]
      %v2035 = vld [vmem:[%s1626 + $0x10a] sm:$0xff]
      %v2036 = vld [vmem:[%s1626 + $0x112] sm:$0xff]
      %v2037 = vld [vmem:[%s1626 + $0x122] sm:$0xff]
      %v2038 = vld [vmem:[%s1626 + $0x12a] sm:$0xff]
      %v2039 = vld [vmem:[%s1626 + $0x13a] sm:$0xff]
      %v2040 = vld [vmem:[%s1626 + $0x142] sm:$0xff]
      %v2041 = vld [vmem:[%s1626 + $0x152] sm:$0xff]
      %v2042 = vld [vmem:[%s1626 + $0x15a] sm:$0xff]
      %v2043 = vld [vmem:[%s1626 + $0x16a] sm:$0xff]
      %v2044 = vld [vmem:[%s1626 + $0x172] sm:$0xff]
      %2077 = vrot.lane.b32.xlu0 %v2013, 64
      %v2078 = vpop.permute.xlu0 %2077
      %2079 = vrot.lane.b32.xlu0 %v2014, 64
      %v2080 = vpop.permute.xlu0 %2079
      %2081 = vrot.lane.b32.xlu0 %v2015, 64
      %v2082 = vpop.permute.xlu0 %2081
      %2083 = vrot.lane.b32.xlu0 %v2016, 64
      %v2084 = vpop.permute.xlu0 %2083
      %2085 = vrot.lane.b32.xlu0 %v2017, 64
      %v2086 = vpop.permute.xlu0 %2085
      %2087 = vrot.lane.b32.xlu0 %v2018, 64
      %v2088 = vpop.permute.xlu0 %2087
      %2089 = vrot.lane.b32.xlu0 %v2019, 64
      %v2090 = vpop.permute.xlu0 %2089
      %2091 = vrot.lane.b32.xlu0 %v2020, 64
      %v2092 = vpop.permute.xlu0 %2091
      %2093 = vrot.lane.b32.xlu0 %v2021, 64
      %v2094 = vpop.permute.xlu0 %2093
      %2095 = vrot.lane.b32.xlu0 %v2022, 64
      %v2096 = vpop.permute.xlu0 %2095
      %2097 = vrot.lane.b32.xlu0 %v2023, 64
      %v2098 = vpop.permute.xlu0 %2097
      %2099 = vrot.lane.b32.xlu0 %v2024, 64
      %v2100 = vpop.permute.xlu0 %2099
      %2101 = vrot.lane.b32.xlu0 %v2025, 64
      %v2102 = vpop.permute.xlu0 %2101
      %2103 = vrot.lane.b32.xlu0 %v2026, 64
      %v2104 = vpop.permute.xlu0 %2103
      %2105 = vrot.lane.b32.xlu0 %v2027, 64
      %v2106 = vpop.permute.xlu0 %2105
      %2107 = vrot.lane.b32.xlu0 %v2028, 64
      %v2108 = vpop.permute.xlu0 %2107
      %2109 = vrot.lane.b32.xlu0 %v2029, 64
      %v2110 = vpop.permute.xlu0 %2109
      %2111 = vrot.lane.b32.xlu0 %v2030, 64
      %v2112 = vpop.permute.xlu0 %2111
      %2113 = vrot.lane.b32.xlu0 %v2031, 64
      %v2114 = vpop.permute.xlu0 %2113
      %2115 = vrot.lane.b32.xlu0 %v2032, 64
      %v2116 = vpop.permute.xlu0 %2115
      %2117 = vrot.lane.b32.xlu0 %v2033, 64
      %v2118 = vpop.permute.xlu0 %2117
      %2119 = vrot.lane.b32.xlu0 %v2034, 64
      %v2120 = vpop.permute.xlu0 %2119
      %2121 = vrot.lane.b32.xlu0 %v2035, 64
      %v2122 = vpop.permute.xlu0 %2121
      %2123 = vrot.lane.b32.xlu0 %v2036, 64
      %v2124 = vpop.permute.xlu0 %2123
      %2125 = vrot.lane.b32.xlu0 %v2037, 64
      %v2126 = vpop.permute.xlu0 %2125
      %2127 = vrot.lane.b32.xlu0 %v2038, 64
      %v2128 = vpop.permute.xlu0 %2127
      %2129 = vrot.lane.b32.xlu0 %v2039, 64
      %v2130 = vpop.permute.xlu0 %2129
      %2131 = vrot.lane.b32.xlu0 %v2040, 64
      %v2132 = vpop.permute.xlu0 %2131
      %2133 = vrot.lane.b32.xlu0 %v2041, 64
      %v2134 = vpop.permute.xlu0 %2133
      %2135 = vrot.lane.b32.xlu0 %v2042, 64
      %v2136 = vpop.permute.xlu0 %2135
      %2137 = vrot.lane.b32.xlu0 %v2043, 64
      %v2138 = vpop.permute.xlu0 %2137
      %2139 = vrot.lane.b32.xlu0 %v2044, 64
      %v2140 = vpop.permute.xlu0 %2139
      %vm2173 = vcmask 589312
      %2174 = vst.msk [vmem:[#allocation3] sm:$0xff] %vm2173, %v2078
      %2175 = vst.msk [vmem:[#allocation3 + $0x8] sm:$0xff] %vm2173, %v2080
      %2176 = vst.msk [vmem:[#allocation3 + $0x10] sm:$0xff] %vm2173, %v2082
      %2177 = vst.msk [vmem:[#allocation3 + $0x18] sm:$0xff] %vm2173, %v2084
      %2178 = vst.msk [vmem:[#allocation3 + $0x20] sm:$0xff] %vm2173, %v2086
      %2179 = vst.msk [vmem:[#allocation3 + $0x28] sm:$0xff] %vm2173, %v2088
      %2180 = vst.msk [vmem:[#allocation3 + $0x30] sm:$0xff] %vm2173, %v2090
      %2181 = vst.msk [vmem:[#allocation3 + $0x38] sm:$0xff] %vm2173, %v2092
      %2182 = vst.msk [vmem:[#allocation3 + $0x40] sm:$0xff] %vm2173, %v2094
      %2183 = vst.msk [vmem:[#allocation3 + $0x48] sm:$0xff] %vm2173, %v2096
      %2184 = vst.msk [vmem:[#allocation3 + $0x50] sm:$0xff] %vm2173, %v2098
      %2185 = vst.msk [vmem:[#allocation3 + $0x58] sm:$0xff] %vm2173, %v2100
      %2186 = vst.msk [vmem:[#allocation3 + $0x60] sm:$0xff] %vm2173, %v2102
      %2187 = vst.msk [vmem:[#allocation3 + $0x68] sm:$0xff] %vm2173, %v2104
      %2188 = vst.msk [vmem:[#allocation3 + $0x70] sm:$0xff] %vm2173, %v2106
      %2189 = vst.msk [vmem:[#allocation3 + $0x78] sm:$0xff] %vm2173, %v2108
      %2190 = vst.msk [vmem:[#allocation3 + $0x80] sm:$0xff] %vm2173, %v2110
      %2191 = vst.msk [vmem:[#allocation3 + $0x88] sm:$0xff] %vm2173, %v2112
      %2192 = vst.msk [vmem:[#allocation3 + $0x90] sm:$0xff] %vm2173, %v2114
      %2193 = vst.msk [vmem:[#allocation3 + $0x98] sm:$0xff] %vm2173, %v2116
      %2194 = vst.msk [vmem:[#allocation3 + $0xa0] sm:$0xff] %vm2173, %v2118
      %2195 = vst.msk [vmem:[#allocation3 + $0xa8] sm:$0xff] %vm2173, %v2120
      %2196 = vst.msk [vmem:[#allocation3 + $0xb0] sm:$0xff] %vm2173, %v2122
      %2197 = vst.msk [vmem:[#allocation3 + $0xb8] sm:$0xff] %vm2173, %v2124
      %2198 = vst.msk [vmem:[#allocation3 + $0xc0] sm:$0xff] %vm2173, %v2126
      %2199 = vst.msk [vmem:[#allocation3 + $0xc8] sm:$0xff] %vm2173, %v2128
      %2200 = vst.msk [vmem:[#allocation3 + $0xd0] sm:$0xff] %vm2173, %v2130
      %2201 = vst.msk [vmem:[#allocation3 + $0xd8] sm:$0xff] %vm2173, %v2132
      %2202 = vst.msk [vmem:[#allocation3 + $0xe0] sm:$0xff] %vm2173, %v2134
      %2203 = vst.msk [vmem:[#allocation3 + $0xe8] sm:$0xff] %vm2173, %v2136
      %2204 = vst.msk [vmem:[#allocation3 + $0xf0] sm:$0xff] %vm2173, %v2138
      %2205 = vst.msk [vmem:[#allocation3 + $0xf8] sm:$0xff] %vm2173, %v2140
      %v2206 = vld [vmem:[#allocation3] sm:$0xff]
      %v2207 = vld [vmem:[#allocation3 + $0x8] sm:$0xff]
      %v2208 = vld [vmem:[#allocation3 + $0x10] sm:$0xff]
      %v2209 = vld [vmem:[#allocation3 + $0x18] sm:$0xff]
      %v2210 = vld [vmem:[#allocation3 + $0x20] sm:$0xff]
      %v2211 = vld [vmem:[#allocation3 + $0x28] sm:$0xff]
      %v2212 = vld [vmem:[#allocation3 + $0x30] sm:$0xff]
      %v2213 = vld [vmem:[#allocation3 + $0x38] sm:$0xff]
      %v2214 = vld [vmem:[#allocation3 + $0x40] sm:$0xff]
      %v2215 = vld [vmem:[#allocation3 + $0x48] sm:$0xff]
      %v2216 = vld [vmem:[#allocation3 + $0x50] sm:$0xff]
      %v2217 = vld [vmem:[#allocation3 + $0x58] sm:$0xff]
      %v2218 = vld [vmem:[#allocation3 + $0x60] sm:$0xff]
      %v2219 = vld [vmem:[#allocation3 + $0x68] sm:$0xff]
      %v2220 = vld [vmem:[#allocation3 + $0x70] sm:$0xff]
      %v2221 = vld [vmem:[#allocation3 + $0x78] sm:$0xff]
      %v2222 = vld [vmem:[#allocation3 + $0x80] sm:$0xff]
      %v2223 = vld [vmem:[#allocation3 + $0x88] sm:$0xff]
      %v2224 = vld [vmem:[#allocation3 + $0x90] sm:$0xff]
      %v2225 = vld [vmem:[#allocation3 + $0x98] sm:$0xff]
      %v2226 = vld [vmem:[#allocation3 + $0xa0] sm:$0xff]
      %v2227 = vld [vmem:[#allocation3 + $0xa8] sm:$0xff]
      %v2228 = vld [vmem:[#allocation3 + $0xb0] sm:$0xff]
      %v2229 = vld [vmem:[#allocation3 + $0xb8] sm:$0xff]
      %v2230 = vld [vmem:[#allocation3 + $0xc0] sm:$0xff]
      %v2231 = vld [vmem:[#allocation3 + $0xc8] sm:$0xff]
      %v2232 = vld [vmem:[#allocation3 + $0xd0] sm:$0xff]
      %v2233 = vld [vmem:[#allocation3 + $0xd8] sm:$0xff]
      %v2234 = vld [vmem:[#allocation3 + $0xe0] sm:$0xff]
      %v2235 = vld [vmem:[#allocation3 + $0xe8] sm:$0xff]
      %v2236 = vld [vmem:[#allocation3 + $0xf0] sm:$0xff]
      %v2237 = vld [vmem:[#allocation3 + $0xf8] sm:$0xff]
      %v2238 = vld [vmem:[%s3] sm:$0xff]
      %v2239 = vld [vmem:[%s3 + $0x8] sm:$0xff]
      %v2240 = vld [vmem:[%s3 + $0x10] sm:$0xff]
      %v2241 = vld [vmem:[%s3 + $0x18] sm:$0xff]
      %v2242 = vld [vmem:[%s3 + $0x20] sm:$0xff]
      %v2243 = vld [vmem:[%s3 + $0x28] sm:$0xff]
      %v2244 = vld [vmem:[%s3 + $0x30] sm:$0xff]
      %v2245 = vld [vmem:[%s3 + $0x38] sm:$0xff]
      %v2246 = vld [vmem:[%s3 + $0x40] sm:$0xff]
      %vm2247 = vcmask 588800
      %v2249 = vsel %vm2247, %v2206, 0
      %v2252 = vsel %vm2247, %v2207, 0
      %v2255 = vsel %vm2247, %v2208, 0
      %v2258 = vsel %vm2247, %v2209, 0
      %v2261 = vsel %vm2247, %v2210, 0
      %v2264 = vsel %vm2247, %v2211, 0
      %v2267 = vsel %vm2247, %v2212, 0
      %v2270 = vsel %vm2247, %v2213, 0
      %v2273 = vsel %vm2247, %v2214, 0
      %v2276 = vsel %vm2247, %v2215, 0
      %v2279 = vsel %vm2247, %v2216, 0
      %v2282 = vsel %vm2247, %v2217, 0
      %v2285 = vsel %vm2247, %v2218, 0
      %v2288 = vsel %vm2247, %v2219, 0
      %v2291 = vsel %vm2247, %v2220, 0
      %v2294 = vsel %vm2247, %v2221, 0
      %v2297 = vsel %vm2247, %v2222, 0
      %v2300 = vsel %vm2247, %v2223, 0
      %v2303 = vsel %vm2247, %v2224, 0
      %v2306 = vsel %vm2247, %v2225, 0
      %v2309 = vsel %vm2247, %v2226, 0
      %v2312 = vsel %vm2247, %v2227, 0
      %v2315 = vsel %vm2247, %v2228, 0
      %v2318 = vsel %vm2247, %v2229, 0
      %v2321 = vsel %vm2247, %v2230, 0
      %v2324 = vsel %vm2247, %v2231, 0
      %v2327 = vsel %vm2247, %v2232, 0
      %v2330 = vsel %vm2247, %v2233, 0
      %v2333 = vsel %vm2247, %v2234, 0
      %v2336 = vsel %vm2247, %v2235, 0
      %v2339 = vsel %vm2247, %v2236, 0
      %v2342 = vsel %vm2247, %v2237, 0
      %2344 = vmatprep.subr.mxu0 0.0
      %2345 = vmatpush1.msra.mxu0 %v2238
      %2346 = vmatprep.subr.mxu0 0.0
      %2347 = vmatpush1.msra.mxu0 %v2239
      %2348 = vmatprep.subr.mxu0 0.0
      %2349 = vmatpush1.msra.mxu0 %v2240
      %2350 = vmatprep.subr.mxu0 0.0
      %2351 = vmatpush1.msra.mxu0 %v2241
      %2352 = vmatprep.subr.mxu0 0.0
      %2353 = vmatpush1.msra.mxu0 %v2242
      %2354 = vmatprep.subr.mxu0 0.0
      %2355 = vmatpush1.msra.mxu0 %v2243
      %2356 = vmatprep.subr.mxu0 0.0
      %2357 = vmatpush1.msra.mxu0 %v2244
      %2358 = vmatprep.subr.mxu0 0.0
      %2359 = vmatpush1.msra.mxu0 %v2245
      %2360 = vmatprep.subr.mxu0 0.0
      %2361 = vmatpush1.msra.mxu0 %v2246
      %2362 = vmatprep.subr.mxu0 0.0
      %2363 = vmatpush1.msra.mxu0 0.0
      %2364 = vmatprep.subr.mxu0 0.0
      %2365 = vmatpush1.msra.mxu0 0.0
      %2366 = vmatprep.subr.mxu0 0.0
      %2367 = vmatpush1.msra.mxu0 0.0
      %2368 = vmatprep.subr.mxu0 0.0
      %2369 = vmatpush1.msra.mxu0 0.0
      %2370 = vmatprep.subr.mxu0 0.0
      %2371 = vmatpush1.msra.mxu0 0.0
      %2372 = vmatprep.subr.mxu0 0.0
      %2373 = vmatpush1.msra.mxu0 0.0
      %2374 = vmatprep.subr.mxu0 0.0
      %2375 = vmatpush1.msra.mxu0 0.0
      %2376 = vmatprep.subr.mxu0 0.0
      %2377 = vmatpush1.msra.mxu0 0.0
      %2378 = vmatprep.subr.mxu0 0.0
      %2379 = vmatpush1.msra.mxu0 0.0
      %2380 = vmatprep.subr.mxu0 0.0
      %2381 = vmatpush1.msra.mxu0 0.0
      %2382 = vmatprep.subr.mxu0 0.0
      %2383 = vmatpush1.msra.mxu0 0.0
      %2384 = vmatprep.subr.mxu0 0.0
      %2385 = vmatpush1.msra.mxu0 0.0
      %2386 = vmatprep.subr.mxu0 0.0
      %2387 = vmatpush1.msra.mxu0 0.0
      %2388 = vmatprep.subr.mxu0 0.0
      %2389 = vmatpush1.msra.mxu0 0.0
      %2390 = vmatprep.subr.mxu0 0.0
      %2391 = vmatpush1.msra.mxu0 0.0
      %2392 = vmatprep.subr.mxu0 0.0
      %2393 = vmatpush1.msra.mxu0 0.0
      %2394 = vmatprep.subr.mxu0 0.0
      %2395 = vmatpush1.msra.mxu0 0.0
      %2396 = vmatprep.subr.mxu0 0.0
      %2397 = vmatpush1.msra.mxu0 0.0
      %2398 = vmatprep.subr.mxu0 0.0
      %2399 = vmatpush1.msra.mxu0 0.0
      %2400 = vmatprep.subr.mxu0 0.0
      %2401 = vmatpush1.msra.mxu0 0.0
      %2402 = vmatprep.subr.mxu0 0.0
      %2403 = vmatpush1.msra.mxu0 0.0
      %2404 = vmatprep.subr.mxu0 0.0
      %2405 = vmatpush1.msra.mxu0 0.0
      %2406 = vmatprep.subr.mxu0 0.0
      %2407 = vmatpush1.msra.mxu0 0.0
      %2408 = vmatprep.mubr.f32.mxu0 0.0
      %2409 = vmatmul.mubr.f32.gmra.mrb[0].mxu0 %v2249
      %v2410 = vpop.f32.mrb[0].mxu0
      %v2411 = vadd.f32 0.0, %v2410
      %v2412 = vpop.f32.mrb[0].mxu0
      %2413 = vmatprep.mubr.f32.mxu0 0.0
      %2414 = vmatmul.mubr.f32.gmra.mrb[0].mxu0 %v2252
      %v2415 = vpop.f32.mrb[0].mxu0
      %v2416 = vadd.f32 0.0, %v2415
      %v2417 = vpop.f32.mrb[0].mxu0
      %2418 = vmatprep.mubr.f32.mxu0 0.0
      %2419 = vmatmul.mubr.f32.gmra.mrb[0].mxu0 %v2255
      %v2420 = vpop.f32.mrb[0].mxu0
      %v2421 = vadd.f32 0.0, %v2420
      %v2422 = vpop.f32.mrb[0].mxu0
      %2423 = vmatprep.mubr.f32.mxu0 0.0
      %2424 = vmatmul.mubr.f32.gmra.mrb[0].mxu0 %v2258
      %v2425 = vpop.f32.mrb[0].mxu0
      %v2426 = vadd.f32 0.0, %v2425
      %v2427 = vpop.f32.mrb[0].mxu0
      %2428 = vmatprep.mubr.f32.mxu0 0.0
      %2429 = vmatmul.mubr.f32.gmra.mrb[0].mxu0 %v2261
      %v2430 = vpop.f32.mrb[0].mxu0
      %v2431 = vadd.f32 0.0, %v2430
      %v2432 = vpop.f32.mrb[0].mxu0
      %2433 = vmatprep.mubr.f32.mxu0 0.0
      %2434 = vmatmul.mubr.f32.gmra.mrb[0].mxu0 %v2264
      %v2435 = vpop.f32.mrb[0].mxu0
      %v2436 = vadd.f32 0.0, %v2435
      %v2437 = vpop.f32.mrb[0].mxu0
      %2438 = vmatprep.mubr.f32.mxu0 0.0
      %2439 = vmatmul.mubr.f32.gmra.mrb[0].mxu0 %v2267
      %v2440 = vpop.f32.mrb[0].mxu0
      %v2441 = vadd.f32 0.0, %v2440
      %v2442 = vpop.f32.mrb[0].mxu0
      %2443 = vmatprep.mubr.f32.mxu0 0.0
      %2444 = vmatmul.mubr.f32.gmra.mrb[0].mxu0 %v2270
      %v2445 = vpop.f32.mrb[0].mxu0
      %v2446 = vadd.f32 0.0, %v2445
      %v2447 = vpop.f32.mrb[0].mxu0
      %2448 = vmatprep.mubr.f32.mxu0 0.0
      %2449 = vmatmul.mubr.f32.gmra.mrb[0].mxu0 %v2273
      %v2450 = vpop.f32.mrb[0].mxu0
      %v2451 = vadd.f32 0.0, %v2450
      %v2452 = vpop.f32.mrb[0].mxu0
      %2453 = vmatprep.mubr.f32.mxu0 0.0
      %2454 = vmatmul.mubr.f32.gmra.mrb[0].mxu0 %v2276
      %v2455 = vpop.f32.mrb[0].mxu0
      %v2456 = vadd.f32 0.0, %v2455
      %v2457 = vpop.f32.mrb[0].mxu0
      %2458 = vmatprep.mubr.f32.mxu0 0.0
      %2459 = vmatmul.mubr.f32.gmra.mrb[0].mxu0 %v2279
      %v2460 = vpop.f32.mrb[0].mxu0
      %v2461 = vadd.f32 0.0, %v2460
      %v2462 = vpop.f32.mrb[0].mxu0
      %2463 = vmatprep.mubr.f32.mxu0 0.0
      %2464 = vmatmul.mubr.f32.gmra.mrb[0].mxu0 %v2282
      %v2465 = vpop.f32.mrb[0].mxu0
      %v2466 = vadd.f32 0.0, %v2465
      %v2467 = vpop.f32.mrb[0].mxu0
      %2468 = vmatprep.mubr.f32.mxu0 0.0
      %2469 = vmatmul.mubr.f32.gmra.mrb[0].mxu0 %v2285
      %v2470 = vpop.f32.mrb[0].mxu0
      %v2471 = vadd.f32 0.0, %v2470
      %v2472 = vpop.f32.mrb[0].mxu0
      %2473 = vmatprep.mubr.f32.mxu0 0.0
      %2474 = vmatmul.mubr.f32.gmra.mrb[0].mxu0 %v2288
      %v2475 = vpop.f32.mrb[0].mxu0
      %v2476 = vadd.f32 0.0, %v2475
      %v2477 = vpop.f32.mrb[0].mxu0
      %2478 = vmatprep.mubr.f32.mxu0 0.0
      %2479 = vmatmul.mubr.f32.gmra.mrb[0].mxu0 %v2291
      %v2480 = vpop.f32.mrb[0].mxu0
      %v2481 = vadd.f32 0.0, %v2480
      %v2482 = vpop.f32.mrb[0].mxu0
      %2483 = vmatprep.mubr.f32.mxu0 0.0
      %2484 = vmatmul.mubr.f32.gmra.mrb[0].mxu0 %v2294
      %v2485 = vpop.f32.mrb[0].mxu0
      %v2486 = vadd.f32 0.0, %v2485
      %v2487 = vpop.f32.mrb[0].mxu0
      %2488 = vmatprep.mubr.f32.mxu0 0.0
      %2489 = vmatmul.mubr.f32.gmra.mrb[0].mxu0 %v2297
      %v2490 = vpop.f32.mrb[0].mxu0
      %v2491 = vadd.f32 0.0, %v2490
      %v2492 = vpop.f32.mrb[0].mxu0
      %2493 = vmatprep.mubr.f32.mxu0 0.0
      %2494 = vmatmul.mubr.f32.gmra.mrb[0].mxu0 %v2300
      %v2495 = vpop.f32.mrb[0].mxu0
      %v2496 = vadd.f32 0.0, %v2495
      %v2497 = vpop.f32.mrb[0].mxu0
      %2498 = vmatprep.mubr.f32.mxu0 0.0
      %2499 = vmatmul.mubr.f32.gmra.mrb[0].mxu0 %v2303
      %v2500 = vpop.f32.mrb[0].mxu0
      %v2501 = vadd.f32 0.0, %v2500
      %v2502 = vpop.f32.mrb[0].mxu0
      %2503 = vmatprep.mubr.f32.mxu0 0.0
      %2504 = vmatmul.mubr.f32.gmra.mrb[0].mxu0 %v2306
      %v2505 = vpop.f32.mrb[0].mxu0
      %v2506 = vadd.f32 0.0, %v2505
      %v2507 = vpop.f32.mrb[0].mxu0
      %2508 = vmatprep.mubr.f32.mxu0 0.0
      %2509 = vmatmul.mubr.f32.gmra.mrb[0].mxu0 %v2309
      %v2510 = vpop.f32.mrb[0].mxu0
      %v2511 = vadd.f32 0.0, %v2510
      %v2512 = vpop.f32.mrb[0].mxu0
      %2513 = vmatprep.mubr.f32.mxu0 0.0
      %2514 = vmatmul.mubr.f32.gmra.mrb[0].mxu0 %v2312
      %v2515 = vpop.f32.mrb[0].mxu0
      %v2516 = vadd.f32 0.0, %v2515
      %v2517 = vpop.f32.mrb[0].mxu0
      %2518 = vmatprep.mubr.f32.mxu0 0.0
      %2519 = vmatmul.mubr.f32.gmra.mrb[0].mxu0 %v2315
      %v2520 = vpop.f32.mrb[0].mxu0
      %v2521 = vadd.f32 0.0, %v2520
      %v2522 = vpop.f32.mrb[0].mxu0
      %2523 = vmatprep.mubr.f32.mxu0 0.0
      %2524 = vmatmul.mubr.f32.gmra.mrb[0].mxu0 %v2318
      %v2525 = vpop.f32.mrb[0].mxu0
      %v2526 = vadd.f32 0.0, %v2525
      %v2527 = vpop.f32.mrb[0].mxu0
      %2528 = vmatprep.mubr.f32.mxu0 0.0
      %2529 = vmatmul.mubr.f32.gmra.mrb[0].mxu0 %v2321
      %v2530 = vpop.f32.mrb[0].mxu0
      %v2531 = vadd.f32 0.0, %v2530
      %v2532 = vpop.f32.mrb[0].mxu0
      %2533 = vmatprep.mubr.f32.mxu0 0.0
      %2534 = vmatmul.mubr.f32.gmra.mrb[0].mxu0 %v2324
      %v2535 = vpop.f32.mrb[0].mxu0
      %v2536 = vadd.f32 0.0, %v2535
      %v2537 = vpop.f32.mrb[0].mxu0
      %2538 = vmatprep.mubr.f32.mxu0 0.0
      %2539 = vmatmul.mubr.f32.gmra.mrb[0].mxu0 %v2327
      %v2540 = vpop.f32.mrb[0].mxu0
      %v2541 = vadd.f32 0.0, %v2540
      %v2542 = vpop.f32.mrb[0].mxu0
      %2543 = vmatprep.mubr.f32.mxu0 0.0
      %2544 = vmatmul.mubr.f32.gmra.mrb[0].mxu0 %v2330
      %v2545 = vpop.f32.mrb[0].mxu0
      %v2546 = vadd.f32 0.0, %v2545
      %v2547 = vpop.f32.mrb[0].mxu0
      %2548 = vmatprep.mubr.f32.mxu0 0.0
      %2549 = vmatmul.mubr.f32.gmra.mrb[0].mxu0 %v2333
      %v2550 = vpop.f32.mrb[0].mxu0
      %v2551 = vadd.f32 0.0, %v2550
      %v2552 = vpop.f32.mrb[0].mxu0
      %2553 = vmatprep.mubr.f32.mxu0 0.0
      %2554 = vmatmul.mubr.f32.gmra.mrb[0].mxu0 %v2336
      %v2555 = vpop.f32.mrb[0].mxu0
      %v2556 = vadd.f32 0.0, %v2555
      %v2557 = vpop.f32.mrb[0].mxu0
      %2558 = vmatprep.mubr.f32.mxu0 0.0
      %2559 = vmatmul.mubr.f32.gmra.mrb[0].mxu0 %v2339
      %v2560 = vpop.f32.mrb[0].mxu0
      %v2561 = vadd.f32 0.0, %v2560
      %v2562 = vpop.f32.mrb[0].mxu0
      %2563 = vmatprep.mubr.f32.mxu0 0.0
      %2564 = vmatmul.mubr.f32.gmra.mrb[0].mxu0 %v2342
      %v2565 = vpop.f32.mrb[0].mxu0
      %v2566 = vadd.f32 0.0, %v2565
      %v2567 = vpop.f32.mrb[0].mxu0
      %2568 = vdwg.mxu0
      %v2569 = vsel %vm378, %v2411, 0.0
      %v2570 = vsel %vm378, %v2416, 0.0
      %v2571 = vadd.f32 %v2569, %v2570
      %v2572 = vsel %vm378, %v2421, 0.0
      %v2573 = vadd.f32 %v2571, %v2572
      %v2574 = vsel %vm378, %v2426, 0.0
      %v2575 = vadd.f32 %v2573, %v2574
      %v2576 = vsel %vm378, %v2431, 0.0
      %v2577 = vadd.f32 %v2575, %v2576
      %v2578 = vsel %vm378, %v2436, 0.0
      %v2579 = vadd.f32 %v2577, %v2578
      %v2580 = vsel %vm378, %v2441, 0.0
      %v2581 = vadd.f32 %v2579, %v2580
      %v2582 = vsel %vm378, %v2446, 0.0
      %v2583 = vadd.f32 %v2581, %v2582
      %v2584 = vsel %vm378, %v2451, 0.0
      %v2585 = vadd.f32 %v2583, %v2584
      %v2586 = vsel %vm378, %v2456, 0.0
      %v2587 = vadd.f32 %v2585, %v2586
      %v2588 = vsel %vm378, %v2461, 0.0
      %v2589 = vadd.f32 %v2587, %v2588
      %v2590 = vsel %vm378, %v2466, 0.0
      %v2591 = vadd.f32 %v2589, %v2590
      %v2592 = vsel %vm378, %v2471, 0.0
      %v2593 = vadd.f32 %v2591, %v2592
      %v2594 = vsel %vm378, %v2476, 0.0
      %v2595 = vadd.f32 %v2593, %v2594
      %v2596 = vsel %vm378, %v2481, 0.0
      %v2597 = vadd.f32 %v2595, %v2596
      %v2598 = vsel %vm378, %v2486, 0.0
      %v2599 = vadd.f32 %v2597, %v2598
      %v2600 = vsel %vm378, %v2491, 0.0
      %v2601 = vadd.f32 %v2599, %v2600
      %v2602 = vsel %vm378, %v2496, 0.0
      %v2603 = vadd.f32 %v2601, %v2602
      %v2604 = vsel %vm378, %v2501, 0.0
      %v2605 = vadd.f32 %v2603, %v2604
      %v2606 = vsel %vm378, %v2506, 0.0
      %v2607 = vadd.f32 %v2605, %v2606
      %v2608 = vsel %vm378, %v2511, 0.0
      %v2609 = vadd.f32 %v2607, %v2608
      %v2610 = vsel %vm378, %v2516, 0.0
      %v2611 = vadd.f32 %v2609, %v2610
      %v2612 = vsel %vm378, %v2521, 0.0
      %v2613 = vadd.f32 %v2611, %v2612
      %v2614 = vsel %vm378, %v2526, 0.0
      %v2615 = vadd.f32 %v2613, %v2614
      %v2616 = vsel %vm378, %v2531, 0.0
      %v2617 = vadd.f32 %v2615, %v2616
      %v2618 = vsel %vm378, %v2536, 0.0
      %v2619 = vadd.f32 %v2617, %v2618
      %v2620 = vsel %vm378, %v2541, 0.0
      %v2621 = vadd.f32 %v2619, %v2620
      %v2622 = vsel %vm378, %v2546, 0.0
      %v2623 = vadd.f32 %v2621, %v2622
      %v2624 = vsel %vm378, %v2551, 0.0
      %v2625 = vadd.f32 %v2623, %v2624
      %v2626 = vsel %vm378, %v2556, 0.0
      %v2627 = vadd.f32 %v2625, %v2626
      %v2628 = vsel %vm378, %v2561, 0.0
      %v2629 = vadd.f32 %v2627, %v2628
      %v2630 = vsel %vm378, %v2566, 0.0
      %v2631 = vadd.f32 %v2629, %v2630
      %v2632 = vrot.slane %v2631, 4
      %v2633 = vadd.f32 %v2631, %v2632
      %v2634 = vrot.slane %v2633, 2
      %v2635 = vadd.f32 %v2633, %v2634
      %v2636 = vrot.slane %v2635, 1
      %v2637 = vadd.f32 %v2635, %v2636
      %vm2638 = vcmask 57344
      %2639 = vst.msk [vmem:[%s235] sm:$0x1] %vm2638, %v2637
      %v2640 = vmul.f32 %v2411, %v2411
      %v2641 = vmul.f32 %v2416, %v2416
      %v2642 = vmul.f32 %v2421, %v2421
      %v2643 = vmul.f32 %v2426, %v2426
      %v2644 = vmul.f32 %v2431, %v2431
      %v2645 = vmul.f32 %v2436, %v2436
      %v2646 = vmul.f32 %v2441, %v2441
      %v2647 = vmul.f32 %v2446, %v2446
      %v2648 = vmul.f32 %v2451, %v2451
      %v2649 = vmul.f32 %v2456, %v2456
      %v2650 = vmul.f32 %v2461, %v2461
      %v2651 = vmul.f32 %v2466, %v2466
      %v2652 = vmul.f32 %v2471, %v2471
      %v2653 = vmul.f32 %v2476, %v2476
      %v2654 = vmul.f32 %v2481, %v2481
      %v2655 = vmul.f32 %v2486, %v2486
      %v2656 = vmul.f32 %v2491, %v2491
      %v2657 = vmul.f32 %v2496, %v2496
      %v2658 = vmul.f32 %v2501, %v2501
      %v2659 = vmul.f32 %v2506, %v2506
      %v2660 = vmul.f32 %v2511, %v2511
      %v2661 = vmul.f32 %v2516, %v2516
      %v2662 = vmul.f32 %v2521, %v2521
      %v2663 = vmul.f32 %v2526, %v2526
      %v2664 = vmul.f32 %v2531, %v2531
      %v2665 = vmul.f32 %v2536, %v2536
      %v2666 = vmul.f32 %v2541, %v2541
      %v2667 = vmul.f32 %v2546, %v2546
      %v2668 = vmul.f32 %v2551, %v2551
      %v2669 = vmul.f32 %v2556, %v2556
      %v2670 = vmul.f32 %v2561, %v2561
      %v2671 = vmul.f32 %v2566, %v2566
      %v2672 = vsel %vm378, %v2640, 0.0
      %v2673 = vsel %vm378, %v2641, 0.0
      %v2674 = vadd.f32 %v2672, %v2673
      %v2675 = vsel %vm378, %v2642, 0.0
      %v2676 = vadd.f32 %v2674, %v2675
      %v2677 = vsel %vm378, %v2643, 0.0
      %v2678 = vadd.f32 %v2676, %v2677
      %v2679 = vsel %vm378, %v2644, 0.0
      %v2680 = vadd.f32 %v2678, %v2679
      %v2681 = vsel %vm378, %v2645, 0.0
      %v2682 = vadd.f32 %v2680, %v2681
      %v2683 = vsel %vm378, %v2646, 0.0
      %v2684 = vadd.f32 %v2682, %v2683
      %v2685 = vsel %vm378, %v2647, 0.0
      %v2686 = vadd.f32 %v2684, %v2685
      %v2687 = vsel %vm378, %v2648, 0.0
      %v2688 = vadd.f32 %v2686, %v2687
      %v2689 = vsel %vm378, %v2649, 0.0
      %v2690 = vadd.f32 %v2688, %v2689
      %v2691 = vsel %vm378, %v2650, 0.0
      %v2692 = vadd.f32 %v2690, %v2691
      %v2693 = vsel %vm378, %v2651, 0.0
      %v2694 = vadd.f32 %v2692, %v2693
      %v2695 = vsel %vm378, %v2652, 0.0
      %v2696 = vadd.f32 %v2694, %v2695
      %v2697 = vsel %vm378, %v2653, 0.0
      %v2698 = vadd.f32 %v2696, %v2697
      %v2699 = vsel %vm378, %v2654, 0.0
      %v2700 = vadd.f32 %v2698, %v2699
      %v2701 = vsel %vm378, %v2655, 0.0
      %v2702 = vadd.f32 %v2700, %v2701
      %v2703 = vsel %vm378, %v2656, 0.0
      %v2704 = vadd.f32 %v2702, %v2703
      %v2705 = vsel %vm378, %v2657, 0.0
      %v2706 = vadd.f32 %v2704, %v2705
      %v2707 = vsel %vm378, %v2658, 0.0
      %v2708 = vadd.f32 %v2706, %v2707
      %v2709 = vsel %vm378, %v2659, 0.0
      %v2710 = vadd.f32 %v2708, %v2709
      %v2711 = vsel %vm378, %v2660, 0.0
      %v2712 = vadd.f32 %v2710, %v2711
      %v2713 = vsel %vm378, %v2661, 0.0
      %v2714 = vadd.f32 %v2712, %v2713
      %v2715 = vsel %vm378, %v2662, 0.0
      %v2716 = vadd.f32 %v2714, %v2715
      %v2717 = vsel %vm378, %v2663, 0.0
      %v2718 = vadd.f32 %v2716, %v2717
      %v2719 = vsel %vm378, %v2664, 0.0
      %v2720 = vadd.f32 %v2718, %v2719
      %v2721 = vsel %vm378, %v2665, 0.0
      %v2722 = vadd.f32 %v2720, %v2721
      %v2723 = vsel %vm378, %v2666, 0.0
      %v2724 = vadd.f32 %v2722, %v2723
      %v2725 = vsel %vm378, %v2667, 0.0
      %v2726 = vadd.f32 %v2724, %v2725
      %v2727 = vsel %vm378, %v2668, 0.0
      %v2728 = vadd.f32 %v2726, %v2727
      %v2729 = vsel %vm378, %v2669, 0.0
      %v2730 = vadd.f32 %v2728, %v2729
      %v2731 = vsel %vm378, %v2670, 0.0
      %v2732 = vadd.f32 %v2730, %v2731
      %v2733 = vsel %vm378, %v2671, 0.0
      %v2734 = vadd.f32 %v2732, %v2733
      %v2735 = vrot.slane %v2734, 4
      %v2736 = vadd.f32 %v2734, %v2735
      %v2737 = vrot.slane %v2736, 2
      %v2738 = vadd.f32 %v2736, %v2737
      %v2739 = vrot.slane %v2738, 1
      %v2740 = vadd.f32 %v2738, %v2739
      %2741 = vst.msk [vmem:[%s235 + $0x1] sm:$0x1] %vm2638, %v2740
      %2742 = vst.msk [vmem:[%s231] sm:$0xff] %vm378, %v2411
      %2743 = vst.msk [vmem:[%s231 + $0x8] sm:$0xff] %vm378, %v2416
      %2744 = vst.msk [vmem:[%s231 + $0x10] sm:$0xff] %vm378, %v2421
      %2745 = vst.msk [vmem:[%s231 + $0x18] sm:$0xff] %vm378, %v2426
      %2746 = vst.msk [vmem:[%s231 + $0x20] sm:$0xff] %vm378, %v2431
      %2747 = vst.msk [vmem:[%s231 + $0x28] sm:$0xff] %vm378, %v2436
      %2748 = vst.msk [vmem:[%s231 + $0x30] sm:$0xff] %vm378, %v2441
      %2749 = vst.msk [vmem:[%s231 + $0x38] sm:$0xff] %vm378, %v2446
      %2750 = vst.msk [vmem:[%s231 + $0x40] sm:$0xff] %vm378, %v2451
      %2751 = vst.msk [vmem:[%s231 + $0x48] sm:$0xff] %vm378, %v2456
      %2752 = vst.msk [vmem:[%s231 + $0x50] sm:$0xff] %vm378, %v2461
      %2753 = vst.msk [vmem:[%s231 + $0x58] sm:$0xff] %vm378, %v2466
      %2754 = vst.msk [vmem:[%s231 + $0x60] sm:$0xff] %vm378, %v2471
      %2755 = vst.msk [vmem:[%s231 + $0x68] sm:$0xff] %vm378, %v2476
      %2756 = vst.msk [vmem:[%s231 + $0x70] sm:$0xff] %vm378, %v2481
      %2757 = vst.msk [vmem:[%s231 + $0x78] sm:$0xff] %vm378, %v2486
      %2758 = vst.msk [vmem:[%s231 + $0x80] sm:$0xff] %vm378, %v2491
      %2759 = vst.msk [vmem:[%s231 + $0x88] sm:$0xff] %vm378, %v2496
      %2760 = vst.msk [vmem:[%s231 + $0x90] sm:$0xff] %vm378, %v2501
      %2761 = vst.msk [vmem:[%s231 + $0x98] sm:$0xff] %vm378, %v2506
      %2762 = vst.msk [vmem:[%s231 + $0xa0] sm:$0xff] %vm378, %v2511
      %2763 = vst.msk [vmem:[%s231 + $0xa8] sm:$0xff] %vm378, %v2516
      %2764 = vst.msk [vmem:[%s231 + $0xb0] sm:$0xff] %vm378, %v2521
      %2765 = vst.msk [vmem:[%s231 + $0xb8] sm:$0xff] %vm378, %v2526
      %2766 = vst.msk [vmem:[%s231 + $0xc0] sm:$0xff] %vm378, %v2531
      %2767 = vst.msk [vmem:[%s231 + $0xc8] sm:$0xff] %vm378, %v2536
      %2768 = vst.msk [vmem:[%s231 + $0xd0] sm:$0xff] %vm378, %v2541
      %2769 = vst.msk [vmem:[%s231 + $0xd8] sm:$0xff] %vm378, %v2546
      %2770 = vst.msk [vmem:[%s231 + $0xe0] sm:$0xff] %vm378, %v2551
      %2771 = vst.msk [vmem:[%s231 + $0xe8] sm:$0xff] %vm378, %v2556
      %2772 = vst.msk [vmem:[%s231 + $0xf0] sm:$0xff] %vm378, %v2561
      %2773 = vst.msk [vmem:[%s231 + $0xf8] sm:$0xff] %vm378, %v2566
      %p2774 = scmp.lt.s32.totalorder %s17, 1
      %s2775 = scalar_select %p2774, %s17, 1
      %s2776 = smul.addr %s2775, 32
      %s2777 = smul.addr %s2776, 8
      %s2778 = scalar_lea.vmem %s4, %s2777
      %p2779 = scmp.lt.s32.totalorder %s17, 1
      %s2780 = scalar_select %p2779, %s17, 1
      %s2781 = smul.addr %s2780, 2
      %s2782 = scalar_lea.vmem %s5, %s2781
      // Predicated region
      $region37: #{_bottleneck_impl.5} parent=35 // pred_check
        %p2783 = pneg %p124
      $region38: #{_bottleneck_impl.5} parent=35 // pred_check_branch
        %2785 = sbr.rel (%p2783) target = $region40
      $region39: #{_bottleneck_impl.5} parent=35 // pred_region
        _
      $region40: #{_bottleneck_impl.5} parent=35 // pred_fallthru
        _
      // Predicated region
      $region41: #{_bottleneck_impl.5} parent=35 // pred_check
        %p2786 = pneg %p150
      $region42: #{_bottleneck_impl.5} parent=35 // pred_check_branch
        %2788 = sbr.rel (%p2786) target = $region44
      $region43: #{_bottleneck_impl.5} parent=35 // pred_region
        _
      $region44: #{_bottleneck_impl.5} parent=35 // pred_fallthru
        _
    $region36: #{_bottleneck_impl.5} parent=5 // pred_fallthru
      _
    %p2789 = scmp.le.s32.totalorder 2, %s12
    // Predicated region
    $region45: #{_bottleneck_impl.5} parent=5 // pred_check
      %p2790 = pneg %p2789
    $region46: #{_bottleneck_impl.5} parent=5 // pred_check_branch
      %2792 = sbr.rel (%p2790) target = $region48
    $region47: #{_bottleneck_impl.5} parent=5 // pred_region
      %s2793 = ssub.s32 %s12, 2
      // Predicated region
      $region49: #{_bottleneck_impl.5} parent=47 // pred_check
        %p2794 = pneg %p130
      $region50: #{_bottleneck_impl.5} parent=47 // pred_check_branch
        %2796 = sbr.rel (%p2794) target = $region52
      $region51: #{_bottleneck_impl.5} parent=47 // pred_region
        %p2797 = scmp.lt.s32.totalorder %s18, 1
        %s2798 = scalar_select %p2797, %s18, 1
        %s2799 = smul.addr %s2798, 32
        %s2800 = smul.addr %s2799, 8
        %s2801 = scalar_lea.vmem %s4, %s2800
      $region52: #{_bottleneck_impl.5} parent=47 // pred_fallthru
        _
      // Predicated region
      $region53: #{_bottleneck_impl.5} parent=47 // pred_check
        %p2802 = pneg %p156
      $region54: #{_bottleneck_impl.5} parent=47 // pred_check_branch
        %2804 = sbr.rel (%p2802) target = $region56
      $region55: #{_bottleneck_impl.5} parent=47 // pred_region
        %p2805 = scmp.lt.s32.totalorder %s18, 1
        %s2806 = scalar_select %p2805, %s18, 1
        %s2807 = smul.addr %s2806, 2
        %s2808 = scalar_lea.vmem %s5, %s2807
      $region56: #{_bottleneck_impl.5} parent=47 // pred_fallthru
        _
    $region48: #{_bottleneck_impl.5} parent=5 // pred_fallthru
      _
  $region6: #{_bottleneck_impl.5} parent=0 // loop_footer
    %s16 = sadd.s32 1, %s12
  $region7: #{_bottleneck_impl.5} parent=0 // loop_footer_branch
    %11 = sbr.rel target = $region3
  $region8: #{_bottleneck_impl.5} parent=0 // loop_exit
    _

</llo_original>
